<compile_context>
chip_gen: v7x
topology: tpu7x:2x2x1
jax: 0.10.0
libtpu: 0.0.40
codegen_flags: <defaults>
</compile_context>

<pallas_src>
import math
import functools

import jax
import jax.numpy as jnp
from jax import lax
from jax.experimental import pallas as pl
from jax.experimental.pallas import tpu as pltpu

# ----------------------------- configuration ---------------------------------
BATCH = 2
SEQ = 8
HIDDEN = 32
NUM_HEADS = 4
HEAD_DIM = HIDDEN // NUM_HEADS
INTERMEDIATE = 64
MAX_REL_POS = 127
LN_EPS = 1e-12


# ------------------- relative position embeddings (host-side) ----------------
def generate_relative_positions_embeddings(length, depth, max_relative_position=127):
    """JAX port of _generate_relative_positions_embeddings (sliced to `length`)."""
    vocab_size = 2 * max_relative_position + 1
    rng = jnp.arange(length)
    distance = rng[None, :] - rng[:, None]                      # [i, j] = j - i
    distance = jnp.clip(distance, -max_relative_position, max_relative_position)
    final_mat = distance + max_relative_position                # (L, L) indices

    pos = jnp.arange(vocab_size, dtype=jnp.float32)[:, None]    # (V, 1)
    i = jnp.arange(depth // 2, dtype=jnp.float32)[None, :]      # (1, D/2)
    angle = pos / jnp.power(10000.0, 2.0 * i / depth)            # (V, D/2)
    table = jnp.zeros((vocab_size, depth), dtype=jnp.float32)
    table = table.at[:, 0::2].set(jnp.sin(angle))
    table = table.at[:, 1::2].set(jnp.cos(angle))
    return table[final_mat]                                      # (L, L, depth)


# ------------------------------ kernel helpers --------------------------------
def _layernorm(x, gamma, beta, eps):
    mean = jnp.mean(x, axis=-1, keepdims=True)
    var = jnp.mean(jnp.square(x - mean), axis=-1, keepdims=True)
    return (x - mean) * lax.rsqrt(var + eps) * gamma + beta


def _gelu(x):
    # Exact (erf) GELU, matching BERT's "gelu".
    return 0.5 * x * (1.0 + lax.erf(x * (1.0 / math.sqrt(2.0))))


# --------------------------------- kernel ------------------------------------
def nezha_layer_kernel(
    x_ref, mask_ref,
    wqkv_ref, bqkv_ref, rel_ref,
    wao_ref, wi_ref, wo_ref,
    vecs_ref, bi_ref,
    out_ref, att_ref,
    *, num_heads,
):
    f32 = jnp.float32
    bf16 = jnp.bfloat16

    B, S, H = x_ref.shape
    NH = num_heads
    D = H // NH
    N = NH * B                                  # heads are head-major: n = h*B + b

    x = x_ref[...]                              # (B, S, H) f32
    x2d = x.reshape(B * S, H)                   # fold batch into rows
    mask = mask_ref[...]                        # (B, S) additive mask over the "to" axis

    vecs = vecs_ref[...]                        # (6, H): [b_ao, ln1_g, ln1_b, b_out, ln2_g, ln2_b]
    bao, g1, be1 = vecs[0:1], vecs[1:2], vecs[2:3]
    bo, g2, be2 = vecs[3:4], vecs[4:5], vecs[5:6]

    # ---- fused QKV projection: one (B*S, H) @ (H, 3H) bf16 MXU pass ----
    # (1/sqrt(D) was folded into the Q columns of wqkv/bqkv at parameter-prep time.)
    qkv = jnp.dot(x2d.astype(bf16), wqkv_ref[...],
                  preferred_element_type=f32) + bqkv_ref[...]          # (B*S, 3H) f32

    def split_heads(t2d):
        # (B*S, H) -> (N, S, D) with n = h*B + b : one 3-D (1,0,2) transpose plus free
        # row-major reshapes (no per-batch Python loop, no concatenate).
        t = jnp.transpose(t2d.reshape(B * S, NH, D), (1, 0, 2))        # (NH, B*S, D)
        return t.reshape(N, S, D)

    q_n = split_heads(qkv[:, :H])               # (N, S, D)  (already scaled via weights)
    k_n = split_heads(qkv[:, H:2 * H])
    v_n = split_heads(qkv[:, 2 * H:])
    # Single small transpose bridging the batch-over-n content path and the batch-over-f
    # relative-position path (Mosaic batched matmuls want the batch dim leading).
    q_fn = jnp.transpose(q_n, (1, 0, 2))        # (S_from, N, D)

    rel = rel_ref[...]                          # (S, S, D) bf16 relative-position table

    # ---- attention scores: batched over all heads / all from-positions ----
    scores = jnp.einsum('nfd,ntd->nft', q_n.astype(bf16), k_n.astype(bf16),
                        preferred_element_type=f32)                    # (N, S, S)
    key_pos = jnp.einsum('fnd,ftd->nft', q_fn.astype(bf16), rel,
                         preferred_element_type=f32)                   # (N, S, S)
    # mask_n[h*B+b, t] = mask[b, t] : one broadcast + free leading-dim reshape.
    mask_n = jnp.broadcast_to(mask[None, :, :], (NH, B, S)).reshape(N, S)
    scores = scores + key_pos + mask_n[:, None, :]
    att_ref[...] = scores.astype(att_ref.dtype)  # layer_att: scaled + masked pre-softmax

    # ---- softmax over the "to" axis (f32) ----
    m = jnp.max(scores, axis=-1, keepdims=True)
    e = jnp.exp(scores - m)
    probs = e * pl.reciprocal(jnp.sum(e, axis=-1, keepdims=True), approx=True)
    # TODO(synk): attention-probs dropout is identity (eval mode).

    # ---- context = probs @ V + probs @ rel (value position scores) ----
    ctx = jnp.einsum('nft,ntd->nfd', probs.astype(bf16), v_n.astype(bf16),
                     preferred_element_type=f32)                       # (N, S, D)
    probs_fn = jnp.transpose(probs, (1, 0, 2))                         # (S, N, S)
    val_pos = jnp.einsum('fnt,ftd->fnd', probs_fn.astype(bf16), rel,
                         preferred_element_type=f32)                   # (S, N, D)
    ctx = ctx + jnp.transpose(val_pos, (1, 0, 2))                      # (N, S, D)

    # merge heads back to (B*S, H) — exact inverse of split_heads
    ctx2d = jnp.transpose(ctx.reshape(NH, B * S, D), (1, 0, 2)).reshape(B * S, H)

    # ---- BertSelfOutput: dense + residual + LayerNorm ----
    attn_out = jnp.dot(ctx2d.astype(bf16), wao_ref[...],
                       preferred_element_type=f32) + bao
    h1 = _layernorm(attn_out + x2d, g1, be1, LN_EPS)

    # ---- BertIntermediate: dense + GELU ----
    inter = _gelu(jnp.dot(h1.astype(bf16), wi_ref[...],
                          preferred_element_type=f32) + bi_ref[...])

    # ---- BertOutput: dense + residual + LayerNorm ----
    ffn = jnp.dot(inter.astype(bf16), wo_ref[...],
                  preferred_element_type=f32) + bo
    out_ref[...] = _layernorm(ffn + h1, g2, be2, LN_EPS).reshape(B, S, H)
    # TODO(synk): hidden dropout layers are identity (eval mode).


# -------------------------------- wrapper -------------------------------------
def prepare_params(raw):
    """One-time parameter preparation (hoisted out of the per-call hot path):
    fuse QKV weights/biases, fold 1/sqrt(D) into the Q columns, consolidate small
    vectors into one (6,H) slab, cast MXU operands + rel table to bf16."""
    H = raw["wq"].shape[0]
    D = H // NUM_HEADS
    scale = 1.0 / math.sqrt(D)
    bf16 = jnp.bfloat16
    wqkv = jnp.concatenate([raw["wq"] * scale, raw["wk"], raw["wv"]], axis=1).astype(bf16)
    bqkv = jnp.concatenate([raw["bq"] * scale, raw["bk"], raw["bv"]], axis=1)    # (1,3H) f32
    vecs = jnp.concatenate([raw["bao"], raw["g1"], raw["be1"],
                            raw["bo"], raw["g2"], raw["be2"]], axis=0)           # (6, H) f32
    return {
        "wqkv": wqkv, "bqkv": bqkv, "vecs": vecs,
        "rel": raw["rel"].astype(bf16),
        "wao": raw["wao"].astype(bf16),
        "wi": raw["wi"].astype(bf16),
        "wo": raw["wo"].astype(bf16),
        "bi": raw["bi"],
    }


def nezha_layer(hidden_states, attention_mask, prep, att_dtype=jnp.float32):
    """Fused NeZhaLayer forward. `prep` must come from prepare_params() (one-time)."""
    B, S, H = hidden_states.shape
    NH = NUM_HEADS

    inputs = (hidden_states, attention_mask,
              prep["wqkv"], prep["bqkv"], prep["rel"],
              prep["wao"], prep["wi"], prep["wo"], prep["vecs"], prep["bi"])
    out_shape = [
        jax.ShapeDtypeStruct((B, S, H), jnp.float32),            # layer_output
        jax.ShapeDtypeStruct((NH * B, S, S), att_dtype),         # layer_att (head-major flat)
    ]

    # Explicit VMEM residency + a scoped-VMEM limit sized from the actual footprint.
    io_bytes = sum(int(a.size) * a.dtype.itemsize for a in inputs)
    io_bytes += sum(math.prod(s.shape) * jnp.dtype(s.dtype).itemsize for s in out_shape)
    vmem_limit = int(min(100 * 1024 * 1024, max(16 * 1024 * 1024, 8 * io_bytes)))
    vmem = pltpu.MemorySpace.VMEM

    kernel = functools.partial(nezha_layer_kernel, num_heads=NH)
    # No grid: the whole layer (all batches) runs in one invocation, everything VMEM-resident.
    # TODO(synk): add a "parallel" row/head grid + rel-table streaming at production shapes
    #             (mandatory on v7x's two TensorCores).
    layer_output, att_flat = pl.pallas_call(
        kernel,
        out_shape=out_shape,
        in_specs=[pl.BlockSpec(memory_space=vmem)] * len(inputs),
        out_specs=[pl.BlockSpec(memory_space=vmem)] * 2,
        compiler_params=pltpu.CompilerParams(vmem_limit_bytes=vmem_limit),
    )(*inputs)

    # Kernel-internal head order is head-major (n = h*B + b); reorder to torch's (B,NH,S,S)
    # once on the host (tiny here; at production layer_att should be bf16/gated anyway).
    layer_att = jnp.swapaxes(att_flat.reshape(NH, B, S, S), 0, 1)
    return layer_output, layer_att


# ---------------------------------- main --------------------------------------
def init_params(key):
    ks = jax.random.split(key, 8)
    std = 0.02
    H, I = HIDDEN, INTERMEDIATE
    return {
        "wq": jax.random.normal(ks[0], (H, H), jnp.float32) * std,
        "bq": jnp.zeros((1, H), jnp.float32),
        "wk": jax.random.normal(ks[1], (H, H), jnp.float32) * std,
        "bk": jnp.zeros((1, H), jnp.float32),
        "wv": jax.random.normal(ks[2], (H, H), jnp.float32) * std,
        "bv": jnp.zeros((1, H), jnp.float32),
        "rel": generate_relative_positions_embeddings(SEQ, HEAD_DIM, MAX_REL_POS),
        "wao": jax.random.normal(ks[3], (H, H), jnp.float32) * std,
        "bao": jnp.zeros((1, H), jnp.float32),
        "g1": jnp.ones((1, H), jnp.float32),
        "be1": jnp.zeros((1, H), jnp.float32),
        "wi": jax.random.normal(ks[4], (H, I), jnp.float32) * std,
        "bi": jnp.zeros((1, I), jnp.float32),
        "wo": jax.random.normal(ks[5], (I, H), jnp.float32) * std,
        "bo": jnp.zeros((1, H), jnp.float32),
        "g2": jnp.ones((1, H), jnp.float32),
        "be2": jnp.zeros((1, H), jnp.float32),
    }


if __name__ == "__main__":
    key = jax.random.PRNGKey(0)
    k_x, k_p = jax.random.split(key)

    hidden_states = jax.random.normal(k_x, (BATCH, SEQ, HIDDEN), jnp.float32)
    # Additive attention mask: 0 for attended positions, -10000 for masked "to" positions
    # (equivalent to the standard BERT extended mask (B, 1, 1, S)).
    attention_mask = jnp.zeros((BATCH, SEQ), jnp.float32).at[:, SEQ - 1].set(-10000.0)

    raw_params = init_params(k_p)
    prep = jax.tree_util.tree_map(jax.block_until_ready, prepare_params(raw_params))  # one-time

    layer_output, layer_att = nezha_layer(hidden_states, attention_mask, prep)
    jax.block_until_ready((layer_output, layer_att))

    assert layer_output.shape == (BATCH, SEQ, HIDDEN)
    assert layer_att.shape == (BATCH, NUM_HEADS, SEQ, SEQ)
    print("KERNEL_OK")
</pallas_src>

<mosaic_0001>
module attributes {stable_mosaic.version = 11 : i64} {
  func.func @nezha_layer_kernel(%arg0: memref<2x8x32xf32, #tpu.memory_space<vmem>>, %arg1: memref<2x8xf32, #tpu.memory_space<vmem>>, %arg2: memref<32x96xbf16, #tpu.memory_space<vmem>>, %arg3: memref<1x96xf32, #tpu.memory_space<vmem>>, %arg4: memref<8x8x8xbf16, #tpu.memory_space<vmem>>, %arg5: memref<32x32xbf16, #tpu.memory_space<vmem>>, %arg6: memref<32x64xbf16, #tpu.memory_space<vmem>>, %arg7: memref<64x32xbf16, #tpu.memory_space<vmem>>, %arg8: memref<6x32xf32, #tpu.memory_space<vmem>>, %arg9: memref<1x64xf32, #tpu.memory_space<vmem>>, %arg10: memref<2x8x32xf32, #tpu.memory_space<vmem>>, %arg11: memref<8x8x8xf32, #tpu.memory_space<vmem>>) attributes {dimension_semantics = [], scalar_prefetch = 0 : i64, scratch_operands = 0 : i64, tpu.core_type = #tpu.core_type<tc>} {
    %c0 = arith.constant 0 : index
    %c0_0 = arith.constant 0 : index
    %c0_1 = arith.constant 0 : index
    %0 = vector.load %arg0[%c0, %c0_0, %c0_1] : memref<2x8x32xf32, #tpu.memory_space<vmem>>, vector<2x8x32xf32>
    %1 = vector.shape_cast %0 : vector<2x8x32xf32> to vector<16x32xf32>
    %c0_2 = arith.constant 0 : index
    %c0_3 = arith.constant 0 : index
    %2 = vector.load %arg1[%c0_2, %c0_3] : memref<2x8xf32, #tpu.memory_space<vmem>>, vector<2x8xf32>
    %c0_4 = arith.constant 0 : index
    %c0_5 = arith.constant 0 : index
    %3 = vector.load %arg8[%c0_4, %c0_5] : memref<6x32xf32, #tpu.memory_space<vmem>>, vector<6x32xf32>
    %4 = vector.extract_strided_slice %3 {offsets = [0, 0], sizes = [1, 32], strides = [1, 1]} : vector<6x32xf32> to vector<1x32xf32>
    %5 = vector.extract_strided_slice %3 {offsets = [1, 0], sizes = [1, 32], strides = [1, 1]} : vector<6x32xf32> to vector<1x32xf32>
    %6 = vector.extract_strided_slice %3 {offsets = [2, 0], sizes = [1, 32], strides = [1, 1]} : vector<6x32xf32> to vector<1x32xf32>
    %7 = vector.extract_strided_slice %3 {offsets = [3, 0], sizes = [1, 32], strides = [1, 1]} : vector<6x32xf32> to vector<1x32xf32>
    %8 = vector.extract_strided_slice %3 {offsets = [4, 0], sizes = [1, 32], strides = [1, 1]} : vector<6x32xf32> to vector<1x32xf32>
    %9 = vector.extract_strided_slice %3 {offsets = [5, 0], sizes = [1, 32], strides = [1, 1]} : vector<6x32xf32> to vector<1x32xf32>
    %10 = arith.truncf %1 : vector<16x32xf32> to vector<16x32xbf16>
    %c0_6 = arith.constant 0 : index
    %c0_7 = arith.constant 0 : index
    %11 = vector.load %arg2[%c0_6, %c0_7] : memref<32x96xbf16, #tpu.memory_space<vmem>>, vector<32x96xbf16>
    %cst = arith.constant dense<0.000000e+00> : vector<16x96xf32>
    %12 = tpu.matmul %10, %11, %cst {dimension_numbers = #tpu.dot_dimension_numbers<[1], [0], [0], [1], [0, 0, 1, 1], [], []>} : vector<16x32xbf16>, vector<32x96xbf16>, vector<16x96xf32> -> vector<16x96xf32>
    %c0_8 = arith.constant 0 : index
    %c0_9 = arith.constant 0 : index
    %13 = vector.load %arg3[%c0_8, %c0_9] : memref<1x96xf32, #tpu.memory_space<vmem>>, vector<1x96xf32>
    %14 = vector.broadcast %13 : vector<1x96xf32> to vector<16x96xf32>
    %15 = arith.addf %12, %14 : vector<16x96xf32>
    %16 = vector.extract_strided_slice %15 {offsets = [0, 0], sizes = [16, 32], strides = [1, 1]} : vector<16x96xf32> to vector<16x32xf32>
    %17 = vector.shape_cast %16 : vector<16x32xf32> to vector<16x4x8xf32>
    %18 = tpu.transpose %17, [1, 0, 2] : vector<16x4x8xf32> -> vector<4x16x8xf32>
    %19 = vector.shape_cast %18 : vector<4x16x8xf32> to vector<8x8x8xf32>
    %20 = vector.extract_strided_slice %15 {offsets = [0, 32], sizes = [16, 32], strides = [1, 1]} : vector<16x96xf32> to vector<16x32xf32>
    %21 = vector.shape_cast %20 : vector<16x32xf32> to vector<16x4x8xf32>
    %22 = tpu.transpose %21, [1, 0, 2] : vector<16x4x8xf32> -> vector<4x16x8xf32>
    %23 = vector.shape_cast %22 : vector<4x16x8xf32> to vector<8x8x8xf32>
    %24 = vector.extract_strided_slice %15 {offsets = [0, 64], sizes = [16, 32], strides = [1, 1]} : vector<16x96xf32> to vector<16x32xf32>
    %25 = vector.shape_cast %24 : vector<16x32xf32> to vector<16x4x8xf32>
    %26 = tpu.transpose %25, [1, 0, 2] : vector<16x4x8xf32> -> vector<4x16x8xf32>
    %27 = vector.shape_cast %26 : vector<4x16x8xf32> to vector<8x8x8xf32>
    %28 = tpu.transpose %19, [1, 0, 2] : vector<8x8x8xf32> -> vector<8x8x8xf32>
    %c0_10 = arith.constant 0 : index
    %c0_11 = arith.constant 0 : index
    %c0_12 = arith.constant 0 : index
    %29 = vector.load %arg4[%c0_10, %c0_11, %c0_12] : memref<8x8x8xbf16, #tpu.memory_space<vmem>>, vector<8x8x8xbf16>
    %30 = arith.truncf %19 : vector<8x8x8xf32> to vector<8x8x8xbf16>
    %31 = arith.truncf %23 : vector<8x8x8xf32> to vector<8x8x8xbf16>
    "tpu.trace_start"() <{level = 10 : i32, message = "nfd,ntd->nft"}> : () -> ()
    %cst_13 = arith.constant dense<0.000000e+00> : vector<8x8x8xf32>
    %32 = tpu.matmul %30, %31, %cst_13 {dimension_numbers = #tpu.dot_dimension_numbers<[2], [2], [1], [1], [0, 0, 0, 1, 1, 1], [0], [0]>} : vector<8x8x8xbf16>, vector<8x8x8xbf16>, vector<8x8x8xf32> -> vector<8x8x8xf32>
    "tpu.trace_stop"() : () -> ()
    %33 = arith.truncf %28 : vector<8x8x8xf32> to vector<8x8x8xbf16>
    "tpu.trace_start"() <{level = 10 : i32, message = "fnd,ftd->nft"}> : () -> ()
    %cst_14 = arith.constant dense<0.000000e+00> : vector<8x8x8xf32>
    %34 = tpu.matmul %29, %33, %cst_14 {dimension_numbers = #tpu.dot_dimension_numbers<[2], [2], [1], [1], [0, 0, 0, 1, 1, 1], [0], [0]>} : vector<8x8x8xbf16>, vector<8x8x8xbf16>, vector<8x8x8xf32> -> vector<8x8x8xf32>
    %35 = tpu.transpose %34, [2, 0, 1] : vector<8x8x8xf32> -> vector<8x8x8xf32>
    "tpu.trace_stop"() : () -> ()
    %36 = vector.shape_cast %2 : vector<2x8xf32> to vector<1x2x8xf32>
    %37 = vector.shape_cast %36 : vector<1x2x8xf32> to vector<1x2x8xf32>
    %38 = vector.broadcast %37 : vector<1x2x8xf32> to vector<4x2x8xf32>
    %39 = vector.shape_cast %38 : vector<4x2x8xf32> to vector<8x8xf32>
    %40 = arith.addf %32, %35 : vector<8x8x8xf32>
    %41 = vector.shape_cast %39 : vector<8x8xf32> to vector<8x1x8xf32>
    %42 = vector.broadcast %41 : vector<8x1x8xf32> to vector<8x8x8xf32>
    %43 = arith.addf %40, %42 : vector<8x8x8xf32>
    %c0_15 = arith.constant 0 : index
    %c0_16 = arith.constant 0 : index
    %c0_17 = arith.constant 0 : index
    %44 = vector.load %arg11[%c0_15, %c0_16, %c0_17] : memref<8x8x8xf32, #tpu.memory_space<vmem>>, vector<8x8x8xf32>
    tpu.vector_store %arg11[%c0_15, %c0_16, %c0_17], %43 {strides = array<i32>} : memref<8x8x8xf32, #tpu.memory_space<vmem>>, vector<8x8x8xf32>,
    %cst_18 = arith.constant dense<0xFF800000> : vector<8x8xf32>
    %45 = vector.multi_reduction <maximumf>, %43, %cst_18 [2] : vector<8x8x8xf32> to vector<8x8xf32>
    %46 = vector.shape_cast %45 : vector<8x8xf32> to vector<8x8x1xf32>
    %47 = vector.broadcast %46 : vector<8x8x1xf32> to vector<8x8x8xf32>
    %48 = arith.subf %43, %47 : vector<8x8x8xf32>
    %49 = math.exp %48 : vector<8x8x8xf32>
    %cst_19 = arith.constant dense<0.000000e+00> : vector<8x8xf32>
    %50 = vector.multi_reduction <add>, %49, %cst_19 [2] : vector<8x8x8xf32> to vector<8x8xf32>
    %51 = vector.shape_cast %50 : vector<8x8xf32> to vector<8x8x1xf32>
    %52 = tpu.reciprocal %51 {approx = true} : vector<8x8x1xf32> -> vector<8x8x1xf32>
    %53 = vector.broadcast %52 : vector<8x8x1xf32> to vector<8x8x8xf32>
    %54 = arith.mulf %49, %53 : vector<8x8x8xf32>
    %55 = arith.truncf %54 : vector<8x8x8xf32> to vector<8x8x8xbf16>
    %56 = arith.truncf %27 : vector<8x8x8xf32> to vector<8x8x8xbf16>
    "tpu.trace_start"() <{level = 10 : i32, message = "nft,ntd->nfd"}> : () -> ()
    %cst_20 = arith.constant dense<0.000000e+00> : vector<8x8x8xf32>
    %57 = tpu.matmul %55, %56, %cst_20 {dimension_numbers = #tpu.dot_dimension_numbers<[2], [1], [1], [2], [0, 0, 0, 1, 1, 2], [0], [0]>} : vector<8x8x8xbf16>, vector<8x8x8xbf16>, vector<8x8x8xf32> -> vector<8x8x8xf32>
    "tpu.trace_stop"() : () -> ()
    %58 = tpu.transpose %54, [1, 0, 2] : vector<8x8x8xf32> -> vector<8x8x8xf32>
    %59 = arith.truncf %58 : vector<8x8x8xf32> to vector<8x8x8xbf16>
    "tpu.trace_start"() <{level = 10 : i32, message = "fnt,ftd->fnd"}> : () -> ()
    %cst_21 = arith.constant dense<0.000000e+00> : vector<8x8x8xf32>
    %60 = tpu.matmul %59, %29, %cst_21 {dimension_numbers = #tpu.dot_dimension_numbers<[2], [1], [1], [2], [0, 0, 0, 1, 1, 2], [0], [0]>} : vector<8x8x8xbf16>, vector<8x8x8xbf16>, vector<8x8x8xf32> -> vector<8x8x8xf32>
    "tpu.trace_stop"() : () -> ()
    %61 = tpu.transpose %60, [1, 0, 2] : vector<8x8x8xf32> -> vector<8x8x8xf32>
    %62 = arith.addf %57, %61 : vector<8x8x8xf32>
    %63 = vector.shape_cast %62 : vector<8x8x8xf32> to vector<4x16x8xf32>
    %64 = tpu.transpose %63, [1, 0, 2] : vector<4x16x8xf32> -> vector<16x4x8xf32>
    %65 = vector.shape_cast %64 : vector<16x4x8xf32> to vector<16x32xf32>
    %66 = arith.truncf %65 : vector<16x32xf32> to vector<16x32xbf16>
    %c0_22 = arith.constant 0 : index
    %c0_23 = arith.constant 0 : index
    %67 = vector.load %arg5[%c0_22, %c0_23] : memref<32x32xbf16, #tpu.memory_space<vmem>>, vector<32x32xbf16>
    %cst_24 = arith.constant dense<0.000000e+00> : vector<16x32xf32>
    %68 = tpu.matmul %66, %67, %cst_24 {dimension_numbers = #tpu.dot_dimension_numbers<[1], [0], [0], [1], [0, 0, 1, 1], [], []>} : vector<16x32xbf16>, vector<32x32xbf16>, vector<16x32xf32> -> vector<16x32xf32>
    %69 = vector.broadcast %4 : vector<1x32xf32> to vector<16x32xf32>
    %70 = arith.addf %68, %69 : vector<16x32xf32>
    %71 = arith.addf %70, %1 : vector<16x32xf32>
    %cst_25 = arith.constant dense<0.000000e+00> : vector<16xf32>
    %72 = vector.multi_reduction <add>, %71, %cst_25 [1] : vector<16x32xf32> to vector<16xf32>
    %73 = vector.shape_cast %72 : vector<16xf32> to vector<16x1xf32>
    %cst_26 = arith.constant 3.200000e+01 : f32
    %74 = vector.broadcast %cst_26 : f32 to vector<16x1xf32>
    %75 = arith.divf %73, %74 : vector<16x1xf32>
    %76 = vector.broadcast %75 : vector<16x1xf32> to vector<16x32xf32>
    %77 = arith.subf %71, %76 : vector<16x32xf32>
    %78 = arith.mulf %77, %77 : vector<16x32xf32>
    %cst_27 = arith.constant dense<0.000000e+00> : vector<16xf32>
    %79 = vector.multi_reduction <add>, %78, %cst_27 [1] : vector<16x32xf32> to vector<16xf32>
    %80 = vector.shape_cast %79 : vector<16xf32> to vector<16x1xf32>
    %cst_28 = arith.constant 3.200000e+01 : f32
    %81 = vector.broadcast %cst_28 : f32 to vector<16x1xf32>
    %82 = arith.divf %80, %81 : vector<16x1xf32>
    %83 = vector.broadcast %75 : vector<16x1xf32> to vector<16x32xf32>
    %84 = arith.subf %71, %83 : vector<16x32xf32>
    %cst_29 = arith.constant 9.99999996E-13 : f32
    %85 = vector.broadcast %cst_29 : f32 to vector<16x1xf32>
    %86 = arith.addf %82, %85 : vector<16x1xf32>
    %87 = math.rsqrt %86 : vector<16x1xf32>
    %88 = vector.broadcast %87 : vector<16x1xf32> to vector<16x32xf32>
    %89 = arith.mulf %84, %88 : vector<16x32xf32>
    %90 = vector.broadcast %5 : vector<1x32xf32> to vector<16x32xf32>
    %91 = arith.mulf %89, %90 : vector<16x32xf32>
    %92 = vector.broadcast %6 : vector<1x32xf32> to vector<16x32xf32>
    %93 = arith.addf %91, %92 : vector<16x32xf32>
    %94 = arith.truncf %93 : vector<16x32xf32> to vector<16x32xbf16>
    %c0_30 = arith.constant 0 : index
    %c0_31 = arith.constant 0 : index
    %95 = vector.load %arg6[%c0_30, %c0_31] : memref<32x64xbf16, #tpu.memory_space<vmem>>, vector<32x64xbf16>
    %cst_32 = arith.constant dense<0.000000e+00> : vector<16x64xf32>
    %96 = tpu.matmul %94, %95, %cst_32 {dimension_numbers = #tpu.dot_dimension_numbers<[1], [0], [0], [1], [0, 0, 1, 1], [], []>} : vector<16x32xbf16>, vector<32x64xbf16>, vector<16x64xf32> -> vector<16x64xf32>
    %c0_33 = arith.constant 0 : index
    %c0_34 = arith.constant 0 : index
    %97 = vector.load %arg9[%c0_33, %c0_34] : memref<1x64xf32, #tpu.memory_space<vmem>>, vector<1x64xf32>
    %98 = vector.broadcast %97 : vector<1x64xf32> to vector<16x64xf32>
    %99 = arith.addf %96, %98 : vector<16x64xf32>
    %cst_35 = arith.constant 5.000000e-01 : f32
    %100 = vector.broadcast %cst_35 : f32 to vector<16x64xf32>
    %101 = arith.mulf %100, %99 : vector<16x64xf32>
    %cst_36 = arith.constant 0.707106769 : f32
    %102 = vector.broadcast %cst_36 : f32 to vector<16x64xf32>
    %103 = arith.mulf %99, %102 : vector<16x64xf32>
    %104 = math.erf %103 : vector<16x64xf32>
    %cst_37 = arith.constant 1.000000e+00 : f32
    %105 = vector.broadcast %cst_37 : f32 to vector<16x64xf32>
    %106 = arith.addf %105, %104 : vector<16x64xf32>
    %107 = arith.mulf %101, %106 : vector<16x64xf32>
    %108 = arith.truncf %107 : vector<16x64xf32> to vector<16x64xbf16>
    %c0_38 = arith.constant 0 : index
    %c0_39 = arith.constant 0 : index
    %109 = vector.load %arg7[%c0_38, %c0_39] : memref<64x32xbf16, #tpu.memory_space<vmem>>, vector<64x32xbf16>
    %cst_40 = arith.constant dense<0.000000e+00> : vector<16x32xf32>
    %110 = tpu.matmul %108, %109, %cst_40 {dimension_numbers = #tpu.dot_dimension_numbers<[1], [0], [0], [1], [0, 0, 1, 1], [], []>} : vector<16x64xbf16>, vector<64x32xbf16>, vector<16x32xf32> -> vector<16x32xf32>
    %111 = vector.broadcast %7 : vector<1x32xf32> to vector<16x32xf32>
    %112 = arith.addf %110, %111 : vector<16x32xf32>
    %113 = arith.addf %112, %93 : vector<16x32xf32>
    %cst_41 = arith.constant dense<0.000000e+00> : vector<16xf32>
    %114 = vector.multi_reduction <add>, %113, %cst_41 [1] : vector<16x32xf32> to vector<16xf32>
    %115 = vector.shape_cast %114 : vector<16xf32> to vector<16x1xf32>
    %cst_42 = arith.constant 3.200000e+01 : f32
    %116 = vector.broadcast %cst_42 : f32 to vector<16x1xf32>
    %117 = arith.divf %115, %116 : vector<16x1xf32>
    %118 = vector.broadcast %117 : vector<16x1xf32> to vector<16x32xf32>
    %119 = arith.subf %113, %118 : vector<16x32xf32>
    %120 = arith.mulf %119, %119 : vector<16x32xf32>
    %cst_43 = arith.constant dense<0.000000e+00> : vector<16xf32>
    %121 = vector.multi_reduction <add>, %120, %cst_43 [1] : vector<16x32xf32> to vector<16xf32>
    %122 = vector.shape_cast %121 : vector<16xf32> to vector<16x1xf32>
    %cst_44 = arith.constant 3.200000e+01 : f32
    %123 = vector.broadcast %cst_44 : f32 to vector<16x1xf32>
    %124 = arith.divf %122, %123 : vector<16x1xf32>
    %125 = vector.broadcast %117 : vector<16x1xf32> to vector<16x32xf32>
    %126 = arith.subf %113, %125 : vector<16x32xf32>
    %cst_45 = arith.constant 9.99999996E-13 : f32
    %127 = vector.broadcast %cst_45 : f32 to vector<16x1xf32>
    %128 = arith.addf %124, %127 : vector<16x1xf32>
    %129 = math.rsqrt %128 : vector<16x1xf32>
    %130 = vector.broadcast %129 : vector<16x1xf32> to vector<16x32xf32>
    %131 = arith.mulf %126, %130 : vector<16x32xf32>
    %132 = vector.broadcast %8 : vector<1x32xf32> to vector<16x32xf32>
    %133 = arith.mulf %131, %132 : vector<16x32xf32>
    %134 = vector.broadcast %9 : vector<1x32xf32> to vector<16x32xf32>
    %135 = arith.addf %133, %134 : vector<16x32xf32>
    %136 = vector.shape_cast %135 : vector<16x32xf32> to vector<2x8x32xf32>
    %c0_46 = arith.constant 0 : index
    %c0_47 = arith.constant 0 : index
    %c0_48 = arith.constant 0 : index
    %137 = vector.load %arg10[%c0_46, %c0_47, %c0_48] : memref<2x8x32xf32, #tpu.memory_space<vmem>>, vector<2x8x32xf32>
    tpu.vector_store %arg10[%c0_46, %c0_47, %c0_48], %136 {strides = array<i32>} : memref<2x8x32xf32, #tpu.memory_space<vmem>>, vector<2x8x32xf32>,
    return
  }
}

</mosaic_0001>

<llo_original>
// kernel: tpu_custom_call.1
$region0: #{tpu_custom_call.1}
  #allocation0 [shape = 'u32[]', space=smem, size = 0x4, offset = 0x4, fixed_abs, tag = 'smem constant byte address 0x4 - core index']
  #allocation1 [shape = 'u32[144,128]{1,0:T(1,128)}', space=vmem, size = 0x12000, scoped, tag = 'internal scratch']
  %s0 = inlined_call_operand.vmem [shape: f32[2,8,32], index: 0, kind: input, shape index: {}]
  %s1 = inlined_call_operand.vmem [shape: f32[2,8], index: 1, kind: input, shape index: {}]
  %s2 = inlined_call_operand.hbm [shape: bf16[32,96], index: 2, kind: input, shape index: {}]
  %s3 = inlined_call_operand.hbm [shape: f32[1,96], index: 3, kind: input, shape index: {}]
  %s4 = inlined_call_operand.vmem [shape: bf16[8,8,8], index: 4, kind: input, shape index: {}]
  %s5 = inlined_call_operand.hbm [shape: bf16[32,32], index: 5, kind: input, shape index: {}]
  %s6 = inlined_call_operand.hbm [shape: bf16[32,64], index: 6, kind: input, shape index: {}]
  %s7 = inlined_call_operand.vmem [shape: bf16[64,32], index: 7, kind: input, shape index: {}]
  %s8 = inlined_call_operand.vmem [shape: f32[6,32], index: 8, kind: input, shape index: {}]
  %s9 = inlined_call_operand.vmem [shape: f32[1,64], index: 9, kind: input, shape index: {}]
  %s10 = inlined_call_operand.hbm [shape: f32[2,8,32], index: 10, kind: output, shape index: {0}]
  %s11 = inlined_call_operand.hbm [shape: f32[8,8,8], index: 11, kind: output, shape index: {1}]
  %12 = xla_tuple %s10, %s11
  %s13 = sld [smem:[#allocation0]]
  $region74: #{tpu_custom_call.1} parent=0
    _
  %s15 = ssub.s32 1, %s13
  %s16 = scalar_select 0, %s15, %s13
  $region1: #{tpu_custom_call.1} parent=0
    #allocation2 [shape = 'u8[8192]{0}', space=vmem, size = 0x2000, scoped, tag = 'input window, operand 2, single buffered']
    #allocation3 [shape = 's32[1]{0}', space=sflag, size = 0x4, scoped, tag = 'scoped memory for tpu_custom_call.1']
    #allocation4 [shape = 's32[1]{0}', space=sflag, size = 0x4, scoped, tag = 'scoped memory for tpu_custom_call.1']
    #allocation5 [shape = 'u8[512]{0}', space=vmem, size = 0x400, scoped, tag = 'input window, operand 3, single buffered']
    #allocation6 [shape = 's32[1]{0}', space=sflag, size = 0x4, scoped, tag = 'scoped memory for tpu_custom_call.1']
    #allocation7 [shape = 'u8[8192]{0}', space=vmem, size = 0x2000, scoped, tag = 'input window, operand 5, single buffered']
    #allocation8 [shape = 'u8[8192]{0}', space=vmem, size = 0x2000, scoped, tag = 'input window, operand 6, single buffered']
    #allocation9 [shape = 's32[1]{0}', space=sflag, size = 0x4, scoped, tag = 'scoped memory for tpu_custom_call.1']
    #allocation10 [shape = 'u8[8192]{0}', space=vmem, size = 0x2000, scoped, tag = 'output window, operand 0, single buffered']
    #allocation11 [shape = 'u8[32768]{0}', space=vmem, size = 0x8000, scoped, tag = 'output window, operand 1, single buffered']
    #allocation12 [shape = 's32[1]{0}', space=sflag, size = 0x4, scoped, tag = 'scoped memory for tpu_custom_call.1']
    %17 = vsyncpa [#allocation3], 0
    %18 = vsyncpa [#allocation6], 0
    %19 = vsyncpa [#allocation9], 0
    %20 = vsyncpa [#allocation4], 0
    %21 = vsyncpa [#allocation12], 0
    // Predicated region
    $region2: #{tpu_custom_call.1} parent=1 // pred_check
      _
    $region3: #{tpu_custom_call.1} parent=1 // pred_check_branch
      %23 = sbr.rel (0) target = $region5
    $region4: #{tpu_custom_call.1} parent=1 // pred_region
      _
    $region5: #{tpu_custom_call.1} parent=1 // pred_fallthru
      _
    // Predicated region
    $region6: #{tpu_custom_call.1} parent=1 // pred_check
      _
    $region7: #{tpu_custom_call.1} parent=1 // pred_check_branch
      %25 = sbr.rel (0) target = $region9
    $region8: #{tpu_custom_call.1} parent=1 // pred_region
      _
    $region9: #{tpu_custom_call.1} parent=1 // pred_fallthru
      _
    // Predicated region
    $region10: #{tpu_custom_call.1} parent=1 // pred_check
      _
    $region11: #{tpu_custom_call.1} parent=1 // pred_check_branch
      %27 = sbr.rel (0) target = $region13
    $region12: #{tpu_custom_call.1} parent=1 // pred_region
      %s29 = ssub.s32 256, 256
      %30 = vsyncadd [#allocation3], %s29
      %s31 = sshll.u32 [#allocation2], 4
      %s32 = int_to_ptr.vmem [resolvable:$true] %s31
      %37 = dma.hbm_to_vmem [thread:$0]  %s2, 256, %s32, [#allocation3], 64, 64, 4
    $region13: #{tpu_custom_call.1} parent=1 // pred_fallthru
      _
    // Predicated region
    $region14: #{tpu_custom_call.1} parent=1 // pred_check
      _
    $region15: #{tpu_custom_call.1} parent=1 // pred_check_branch
      %39 = sbr.rel (0) target = $region17
    $region16: #{tpu_custom_call.1} parent=1 // pred_region
      %s41 = ssub.s32 16, 16
      %42 = vsyncadd [#allocation6], %s41
      %s44 = sshll.u32 [#allocation5], 4
      %s45 = int_to_ptr.vmem [resolvable:$true] %s44
      %47 = dma.hbm_to_vmem [thread:$0]  %s3, 16, %s45, [#allocation6]
    $region17: #{tpu_custom_call.1} parent=1 // pred_fallthru
      _
    // Predicated region
    $region18: #{tpu_custom_call.1} parent=1 // pred_check
      _
    $region19: #{tpu_custom_call.1} parent=1 // pred_check_branch
      %49 = sbr.rel (0) target = $region21
    $region20: #{tpu_custom_call.1} parent=1 // pred_region
      _
    $region21: #{tpu_custom_call.1} parent=1 // pred_fallthru
      _
    // Predicated region
    $region22: #{tpu_custom_call.1} parent=1 // pred_check
      _
    $region23: #{tpu_custom_call.1} parent=1 // pred_check_branch
      %51 = sbr.rel (0) target = $region25
    $region24: #{tpu_custom_call.1} parent=1 // pred_region
      %s53 = ssub.s32 256, 256
      %54 = vsyncadd [#allocation6], %s53
      %s55 = sshll.u32 [#allocation7], 4
      %s56 = int_to_ptr.vmem [resolvable:$true] %s55
      %61 = dma.hbm_to_vmem [thread:$0]  %s5, 256, %s56, [#allocation6], 64, 64, 4
    $region25: #{tpu_custom_call.1} parent=1 // pred_fallthru
      _
    // Predicated region
    $region26: #{tpu_custom_call.1} parent=1 // pred_check
      _
    $region27: #{tpu_custom_call.1} parent=1 // pred_check_branch
      %63 = sbr.rel (0) target = $region29
    $region28: #{tpu_custom_call.1} parent=1 // pred_region
      %s65 = ssub.s32 256, 256
      %66 = vsyncadd [#allocation9], %s65
      %s67 = sshll.u32 [#allocation8], 4
      %s68 = int_to_ptr.vmem [resolvable:$true] %s67
      %73 = dma.hbm_to_vmem [thread:$0]  %s6, 256, %s68, [#allocation9], 64, 64, 4
    $region29: #{tpu_custom_call.1} parent=1 // pred_fallthru
      _
    // Predicated region
    $region30: #{tpu_custom_call.1} parent=1 // pred_check
      _
    $region31: #{tpu_custom_call.1} parent=1 // pred_check_branch
      %75 = sbr.rel (0) target = $region33
    $region32: #{tpu_custom_call.1} parent=1 // pred_region
      _
    $region33: #{tpu_custom_call.1} parent=1 // pred_fallthru
      _
    // Predicated region
    $region34: #{tpu_custom_call.1} parent=1 // pred_check
      _
    $region35: #{tpu_custom_call.1} parent=1 // pred_check_branch
      %77 = sbr.rel (0) target = $region37
    $region36: #{tpu_custom_call.1} parent=1 // pred_region
      _
    $region37: #{tpu_custom_call.1} parent=1 // pred_fallthru
      _
    // Predicated region
    $region38: #{tpu_custom_call.1} parent=1 // pred_check
      _
    $region39: #{tpu_custom_call.1} parent=1 // pred_check_branch
      %79 = sbr.rel (0) target = $region41
    $region40: #{tpu_custom_call.1} parent=1 // pred_region
      _
    $region41: #{tpu_custom_call.1} parent=1 // pred_fallthru
      _
    // Predicated region
    $region42: #{tpu_custom_call.1} parent=1 // pred_check
      _
    $region43: #{tpu_custom_call.1} parent=1 // pred_check_branch
      %81 = sbr.rel (0) target = $region45
    $region44: #{tpu_custom_call.1} parent=1 // pred_region
      %82 = dma.done [#allocation3], 256
    $region45: #{tpu_custom_call.1} parent=1 // pred_fallthru
      _
    // Predicated region
    $region46: #{tpu_custom_call.1} parent=1 // pred_check
      _
    $region47: #{tpu_custom_call.1} parent=1 // pred_check_branch
      %84 = sbr.rel (0) target = $region49
    $region48: #{tpu_custom_call.1} parent=1 // pred_region
      %85 = dma.done [#allocation6], 16
    $region49: #{tpu_custom_call.1} parent=1 // pred_fallthru
      _
    // Predicated region
    $region50: #{tpu_custom_call.1} parent=1 // pred_check
      _
    $region51: #{tpu_custom_call.1} parent=1 // pred_check_branch
      %87 = sbr.rel (0) target = $region53
    $region52: #{tpu_custom_call.1} parent=1 // pred_region
      %88 = dma.done [#allocation6], 256
    $region53: #{tpu_custom_call.1} parent=1 // pred_fallthru
      _
    // Predicated region
    $region54: #{tpu_custom_call.1} parent=1 // pred_check
      _
    $region55: #{tpu_custom_call.1} parent=1 // pred_check_branch
      %90 = sbr.rel (0) target = $region57
    $region56: #{tpu_custom_call.1} parent=1 // pred_region
      %91 = dma.done [#allocation9], 256
    $region57: #{tpu_custom_call.1} parent=1 // pred_fallthru
      _
    %v93 = vld [vmem:[%s0] sm:$0xff]
    %v94 = vld [vmem:[%s0 + $0x8] sm:$0xff]
    %v95 = vld [vmem:[%s1] sm:$0x3]
    %v96 = vld [vmem:[%s8] sm:$0x3f]
    %v97 = vpack.c.bf16 %v94, %v93
    %v98 = vld [vmem:[#allocation2] sm:$0xf]
    %v99 = vld [vmem:[#allocation2 + $0x4] sm:$0xf]
    %v100 = vld [vmem:[#allocation2 + $0x8] sm:$0xf]
    %v101 = vld [vmem:[#allocation2 + $0xc] sm:$0xf]
    %v102 = vld [vmem:[#allocation5] sm:$0x1]
    %v104 = vlaneseq
    %v105 = vshrl.u32 %v104, 7
    %v106 = vsub.s32 0, %v105
    %v107 = vrot.slane %v102, %v106
    %v113 = vunpack.c.l.b16 %v98
    %v114 = vunpack.c.l.b16 %v99
    %v115 = vunpack.c.l.b16 %v100
    %v116 = vunpack.c.l.b16 %v101
    %v117 = vpack.c.b16 %v114, %v113
    %v118 = vpack.c.b16 %v116, %v115
    %vm121 = vcmask 261120
    %v123 = vsel %vm121, %v97, 0
    %125 = vmatprep.subr.bf16.mxu0 0
    %126 = vmatpush1.bf16.msra.mxu0 %v117
    %127 = vmatprep.subr.bf16.mxu0 0
    %128 = vmatpush1.bf16.msra.mxu0 %v118
    %129 = vmatprep.subr.bf16.mxu0 0
    %130 = vmatpush1.bf16.msra.mxu0 0
    %131 = vmatprep.subr.bf16.mxu0 0
    %132 = vmatpush1.bf16.msra.mxu0 0
    %133 = vmatprep.subr.bf16.mxu0 0
    %134 = vmatpush1.bf16.msra.mxu0 0
    %135 = vmatprep.subr.bf16.mxu0 0
    %136 = vmatpush1.bf16.msra.mxu0 0
    %137 = vmatprep.subr.bf16.mxu0 0
    %138 = vmatpush1.bf16.msra.mxu0 0
    %139 = vmatprep.subr.bf16.mxu0 0
    %140 = vmatpush1.bf16.msra.mxu0 0
    %141 = vmatprep.subr.bf16.mxu0 0
    %142 = vmatpush1.bf16.msra.mxu0 0
    %143 = vmatprep.subr.bf16.mxu0 0
    %144 = vmatpush1.bf16.msra.mxu0 0
    %145 = vmatprep.subr.bf16.mxu0 0
    %146 = vmatpush1.bf16.msra.mxu0 0
    %147 = vmatprep.subr.bf16.mxu0 0
    %148 = vmatpush1.bf16.msra.mxu0 0
    %149 = vmatprep.subr.bf16.mxu0 0
    %150 = vmatpush1.bf16.msra.mxu0 0
    %151 = vmatprep.subr.bf16.mxu0 0
    %152 = vmatpush1.bf16.msra.mxu0 0
    %153 = vmatprep.subr.bf16.mxu0 0
    %154 = vmatpush1.bf16.msra.mxu0 0
    %155 = vmatprep.subr.bf16.mxu0 0
    %156 = vmatpush1.bf16.msra.mxu0 0
    %157 = vmatprep.mubr.bf16.mxu0 0
    %158 = vmatmul.mubr.bf16.gmra.mrb[0].mxu0 %v123
    %v159 = vpop.f32.mrb[0].mxu0
    %v160 = vadd.f32 %v107, %v159
    %v161 = vpop.f32.mrb[0].mxu0
    %v162 = vpop.f32.mrb[0].mxu0
    %v163 = vadd.f32 %v107, %v162
    %v164 = vpop.f32.mrb[0].mxu0
    %165 = vdwg.mxu0
    %168 = vrot.lane.b32.xlu0 %v160, 120
    %v169 = vpop.permute.xlu0 %168
    %170 = vrot.lane.b32.xlu0 %v163, 120
    %v171 = vpop.permute.xlu0 %170
    %174 = vrot.lane.b32.xlu0 %v160, 112
    %v175 = vpop.permute.xlu0 %174
    %176 = vrot.lane.b32.xlu0 %v163, 112
    %v177 = vpop.permute.xlu0 %176
    %180 = vrot.lane.b32.xlu0 %v160, 104
    %v181 = vpop.permute.xlu0 %180
    %182 = vrot.lane.b32.xlu0 %v163, 104
    %v183 = vpop.permute.xlu0 %182
    %v186 = vcombine.low %v160, %v175
    %v187 = vcombine.high %v160, %v175
    %v189 = vunpack.c.l.s4 1983009808
    %v190 = vunpack.c.0.s8 %v189
    %v191 = vlaneseq
    %v192 = vshrl.u32 %v191, 7
    %v193 = vsub.s32 %v190, %v192
    %v194 = vrot.slane %v186, %v193
    %v196 = vunpack.c.l.s4 1983009808
    %v197 = vunpack.c.0.s8 %v196
    %v198 = vlaneseq
    %v199 = vshrl.u32 %v198, 7
    %v200 = vsub.s32 %v197, %v199
    %v201 = vrot.slane %v187, %v200
    %v202 = vcombine.low %v169, %v181
    %v203 = vcombine.high %v169, %v181
    %v205 = vunpack.c.l.s4 1983009808
    %v206 = vunpack.c.0.s8 %v205
    %v207 = vlaneseq
    %v208 = vshrl.u32 %v207, 7
    %v209 = vsub.s32 %v206, %v208
    %v210 = vrot.slane %v202, %v209
    %v212 = vunpack.c.l.s4 1983009808
    %v213 = vunpack.c.0.s8 %v212
    %v214 = vlaneseq
    %v215 = vshrl.u32 %v214, 7
    %v216 = vsub.s32 %v213, %v215
    %v217 = vrot.slane %v203, %v216
    %v218 = vcombine.low %v194, %v210
    %v219 = vcombine.high %v194, %v210
    %v221 = vunpack.c.l.s4 1934713408
    %v222 = vunpack.c.0.s8 %v221
    %v223 = vlaneseq
    %v224 = vshrl.u32 %v223, 7
    %v225 = vsub.s32 %v222, %v224
    %v226 = vrot.slane %v218, %v225
    %v228 = vunpack.c.l.s4 1934713408
    %v229 = vunpack.c.0.s8 %v228
    %v230 = vlaneseq
    %v231 = vshrl.u32 %v230, 7
    %v232 = vsub.s32 %v229, %v231
    %v233 = vrot.slane %v219, %v232
    %v234 = vcombine.low %v201, %v217
    %v235 = vcombine.high %v201, %v217
    %v237 = vunpack.c.l.s4 1934713408
    %v238 = vunpack.c.0.s8 %v237
    %v239 = vlaneseq
    %v240 = vshrl.u32 %v239, 7
    %v241 = vsub.s32 %v238, %v240
    %v242 = vrot.slane %v234, %v241
    %v244 = vunpack.c.l.s4 1934713408
    %v245 = vunpack.c.0.s8 %v244
    %v246 = vlaneseq
    %v247 = vshrl.u32 %v246, 7
    %v248 = vsub.s32 %v245, %v247
    %v249 = vrot.slane %v235, %v248
    %v250 = vcombine.high %v226, 0.0
    %v251 = vcombine.high %v233, 0.0
    %v252 = vcombine.high %v242, 0.0
    %v253 = vcombine.high %v249, 0.0
    %v254 = vcombine.low %v163, %v177
    %v255 = vcombine.high %v163, %v177
    %v257 = vunpack.c.l.s4 1983009808
    %v258 = vunpack.c.0.s8 %v257
    %v259 = vlaneseq
    %v260 = vshrl.u32 %v259, 7
    %v261 = vsub.s32 %v258, %v260
    %v262 = vrot.slane %v254, %v261
    %v264 = vunpack.c.l.s4 1983009808
    %v265 = vunpack.c.0.s8 %v264
    %v266 = vlaneseq
    %v267 = vshrl.u32 %v266, 7
    %v268 = vsub.s32 %v265, %v267
    %v269 = vrot.slane %v255, %v268
    %v270 = vcombine.low %v171, %v183
    %v271 = vcombine.high %v171, %v183
    %v273 = vunpack.c.l.s4 1983009808
    %v274 = vunpack.c.0.s8 %v273
    %v275 = vlaneseq
    %v276 = vshrl.u32 %v275, 7
    %v277 = vsub.s32 %v274, %v276
    %v278 = vrot.slane %v270, %v277
    %v280 = vunpack.c.l.s4 1983009808
    %v281 = vunpack.c.0.s8 %v280
    %v282 = vlaneseq
    %v283 = vshrl.u32 %v282, 7
    %v284 = vsub.s32 %v281, %v283
    %v285 = vrot.slane %v271, %v284
    %v286 = vcombine.low %v262, %v278
    %v287 = vcombine.high %v262, %v278
    %v289 = vunpack.c.l.s4 1934713408
    %v290 = vunpack.c.0.s8 %v289
    %v291 = vlaneseq
    %v292 = vshrl.u32 %v291, 7
    %v293 = vsub.s32 %v290, %v292
    %v294 = vrot.slane %v286, %v293
    %v296 = vunpack.c.l.s4 1934713408
    %v297 = vunpack.c.0.s8 %v296
    %v298 = vlaneseq
    %v299 = vshrl.u32 %v298, 7
    %v300 = vsub.s32 %v297, %v299
    %v301 = vrot.slane %v287, %v300
    %v302 = vcombine.low %v269, %v285
    %v303 = vcombine.high %v269, %v285
    %v305 = vunpack.c.l.s4 1934713408
    %v306 = vunpack.c.0.s8 %v305
    %v307 = vlaneseq
    %v308 = vshrl.u32 %v307, 7
    %v309 = vsub.s32 %v306, %v308
    %v310 = vrot.slane %v302, %v309
    %v312 = vunpack.c.l.s4 1934713408
    %v313 = vunpack.c.0.s8 %v312
    %v314 = vlaneseq
    %v315 = vshrl.u32 %v314, 7
    %v316 = vsub.s32 %v313, %v315
    %v317 = vrot.slane %v303, %v316
    %v318 = vcombine.high %v294, 0.0
    %v319 = vcombine.high %v301, 0.0
    %v320 = vcombine.high %v310, 0.0
    %v321 = vcombine.high %v317, 0.0
    %v322 = vcombine.low %v226, %v233
    %v324 = vunpack.c.l.s4 1983009808
    %v325 = vunpack.c.0.s8 %v324
    %v326 = vlaneseq
    %v327 = vshrl.u32 %v326, 7
    %v328 = vsub.s32 %v325, %v327
    %v329 = vrot.slane %v322, %v328
    %v330 = vcombine.low %v250, %v251
    %v332 = vunpack.c.l.s4 1983009808
    %v333 = vunpack.c.0.s8 %v332
    %v334 = vlaneseq
    %v335 = vshrl.u32 %v334, 7
    %v336 = vsub.s32 %v333, %v335
    %v337 = vrot.slane %v330, %v336
    %v338 = vcombine.low %v242, %v249
    %v340 = vunpack.c.l.s4 1983009808
    %v341 = vunpack.c.0.s8 %v340
    %v342 = vlaneseq
    %v343 = vshrl.u32 %v342, 7
    %v344 = vsub.s32 %v341, %v343
    %v345 = vrot.slane %v338, %v344
    %v346 = vcombine.low %v252, %v253
    %v348 = vunpack.c.l.s4 1983009808
    %v349 = vunpack.c.0.s8 %v348
    %v350 = vlaneseq
    %v351 = vshrl.u32 %v350, 7
    %v352 = vsub.s32 %v349, %v351
    %v353 = vrot.slane %v346, %v352
    %v354 = vcombine.low %v329, %v337
    %v355 = vcombine.high %v329, %v337
    %v357 = vunpack.c.l.s4 1934713408
    %v358 = vunpack.c.0.s8 %v357
    %v359 = vlaneseq
    %v360 = vshrl.u32 %v359, 7
    %v361 = vsub.s32 %v358, %v360
    %v362 = vrot.slane %v354, %v361
    %v364 = vunpack.c.l.s4 1934713408
    %v365 = vunpack.c.0.s8 %v364
    %v366 = vlaneseq
    %v367 = vshrl.u32 %v366, 7
    %v368 = vsub.s32 %v365, %v367
    %v369 = vrot.slane %v355, %v368
    %v370 = vcombine.low %v345, %v353
    %v371 = vcombine.high %v345, %v353
    %v373 = vunpack.c.l.s4 1934713408
    %v374 = vunpack.c.0.s8 %v373
    %v375 = vlaneseq
    %v376 = vshrl.u32 %v375, 7
    %v377 = vsub.s32 %v374, %v376
    %v378 = vrot.slane %v370, %v377
    %v380 = vunpack.c.l.s4 1934713408
    %v381 = vunpack.c.0.s8 %v380
    %v382 = vlaneseq
    %v383 = vshrl.u32 %v382, 7
    %v384 = vsub.s32 %v381, %v383
    %v385 = vrot.slane %v371, %v384
    %v386 = vcombine.low %v362, %v378
    %v387 = vcombine.high %v362, %v378
    %v388 = vcombine.low %v369, %v385
    %v389 = vcombine.high %v369, %v385
    %v390 = vcombine.low %v294, %v301
    %v392 = vunpack.c.l.s4 1983009808
    %v393 = vunpack.c.0.s8 %v392
    %v394 = vlaneseq
    %v395 = vshrl.u32 %v394, 7
    %v396 = vsub.s32 %v393, %v395
    %v397 = vrot.slane %v390, %v396
    %v398 = vcombine.low %v318, %v319
    %v400 = vunpack.c.l.s4 1983009808
    %v401 = vunpack.c.0.s8 %v400
    %v402 = vlaneseq
    %v403 = vshrl.u32 %v402, 7
    %v404 = vsub.s32 %v401, %v403
    %v405 = vrot.slane %v398, %v404
    %v406 = vcombine.low %v310, %v317
    %v408 = vunpack.c.l.s4 1983009808
    %v409 = vunpack.c.0.s8 %v408
    %v410 = vlaneseq
    %v411 = vshrl.u32 %v410, 7
    %v412 = vsub.s32 %v409, %v411
    %v413 = vrot.slane %v406, %v412
    %v414 = vcombine.low %v320, %v321
    %v416 = vunpack.c.l.s4 1983009808
    %v417 = vunpack.c.0.s8 %v416
    %v418 = vlaneseq
    %v419 = vshrl.u32 %v418, 7
    %v420 = vsub.s32 %v417, %v419
    %v421 = vrot.slane %v414, %v420
    %v422 = vcombine.low %v397, %v405
    %v423 = vcombine.high %v397, %v405
    %v425 = vunpack.c.l.s4 1934713408
    %v426 = vunpack.c.0.s8 %v425
    %v427 = vlaneseq
    %v428 = vshrl.u32 %v427, 7
    %v429 = vsub.s32 %v426, %v428
    %v430 = vrot.slane %v422, %v429
    %v432 = vunpack.c.l.s4 1934713408
    %v433 = vunpack.c.0.s8 %v432
    %v434 = vlaneseq
    %v435 = vshrl.u32 %v434, 7
    %v436 = vsub.s32 %v433, %v435
    %v437 = vrot.slane %v423, %v436
    %v438 = vcombine.low %v413, %v421
    %v439 = vcombine.high %v413, %v421
    %v441 = vunpack.c.l.s4 1934713408
    %v442 = vunpack.c.0.s8 %v441
    %v443 = vlaneseq
    %v444 = vshrl.u32 %v443, 7
    %v445 = vsub.s32 %v442, %v444
    %v446 = vrot.slane %v438, %v445
    %v448 = vunpack.c.l.s4 1934713408
    %v449 = vunpack.c.0.s8 %v448
    %v450 = vlaneseq
    %v451 = vshrl.u32 %v450, 7
    %v452 = vsub.s32 %v449, %v451
    %v453 = vrot.slane %v439, %v452
    %v454 = vcombine.low %v430, %v446
    %v455 = vcombine.high %v430, %v446
    %v456 = vcombine.low %v437, %v453
    %v457 = vcombine.high %v437, %v453
    %458 = vrot.lane.b32.xlu0 %v160, 96
    %v459 = vpop.permute.xlu0 %458
    %460 = vrot.lane.b32.xlu0 %v163, 96
    %v461 = vpop.permute.xlu0 %460
    %462 = vrot.lane.b32.xlu0 %v169, 96
    %v463 = vpop.permute.xlu0 %462
    %464 = vrot.lane.b32.xlu0 %v171, 96
    %v465 = vpop.permute.xlu0 %464
    %466 = vrot.lane.b32.xlu0 %v175, 96
    %v467 = vpop.permute.xlu0 %466
    %468 = vrot.lane.b32.xlu0 %v177, 96
    %v469 = vpop.permute.xlu0 %468
    %470 = vrot.lane.b32.xlu0 %v181, 96
    %v471 = vpop.permute.xlu0 %470
    %472 = vrot.lane.b32.xlu0 %v183, 96
    %v473 = vpop.permute.xlu0 %472
    %v482 = vcombine.low %v459, %v467
    %v483 = vcombine.high %v459, %v467
    %v485 = vunpack.c.l.s4 1983009808
    %v486 = vunpack.c.0.s8 %v485
    %v487 = vlaneseq
    %v488 = vshrl.u32 %v487, 7
    %v489 = vsub.s32 %v486, %v488
    %v490 = vrot.slane %v482, %v489
    %v492 = vunpack.c.l.s4 1983009808
    %v493 = vunpack.c.0.s8 %v492
    %v494 = vlaneseq
    %v495 = vshrl.u32 %v494, 7
    %v496 = vsub.s32 %v493, %v495
    %v497 = vrot.slane %v483, %v496
    %v498 = vcombine.low %v463, %v471
    %v499 = vcombine.high %v463, %v471
    %v501 = vunpack.c.l.s4 1983009808
    %v502 = vunpack.c.0.s8 %v501
    %v503 = vlaneseq
    %v504 = vshrl.u32 %v503, 7
    %v505 = vsub.s32 %v502, %v504
    %v506 = vrot.slane %v498, %v505
    %v508 = vunpack.c.l.s4 1983009808
    %v509 = vunpack.c.0.s8 %v508
    %v510 = vlaneseq
    %v511 = vshrl.u32 %v510, 7
    %v512 = vsub.s32 %v509, %v511
    %v513 = vrot.slane %v499, %v512
    %v514 = vcombine.low %v490, %v506
    %v515 = vcombine.high %v490, %v506
    %v517 = vunpack.c.l.s4 1934713408
    %v518 = vunpack.c.0.s8 %v517
    %v519 = vlaneseq
    %v520 = vshrl.u32 %v519, 7
    %v521 = vsub.s32 %v518, %v520
    %v522 = vrot.slane %v514, %v521
    %v524 = vunpack.c.l.s4 1934713408
    %v525 = vunpack.c.0.s8 %v524
    %v526 = vlaneseq
    %v527 = vshrl.u32 %v526, 7
    %v528 = vsub.s32 %v525, %v527
    %v529 = vrot.slane %v515, %v528
    %v530 = vcombine.low %v497, %v513
    %v531 = vcombine.high %v497, %v513
    %v533 = vunpack.c.l.s4 1934713408
    %v534 = vunpack.c.0.s8 %v533
    %v535 = vlaneseq
    %v536 = vshrl.u32 %v535, 7
    %v537 = vsub.s32 %v534, %v536
    %v538 = vrot.slane %v530, %v537
    %v540 = vunpack.c.l.s4 1934713408
    %v541 = vunpack.c.0.s8 %v540
    %v542 = vlaneseq
    %v543 = vshrl.u32 %v542, 7
    %v544 = vsub.s32 %v541, %v543
    %v545 = vrot.slane %v531, %v544
    %v546 = vcombine.high %v522, 0.0
    %v547 = vcombine.high %v529, 0.0
    %v548 = vcombine.high %v538, 0.0
    %v549 = vcombine.high %v545, 0.0
    %v550 = vcombine.low %v461, %v469
    %v551 = vcombine.high %v461, %v469
    %v553 = vunpack.c.l.s4 1983009808
    %v554 = vunpack.c.0.s8 %v553
    %v555 = vlaneseq
    %v556 = vshrl.u32 %v555, 7
    %v557 = vsub.s32 %v554, %v556
    %v558 = vrot.slane %v550, %v557
    %v560 = vunpack.c.l.s4 1983009808
    %v561 = vunpack.c.0.s8 %v560
    %v562 = vlaneseq
    %v563 = vshrl.u32 %v562, 7
    %v564 = vsub.s32 %v561, %v563
    %v565 = vrot.slane %v551, %v564
    %v566 = vcombine.low %v465, %v473
    %v567 = vcombine.high %v465, %v473
    %v569 = vunpack.c.l.s4 1983009808
    %v570 = vunpack.c.0.s8 %v569
    %v571 = vlaneseq
    %v572 = vshrl.u32 %v571, 7
    %v573 = vsub.s32 %v570, %v572
    %v574 = vrot.slane %v566, %v573
    %v576 = vunpack.c.l.s4 1983009808
    %v577 = vunpack.c.0.s8 %v576
    %v578 = vlaneseq
    %v579 = vshrl.u32 %v578, 7
    %v580 = vsub.s32 %v577, %v579
    %v581 = vrot.slane %v567, %v580
    %v582 = vcombine.low %v558, %v574
    %v583 = vcombine.high %v558, %v574
    %v585 = vunpack.c.l.s4 1934713408
    %v586 = vunpack.c.0.s8 %v585
    %v587 = vlaneseq
    %v588 = vshrl.u32 %v587, 7
    %v589 = vsub.s32 %v586, %v588
    %v590 = vrot.slane %v582, %v589
    %v592 = vunpack.c.l.s4 1934713408
    %v593 = vunpack.c.0.s8 %v592
    %v594 = vlaneseq
    %v595 = vshrl.u32 %v594, 7
    %v596 = vsub.s32 %v593, %v595
    %v597 = vrot.slane %v583, %v596
    %v598 = vcombine.low %v565, %v581
    %v599 = vcombine.high %v565, %v581
    %v601 = vunpack.c.l.s4 1934713408
    %v602 = vunpack.c.0.s8 %v601
    %v603 = vlaneseq
    %v604 = vshrl.u32 %v603, 7
    %v605 = vsub.s32 %v602, %v604
    %v606 = vrot.slane %v598, %v605
    %v608 = vunpack.c.l.s4 1934713408
    %v609 = vunpack.c.0.s8 %v608
    %v610 = vlaneseq
    %v611 = vshrl.u32 %v610, 7
    %v612 = vsub.s32 %v609, %v611
    %v613 = vrot.slane %v599, %v612
    %v614 = vcombine.high %v590, 0.0
    %v615 = vcombine.high %v597, 0.0
    %v616 = vcombine.high %v606, 0.0
    %v617 = vcombine.high %v613, 0.0
    %v618 = vcombine.low %v522, %v529
    %v620 = vunpack.c.l.s4 1983009808
    %v621 = vunpack.c.0.s8 %v620
    %v622 = vlaneseq
    %v623 = vshrl.u32 %v622, 7
    %v624 = vsub.s32 %v621, %v623
    %v625 = vrot.slane %v618, %v624
    %v626 = vcombine.low %v546, %v547
    %v628 = vunpack.c.l.s4 1983009808
    %v629 = vunpack.c.0.s8 %v628
    %v630 = vlaneseq
    %v631 = vshrl.u32 %v630, 7
    %v632 = vsub.s32 %v629, %v631
    %v633 = vrot.slane %v626, %v632
    %v634 = vcombine.low %v538, %v545
    %v636 = vunpack.c.l.s4 1983009808
    %v637 = vunpack.c.0.s8 %v636
    %v638 = vlaneseq
    %v639 = vshrl.u32 %v638, 7
    %v640 = vsub.s32 %v637, %v639
    %v641 = vrot.slane %v634, %v640
    %v642 = vcombine.low %v548, %v549
    %v644 = vunpack.c.l.s4 1983009808
    %v645 = vunpack.c.0.s8 %v644
    %v646 = vlaneseq
    %v647 = vshrl.u32 %v646, 7
    %v648 = vsub.s32 %v645, %v647
    %v649 = vrot.slane %v642, %v648
    %v650 = vcombine.low %v625, %v633
    %v651 = vcombine.high %v625, %v633
    %v653 = vunpack.c.l.s4 1934713408
    %v654 = vunpack.c.0.s8 %v653
    %v655 = vlaneseq
    %v656 = vshrl.u32 %v655, 7
    %v657 = vsub.s32 %v654, %v656
    %v658 = vrot.slane %v650, %v657
    %v660 = vunpack.c.l.s4 1934713408
    %v661 = vunpack.c.0.s8 %v660
    %v662 = vlaneseq
    %v663 = vshrl.u32 %v662, 7
    %v664 = vsub.s32 %v661, %v663
    %v665 = vrot.slane %v651, %v664
    %v666 = vcombine.low %v641, %v649
    %v667 = vcombine.high %v641, %v649
    %v669 = vunpack.c.l.s4 1934713408
    %v670 = vunpack.c.0.s8 %v669
    %v671 = vlaneseq
    %v672 = vshrl.u32 %v671, 7
    %v673 = vsub.s32 %v670, %v672
    %v674 = vrot.slane %v666, %v673
    %v676 = vunpack.c.l.s4 1934713408
    %v677 = vunpack.c.0.s8 %v676
    %v678 = vlaneseq
    %v679 = vshrl.u32 %v678, 7
    %v680 = vsub.s32 %v677, %v679
    %v681 = vrot.slane %v667, %v680
    %v682 = vcombine.low %v658, %v674
    %v683 = vcombine.high %v658, %v674
    %v684 = vcombine.low %v665, %v681
    %v685 = vcombine.high %v665, %v681
    %v686 = vcombine.low %v590, %v597
    %v688 = vunpack.c.l.s4 1983009808
    %v689 = vunpack.c.0.s8 %v688
    %v690 = vlaneseq
    %v691 = vshrl.u32 %v690, 7
    %v692 = vsub.s32 %v689, %v691
    %v693 = vrot.slane %v686, %v692
    %v694 = vcombine.low %v614, %v615
    %v696 = vunpack.c.l.s4 1983009808
    %v697 = vunpack.c.0.s8 %v696
    %v698 = vlaneseq
    %v699 = vshrl.u32 %v698, 7
    %v700 = vsub.s32 %v697, %v699
    %v701 = vrot.slane %v694, %v700
    %v702 = vcombine.low %v606, %v613
    %v704 = vunpack.c.l.s4 1983009808
    %v705 = vunpack.c.0.s8 %v704
    %v706 = vlaneseq
    %v707 = vshrl.u32 %v706, 7
    %v708 = vsub.s32 %v705, %v707
    %v709 = vrot.slane %v702, %v708
    %v710 = vcombine.low %v616, %v617
    %v712 = vunpack.c.l.s4 1983009808
    %v713 = vunpack.c.0.s8 %v712
    %v714 = vlaneseq
    %v715 = vshrl.u32 %v714, 7
    %v716 = vsub.s32 %v713, %v715
    %v717 = vrot.slane %v710, %v716
    %v718 = vcombine.low %v693, %v701
    %v719 = vcombine.high %v693, %v701
    %v721 = vunpack.c.l.s4 1934713408
    %v722 = vunpack.c.0.s8 %v721
    %v723 = vlaneseq
    %v724 = vshrl.u32 %v723, 7
    %v725 = vsub.s32 %v722, %v724
    %v726 = vrot.slane %v718, %v725
    %v728 = vunpack.c.l.s4 1934713408
    %v729 = vunpack.c.0.s8 %v728
    %v730 = vlaneseq
    %v731 = vshrl.u32 %v730, 7
    %v732 = vsub.s32 %v729, %v731
    %v733 = vrot.slane %v719, %v732
    %v734 = vcombine.low %v709, %v717
    %v735 = vcombine.high %v709, %v717
    %v737 = vunpack.c.l.s4 1934713408
    %v738 = vunpack.c.0.s8 %v737
    %v739 = vlaneseq
    %v740 = vshrl.u32 %v739, 7
    %v741 = vsub.s32 %v738, %v740
    %v742 = vrot.slane %v734, %v741
    %v744 = vunpack.c.l.s4 1934713408
    %v745 = vunpack.c.0.s8 %v744
    %v746 = vlaneseq
    %v747 = vshrl.u32 %v746, 7
    %v748 = vsub.s32 %v745, %v747
    %v749 = vrot.slane %v735, %v748
    %v750 = vcombine.low %v726, %v742
    %v751 = vcombine.high %v726, %v742
    %v752 = vcombine.low %v733, %v749
    %v753 = vcombine.high %v733, %v749
    %754 = vrot.lane.b32.xlu0 %v160, 64
    %v755 = vpop.permute.xlu0 %754
    %756 = vrot.lane.b32.xlu0 %v163, 64
    %v757 = vpop.permute.xlu0 %756
    %758 = vrot.lane.b32.xlu0 %v169, 64
    %v759 = vpop.permute.xlu0 %758
    %760 = vrot.lane.b32.xlu0 %v171, 64
    %v761 = vpop.permute.xlu0 %760
    %762 = vrot.lane.b32.xlu0 %v175, 64
    %v763 = vpop.permute.xlu0 %762
    %764 = vrot.lane.b32.xlu0 %v177, 64
    %v765 = vpop.permute.xlu0 %764
    %766 = vrot.lane.b32.xlu0 %v181, 64
    %v767 = vpop.permute.xlu0 %766
    %768 = vrot.lane.b32.xlu0 %v183, 64
    %v769 = vpop.permute.xlu0 %768
    %v778 = vcombine.low %v755, %v763
    %v779 = vcombine.high %v755, %v763
    %v781 = vunpack.c.l.s4 1983009808
    %v782 = vunpack.c.0.s8 %v781
    %v783 = vlaneseq
    %v784 = vshrl.u32 %v783, 7
    %v785 = vsub.s32 %v782, %v784
    %v786 = vrot.slane %v778, %v785
    %v788 = vunpack.c.l.s4 1983009808
    %v789 = vunpack.c.0.s8 %v788
    %v790 = vlaneseq
    %v791 = vshrl.u32 %v790, 7
    %v792 = vsub.s32 %v789, %v791
    %v793 = vrot.slane %v779, %v792
    %v794 = vcombine.low %v759, %v767
    %v795 = vcombine.high %v759, %v767
    %v797 = vunpack.c.l.s4 1983009808
    %v798 = vunpack.c.0.s8 %v797
    %v799 = vlaneseq
    %v800 = vshrl.u32 %v799, 7
    %v801 = vsub.s32 %v798, %v800
    %v802 = vrot.slane %v794, %v801
    %v804 = vunpack.c.l.s4 1983009808
    %v805 = vunpack.c.0.s8 %v804
    %v806 = vlaneseq
    %v807 = vshrl.u32 %v806, 7
    %v808 = vsub.s32 %v805, %v807
    %v809 = vrot.slane %v795, %v808
    %v810 = vcombine.low %v786, %v802
    %v811 = vcombine.high %v786, %v802
    %v813 = vunpack.c.l.s4 1934713408
    %v814 = vunpack.c.0.s8 %v813
    %v815 = vlaneseq
    %v816 = vshrl.u32 %v815, 7
    %v817 = vsub.s32 %v814, %v816
    %v818 = vrot.slane %v810, %v817
    %v820 = vunpack.c.l.s4 1934713408
    %v821 = vunpack.c.0.s8 %v820
    %v822 = vlaneseq
    %v823 = vshrl.u32 %v822, 7
    %v824 = vsub.s32 %v821, %v823
    %v825 = vrot.slane %v811, %v824
    %v826 = vcombine.low %v793, %v809
    %v827 = vcombine.high %v793, %v809
    %v829 = vunpack.c.l.s4 1934713408
    %v830 = vunpack.c.0.s8 %v829
    %v831 = vlaneseq
    %v832 = vshrl.u32 %v831, 7
    %v833 = vsub.s32 %v830, %v832
    %v834 = vrot.slane %v826, %v833
    %v836 = vunpack.c.l.s4 1934713408
    %v837 = vunpack.c.0.s8 %v836
    %v838 = vlaneseq
    %v839 = vshrl.u32 %v838, 7
    %v840 = vsub.s32 %v837, %v839
    %v841 = vrot.slane %v827, %v840
    %v842 = vcombine.high %v818, 0.0
    %v843 = vcombine.high %v825, 0.0
    %v844 = vcombine.high %v834, 0.0
    %v845 = vcombine.high %v841, 0.0
    %v846 = vcombine.low %v757, %v765
    %v847 = vcombine.high %v757, %v765
    %v849 = vunpack.c.l.s4 1983009808
    %v850 = vunpack.c.0.s8 %v849
    %v851 = vlaneseq
    %v852 = vshrl.u32 %v851, 7
    %v853 = vsub.s32 %v850, %v852
    %v854 = vrot.slane %v846, %v853
    %v856 = vunpack.c.l.s4 1983009808
    %v857 = vunpack.c.0.s8 %v856
    %v858 = vlaneseq
    %v859 = vshrl.u32 %v858, 7
    %v860 = vsub.s32 %v857, %v859
    %v861 = vrot.slane %v847, %v860
    %v862 = vcombine.low %v761, %v769
    %v863 = vcombine.high %v761, %v769
    %v865 = vunpack.c.l.s4 1983009808
    %v866 = vunpack.c.0.s8 %v865
    %v867 = vlaneseq
    %v868 = vshrl.u32 %v867, 7
    %v869 = vsub.s32 %v866, %v868
    %v870 = vrot.slane %v862, %v869
    %v872 = vunpack.c.l.s4 1983009808
    %v873 = vunpack.c.0.s8 %v872
    %v874 = vlaneseq
    %v875 = vshrl.u32 %v874, 7
    %v876 = vsub.s32 %v873, %v875
    %v877 = vrot.slane %v863, %v876
    %v878 = vcombine.low %v854, %v870
    %v879 = vcombine.high %v854, %v870
    %v881 = vunpack.c.l.s4 1934713408
    %v882 = vunpack.c.0.s8 %v881
    %v883 = vlaneseq
    %v884 = vshrl.u32 %v883, 7
    %v885 = vsub.s32 %v882, %v884
    %v886 = vrot.slane %v878, %v885
    %v888 = vunpack.c.l.s4 1934713408
    %v889 = vunpack.c.0.s8 %v888
    %v890 = vlaneseq
    %v891 = vshrl.u32 %v890, 7
    %v892 = vsub.s32 %v889, %v891
    %v893 = vrot.slane %v879, %v892
    %v894 = vcombine.low %v861, %v877
    %v895 = vcombine.high %v861, %v877
    %v897 = vunpack.c.l.s4 1934713408
    %v898 = vunpack.c.0.s8 %v897
    %v899 = vlaneseq
    %v900 = vshrl.u32 %v899, 7
    %v901 = vsub.s32 %v898, %v900
    %v902 = vrot.slane %v894, %v901
    %v904 = vunpack.c.l.s4 1934713408
    %v905 = vunpack.c.0.s8 %v904
    %v906 = vlaneseq
    %v907 = vshrl.u32 %v906, 7
    %v908 = vsub.s32 %v905, %v907
    %v909 = vrot.slane %v895, %v908
    %v910 = vcombine.high %v886, 0.0
    %v911 = vcombine.high %v893, 0.0
    %v912 = vcombine.high %v902, 0.0
    %v913 = vcombine.high %v909, 0.0
    %v914 = vcombine.low %v818, %v825
    %v916 = vunpack.c.l.s4 1983009808
    %v917 = vunpack.c.0.s8 %v916
    %v918 = vlaneseq
    %v919 = vshrl.u32 %v918, 7
    %v920 = vsub.s32 %v917, %v919
    %v921 = vrot.slane %v914, %v920
    %v922 = vcombine.low %v842, %v843
    %v924 = vunpack.c.l.s4 1983009808
    %v925 = vunpack.c.0.s8 %v924
    %v926 = vlaneseq
    %v927 = vshrl.u32 %v926, 7
    %v928 = vsub.s32 %v925, %v927
    %v929 = vrot.slane %v922, %v928
    %v930 = vcombine.low %v834, %v841
    %v932 = vunpack.c.l.s4 1983009808
    %v933 = vunpack.c.0.s8 %v932
    %v934 = vlaneseq
    %v935 = vshrl.u32 %v934, 7
    %v936 = vsub.s32 %v933, %v935
    %v937 = vrot.slane %v930, %v936
    %v938 = vcombine.low %v844, %v845
    %v940 = vunpack.c.l.s4 1983009808
    %v941 = vunpack.c.0.s8 %v940
    %v942 = vlaneseq
    %v943 = vshrl.u32 %v942, 7
    %v944 = vsub.s32 %v941, %v943
    %v945 = vrot.slane %v938, %v944
    %v946 = vcombine.low %v921, %v929
    %v947 = vcombine.high %v921, %v929
    %v949 = vunpack.c.l.s4 1934713408
    %v950 = vunpack.c.0.s8 %v949
    %v951 = vlaneseq
    %v952 = vshrl.u32 %v951, 7
    %v953 = vsub.s32 %v950, %v952
    %v954 = vrot.slane %v946, %v953
    %v956 = vunpack.c.l.s4 1934713408
    %v957 = vunpack.c.0.s8 %v956
    %v958 = vlaneseq
    %v959 = vshrl.u32 %v958, 7
    %v960 = vsub.s32 %v957, %v959
    %v961 = vrot.slane %v947, %v960
    %v962 = vcombine.low %v937, %v945
    %v963 = vcombine.high %v937, %v945
    %v965 = vunpack.c.l.s4 1934713408
    %v966 = vunpack.c.0.s8 %v965
    %v967 = vlaneseq
    %v968 = vshrl.u32 %v967, 7
    %v969 = vsub.s32 %v966, %v968
    %v970 = vrot.slane %v962, %v969
    %v972 = vunpack.c.l.s4 1934713408
    %v973 = vunpack.c.0.s8 %v972
    %v974 = vlaneseq
    %v975 = vshrl.u32 %v974, 7
    %v976 = vsub.s32 %v973, %v975
    %v977 = vrot.slane %v963, %v976
    %v978 = vcombine.low %v954, %v970
    %v979 = vcombine.high %v954, %v970
    %v980 = vcombine.low %v961, %v977
    %v981 = vcombine.high %v961, %v977
    %v982 = vcombine.low %v886, %v893
    %v984 = vunpack.c.l.s4 1983009808
    %v985 = vunpack.c.0.s8 %v984
    %v986 = vlaneseq
    %v987 = vshrl.u32 %v986, 7
    %v988 = vsub.s32 %v985, %v987
    %v989 = vrot.slane %v982, %v988
    %v990 = vcombine.low %v910, %v911
    %v992 = vunpack.c.l.s4 1983009808
    %v993 = vunpack.c.0.s8 %v992
    %v994 = vlaneseq
    %v995 = vshrl.u32 %v994, 7
    %v996 = vsub.s32 %v993, %v995
    %v997 = vrot.slane %v990, %v996
    %v998 = vcombine.low %v902, %v909
    %v1000 = vunpack.c.l.s4 1983009808
    %v1001 = vunpack.c.0.s8 %v1000
    %v1002 = vlaneseq
    %v1003 = vshrl.u32 %v1002, 7
    %v1004 = vsub.s32 %v1001, %v1003
    %v1005 = vrot.slane %v998, %v1004
    %v1006 = vcombine.low %v912, %v913
    %v1008 = vunpack.c.l.s4 1983009808
    %v1009 = vunpack.c.0.s8 %v1008
    %v1010 = vlaneseq
    %v1011 = vshrl.u32 %v1010, 7
    %v1012 = vsub.s32 %v1009, %v1011
    %v1013 = vrot.slane %v1006, %v1012
    %v1014 = vcombine.low %v989, %v997
    %v1015 = vcombine.high %v989, %v997
    %v1017 = vunpack.c.l.s4 1934713408
    %v1018 = vunpack.c.0.s8 %v1017
    %v1019 = vlaneseq
    %v1020 = vshrl.u32 %v1019, 7
    %v1021 = vsub.s32 %v1018, %v1020
    %v1022 = vrot.slane %v1014, %v1021
    %v1024 = vunpack.c.l.s4 1934713408
    %v1025 = vunpack.c.0.s8 %v1024
    %v1026 = vlaneseq
    %v1027 = vshrl.u32 %v1026, 7
    %v1028 = vsub.s32 %v1025, %v1027
    %v1029 = vrot.slane %v1015, %v1028
    %v1030 = vcombine.low %v1005, %v1013
    %v1031 = vcombine.high %v1005, %v1013
    %v1033 = vunpack.c.l.s4 1934713408
    %v1034 = vunpack.c.0.s8 %v1033
    %v1035 = vlaneseq
    %v1036 = vshrl.u32 %v1035, 7
    %v1037 = vsub.s32 %v1034, %v1036
    %v1038 = vrot.slane %v1030, %v1037
    %v1040 = vunpack.c.l.s4 1934713408
    %v1041 = vunpack.c.0.s8 %v1040
    %v1042 = vlaneseq
    %v1043 = vshrl.u32 %v1042, 7
    %v1044 = vsub.s32 %v1041, %v1043
    %v1045 = vrot.slane %v1031, %v1044
    %v1046 = vcombine.low %v1022, %v1038
    %v1047 = vcombine.high %v1022, %v1038
    %v1048 = vcombine.low %v1029, %v1045
    %v1049 = vcombine.high %v1029, %v1045
    %v1050 = vcombine.low %v386, %v387
    %v1051 = vcombine.high %v386, %v387
    %v1053 = vunpack.c.l.s4 1983009808
    %v1054 = vunpack.c.0.s8 %v1053
    %v1055 = vlaneseq
    %v1056 = vshrl.u32 %v1055, 7
    %v1057 = vsub.s32 %v1054, %v1056
    %v1058 = vrot.slane %v1050, %v1057
    %v1060 = vunpack.c.l.s4 1983009808
    %v1061 = vunpack.c.0.s8 %v1060
    %v1062 = vlaneseq
    %v1063 = vshrl.u32 %v1062, 7
    %v1064 = vsub.s32 %v1061, %v1063
    %v1065 = vrot.slane %v1051, %v1064
    %v1066 = vcombine.low %v454, %v455
    %v1067 = vcombine.high %v454, %v455
    %v1069 = vunpack.c.l.s4 1983009808
    %v1070 = vunpack.c.0.s8 %v1069
    %v1071 = vlaneseq
    %v1072 = vshrl.u32 %v1071, 7
    %v1073 = vsub.s32 %v1070, %v1072
    %v1074 = vrot.slane %v1066, %v1073
    %v1076 = vunpack.c.l.s4 1983009808
    %v1077 = vunpack.c.0.s8 %v1076
    %v1078 = vlaneseq
    %v1079 = vshrl.u32 %v1078, 7
    %v1080 = vsub.s32 %v1077, %v1079
    %v1081 = vrot.slane %v1067, %v1080
    %v1082 = vcombine.low %v388, %v389
    %v1083 = vcombine.high %v388, %v389
    %v1085 = vunpack.c.l.s4 1983009808
    %v1086 = vunpack.c.0.s8 %v1085
    %v1087 = vlaneseq
    %v1088 = vshrl.u32 %v1087, 7
    %v1089 = vsub.s32 %v1086, %v1088
    %v1090 = vrot.slane %v1082, %v1089
    %v1092 = vunpack.c.l.s4 1983009808
    %v1093 = vunpack.c.0.s8 %v1092
    %v1094 = vlaneseq
    %v1095 = vshrl.u32 %v1094, 7
    %v1096 = vsub.s32 %v1093, %v1095
    %v1097 = vrot.slane %v1083, %v1096
    %v1098 = vcombine.low %v456, %v457
    %v1099 = vcombine.high %v456, %v457
    %v1101 = vunpack.c.l.s4 1983009808
    %v1102 = vunpack.c.0.s8 %v1101
    %v1103 = vlaneseq
    %v1104 = vshrl.u32 %v1103, 7
    %v1105 = vsub.s32 %v1102, %v1104
    %v1106 = vrot.slane %v1098, %v1105
    %v1108 = vunpack.c.l.s4 1983009808
    %v1109 = vunpack.c.0.s8 %v1108
    %v1110 = vlaneseq
    %v1111 = vshrl.u32 %v1110, 7
    %v1112 = vsub.s32 %v1109, %v1111
    %v1113 = vrot.slane %v1099, %v1112
    %v1114 = vcombine.low %v1058, %v1074
    %v1115 = vcombine.high %v1058, %v1074
    %v1117 = vunpack.c.l.s4 1934713408
    %v1118 = vunpack.c.0.s8 %v1117
    %v1119 = vlaneseq
    %v1120 = vshrl.u32 %v1119, 7
    %v1121 = vsub.s32 %v1118, %v1120
    %v1122 = vrot.slane %v1114, %v1121
    %v1124 = vunpack.c.l.s4 1934713408
    %v1125 = vunpack.c.0.s8 %v1124
    %v1126 = vlaneseq
    %v1127 = vshrl.u32 %v1126, 7
    %v1128 = vsub.s32 %v1125, %v1127
    %v1129 = vrot.slane %v1115, %v1128
    %v1130 = vcombine.low %v1065, %v1081
    %v1131 = vcombine.high %v1065, %v1081
    %v1133 = vunpack.c.l.s4 1934713408
    %v1134 = vunpack.c.0.s8 %v1133
    %v1135 = vlaneseq
    %v1136 = vshrl.u32 %v1135, 7
    %v1137 = vsub.s32 %v1134, %v1136
    %v1138 = vrot.slane %v1130, %v1137
    %v1140 = vunpack.c.l.s4 1934713408
    %v1141 = vunpack.c.0.s8 %v1140
    %v1142 = vlaneseq
    %v1143 = vshrl.u32 %v1142, 7
    %v1144 = vsub.s32 %v1141, %v1143
    %v1145 = vrot.slane %v1131, %v1144
    %v1146 = vcombine.low %v1090, %v1106
    %v1147 = vcombine.high %v1090, %v1106
    %v1149 = vunpack.c.l.s4 1934713408
    %v1150 = vunpack.c.0.s8 %v1149
    %v1151 = vlaneseq
    %v1152 = vshrl.u32 %v1151, 7
    %v1153 = vsub.s32 %v1150, %v1152
    %v1154 = vrot.slane %v1146, %v1153
    %v1156 = vunpack.c.l.s4 1934713408
    %v1157 = vunpack.c.0.s8 %v1156
    %v1158 = vlaneseq
    %v1159 = vshrl.u32 %v1158, 7
    %v1160 = vsub.s32 %v1157, %v1159
    %v1161 = vrot.slane %v1147, %v1160
    %v1162 = vcombine.low %v1097, %v1113
    %v1163 = vcombine.high %v1097, %v1113
    %v1165 = vunpack.c.l.s4 1934713408
    %v1166 = vunpack.c.0.s8 %v1165
    %v1167 = vlaneseq
    %v1168 = vshrl.u32 %v1167, 7
    %v1169 = vsub.s32 %v1166, %v1168
    %v1170 = vrot.slane %v1162, %v1169
    %v1172 = vunpack.c.l.s4 1934713408
    %v1173 = vunpack.c.0.s8 %v1172
    %v1174 = vlaneseq
    %v1175 = vshrl.u32 %v1174, 7
    %v1176 = vsub.s32 %v1173, %v1175
    %v1177 = vrot.slane %v1163, %v1176
    %v1178 = vcombine.low %v1122, %v1154
    %v1179 = vcombine.high %v1122, %v1154
    %v1180 = vcombine.low %v1129, %v1161
    %v1181 = vcombine.high %v1129, %v1161
    %v1182 = vcombine.low %v1138, %v1170
    %v1183 = vcombine.high %v1138, %v1170
    %v1184 = vcombine.low %v1145, %v1177
    %v1185 = vcombine.high %v1145, %v1177
    %v1186 = vld [vmem:[%s4] sm:$0xf]
    %v1187 = vld [vmem:[%s4 + $0x4] sm:$0xf]
    %v1188 = vld [vmem:[%s4 + $0x8] sm:$0xf]
    %v1189 = vld [vmem:[%s4 + $0xc] sm:$0xf]
    %v1190 = vld [vmem:[%s4 + $0x10] sm:$0xf]
    %v1191 = vld [vmem:[%s4 + $0x14] sm:$0xf]
    %v1192 = vld [vmem:[%s4 + $0x18] sm:$0xf]
    %v1193 = vld [vmem:[%s4 + $0x1c] sm:$0xf]
    %v1194 = vpack.c.bf16 %v386, %v386
    %v1195 = vpack.c.bf16 %v454, %v454
    %v1196 = vpack.c.bf16 %v387, %v387
    %v1197 = vpack.c.bf16 %v455, %v455
    %v1198 = vpack.c.bf16 %v388, %v388
    %v1199 = vpack.c.bf16 %v456, %v456
    %v1200 = vpack.c.bf16 %v389, %v389
    %v1201 = vpack.c.bf16 %v457, %v457
    %v1202 = vpack.c.bf16 %v682, %v682
    %v1203 = vpack.c.bf16 %v750, %v750
    %v1204 = vpack.c.bf16 %v683, %v683
    %v1205 = vpack.c.bf16 %v751, %v751
    %v1206 = vpack.c.bf16 %v684, %v684
    %v1207 = vpack.c.bf16 %v752, %v752
    %v1208 = vpack.c.bf16 %v685, %v685
    %v1209 = vpack.c.bf16 %v753, %v753
    %v1210 = vpack.c.bf16 %v1178, %v1178
    %v1211 = vpack.c.bf16 %v1179, %v1179
    %v1212 = vpack.c.bf16 %v1180, %v1180
    %v1213 = vpack.c.bf16 %v1181, %v1181
    %v1214 = vpack.c.bf16 %v1182, %v1182
    %v1215 = vpack.c.bf16 %v1183, %v1183
    %v1216 = vpack.c.bf16 %v1184, %v1184
    %v1217 = vpack.c.bf16 %v1185, %v1185
    %vm1218 = vcmask 64512
    %v1220 = vsel %vm1218, %v1186, 0
    %v1223 = vsel %vm1218, %v1210, 0
    %1225 = vmatprep.subr.bf16.mxu0 0
    %1226 = vmatpush1.bf16.xpose.msra.mxu0 %v1223
    %1227 = vmatprep.subr.bf16.mxu0 0
    %1228 = vmatpush1.bf16.xpose.msra.mxu0 0
    %1229 = vmatprep.subr.bf16.mxu0 0
    %1230 = vmatpush1.bf16.xpose.msra.mxu0 0
    %1231 = vmatprep.subr.bf16.mxu0 0
    %1232 = vmatpush1.bf16.xpose.msra.mxu0 0
    %1233 = vmatprep.subr.bf16.mxu0 0
    %1234 = vmatpush1.bf16.xpose.msra.mxu0 0
    %1235 = vmatprep.subr.bf16.mxu0 0
    %1236 = vmatpush1.bf16.xpose.msra.mxu0 0
    %1237 = vmatprep.subr.bf16.mxu0 0
    %1238 = vmatpush1.bf16.xpose.msra.mxu0 0
    %1239 = vmatprep.subr.bf16.mxu0 0
    %1240 = vmatpush1.bf16.xpose.msra.mxu0 0
    %1241 = vmatprep.subr.bf16.mxu0 0
    %1242 = vmatpush1.bf16.xpose.msra.mxu0 0
    %1243 = vmatprep.subr.bf16.mxu0 0
    %1244 = vmatpush1.bf16.xpose.msra.mxu0 0
    %1245 = vmatprep.subr.bf16.mxu0 0
    %1246 = vmatpush1.bf16.xpose.msra.mxu0 0
    %1247 = vmatprep.subr.bf16.mxu0 0
    %1248 = vmatpush1.bf16.xpose.msra.mxu0 0
    %1249 = vmatprep.subr.bf16.mxu0 0
    %1250 = vmatpush1.bf16.xpose.msra.mxu0 0
    %1251 = vmatprep.subr.bf16.mxu0 0
    %1252 = vmatpush1.bf16.xpose.msra.mxu0 0
    %1253 = vmatprep.subr.bf16.mxu0 0
    %1254 = vmatpush1.bf16.xpose.msra.mxu0 0
    %1255 = vmatprep.subr.bf16.mxu0 0
    %1256 = vmatpush1.bf16.xpose.msra.mxu0 0
    %1257 = vmatprep.mubr.bf16.mxu0 0
    %1258 = vmatmul.mubr.bf16.gmra.mrb[0].mxu0 %v1220
    %v1259 = vpop.f32.mrb[0].mxu0
    %v1260 = vadd.f32 0.0, %v1259
    %v1261 = vpop.f32.mrb[0].mxu0
    %v1262 = vpop.f32.mrb[0].mxu0
    %v1263 = vpop.f32.mrb[0].mxu0
    %1264 = vdwg.mxu0
    %v1266 = vsel %vm1218, %v1187, 0
    %v1269 = vsel %vm1218, %v1211, 0
    %1271 = vmatprep.subr.bf16.mxu0 0
    %1272 = vmatpush1.bf16.xpose.msra.mxu0 %v1269
    %1273 = vmatprep.subr.bf16.mxu0 0
    %1274 = vmatpush1.bf16.xpose.msra.mxu0 0
    %1275 = vmatprep.subr.bf16.mxu0 0
    %1276 = vmatpush1.bf16.xpose.msra.mxu0 0
    %1277 = vmatprep.subr.bf16.mxu0 0
    %1278 = vmatpush1.bf16.xpose.msra.mxu0 0
    %1279 = vmatprep.subr.bf16.mxu0 0
    %1280 = vmatpush1.bf16.xpose.msra.mxu0 0
    %1281 = vmatprep.subr.bf16.mxu0 0
    %1282 = vmatpush1.bf16.xpose.msra.mxu0 0
    %1283 = vmatprep.subr.bf16.mxu0 0
    %1284 = vmatpush1.bf16.xpose.msra.mxu0 0
    %1285 = vmatprep.subr.bf16.mxu0 0
    %1286 = vmatpush1.bf16.xpose.msra.mxu0 0
    %1287 = vmatprep.subr.bf16.mxu0 0
    %1288 = vmatpush1.bf16.xpose.msra.mxu0 0
    %1289 = vmatprep.subr.bf16.mxu0 0
    %1290 = vmatpush1.bf16.xpose.msra.mxu0 0
    %1291 = vmatprep.subr.bf16.mxu0 0
    %1292 = vmatpush1.bf16.xpose.msra.mxu0 0
    %1293 = vmatprep.subr.bf16.mxu0 0
    %1294 = vmatpush1.bf16.xpose.msra.mxu0 0
    %1295 = vmatprep.subr.bf16.mxu0 0
    %1296 = vmatpush1.bf16.xpose.msra.mxu0 0
    %1297 = vmatprep.subr.bf16.mxu0 0
    %1298 = vmatpush1.bf16.xpose.msra.mxu0 0
    %1299 = vmatprep.subr.bf16.mxu0 0
    %1300 = vmatpush1.bf16.xpose.msra.mxu0 0
    %1301 = vmatprep.subr.bf16.mxu0 0
    %1302 = vmatpush1.bf16.xpose.msra.mxu0 0
    %1303 = vmatprep.mubr.bf16.mxu0 0
    %1304 = vmatmul.mubr.bf16.gmra.mrb[0].mxu0 %v1266
    %v1305 = vpop.f32.mrb[0].mxu0
    %v1306 = vadd.f32 0.0, %v1305
    %v1307 = vpop.f32.mrb[0].mxu0
    %v1308 = vpop.f32.mrb[0].mxu0
    %v1309 = vpop.f32.mrb[0].mxu0
    %1310 = vdwg.mxu0
    %v1312 = vsel %vm1218, %v1188, 0
    %v1315 = vsel %vm1218, %v1212, 0
    %1317 = vmatprep.subr.bf16.mxu0 0
    %1318 = vmatpush1.bf16.xpose.msra.mxu0 %v1315
    %1319 = vmatprep.subr.bf16.mxu0 0
    %1320 = vmatpush1.bf16.xpose.msra.mxu0 0
    %1321 = vmatprep.subr.bf16.mxu0 0
    %1322 = vmatpush1.bf16.xpose.msra.mxu0 0
    %1323 = vmatprep.subr.bf16.mxu0 0
    %1324 = vmatpush1.bf16.xpose.msra.mxu0 0
    %1325 = vmatprep.subr.bf16.mxu0 0
    %1326 = vmatpush1.bf16.xpose.msra.mxu0 0
    %1327 = vmatprep.subr.bf16.mxu0 0
    %1328 = vmatpush1.bf16.xpose.msra.mxu0 0
    %1329 = vmatprep.subr.bf16.mxu0 0
    %1330 = vmatpush1.bf16.xpose.msra.mxu0 0
    %1331 = vmatprep.subr.bf16.mxu0 0
    %1332 = vmatpush1.bf16.xpose.msra.mxu0 0
    %1333 = vmatprep.subr.bf16.mxu0 0
    %1334 = vmatpush1.bf16.xpose.msra.mxu0 0
    %1335 = vmatprep.subr.bf16.mxu0 0
    %1336 = vmatpush1.bf16.xpose.msra.mxu0 0
    %1337 = vmatprep.subr.bf16.mxu0 0
    %1338 = vmatpush1.bf16.xpose.msra.mxu0 0
    %1339 = vmatprep.subr.bf16.mxu0 0
    %1340 = vmatpush1.bf16.xpose.msra.mxu0 0
    %1341 = vmatprep.subr.bf16.mxu0 0
    %1342 = vmatpush1.bf16.xpose.msra.mxu0 0
    %1343 = vmatprep.subr.bf16.mxu0 0
    %1344 = vmatpush1.bf16.xpose.msra.mxu0 0
    %1345 = vmatprep.subr.bf16.mxu0 0
    %1346 = vmatpush1.bf16.xpose.msra.mxu0 0
    %1347 = vmatprep.subr.bf16.mxu0 0
    %1348 = vmatpush1.bf16.xpose.msra.mxu0 0
    %1349 = vmatprep.mubr.bf16.mxu0 0
    %1350 = vmatmul.mubr.bf16.gmra.mrb[0].mxu0 %v1312
    %v1351 = vpop.f32.mrb[0].mxu0
    %v1352 = vadd.f32 0.0, %v1351
    %v1353 = vpop.f32.mrb[0].mxu0
    %v1354 = vpop.f32.mrb[0].mxu0
    %v1355 = vpop.f32.mrb[0].mxu0
    %1356 = vdwg.mxu0
    %v1358 = vsel %vm1218, %v1189, 0
    %v1361 = vsel %vm1218, %v1213, 0
    %1363 = vmatprep.subr.bf16.mxu0 0
    %1364 = vmatpush1.bf16.xpose.msra.mxu0 %v1361
    %1365 = vmatprep.subr.bf16.mxu0 0
    %1366 = vmatpush1.bf16.xpose.msra.mxu0 0
    %1367 = vmatprep.subr.bf16.mxu0 0
    %1368 = vmatpush1.bf16.xpose.msra.mxu0 0
    %1369 = vmatprep.subr.bf16.mxu0 0
    %1370 = vmatpush1.bf16.xpose.msra.mxu0 0
    %1371 = vmatprep.subr.bf16.mxu0 0
    %1372 = vmatpush1.bf16.xpose.msra.mxu0 0
    %1373 = vmatprep.subr.bf16.mxu0 0
    %1374 = vmatpush1.bf16.xpose.msra.mxu0 0
    %1375 = vmatprep.subr.bf16.mxu0 0
    %1376 = vmatpush1.bf16.xpose.msra.mxu0 0
    %1377 = vmatprep.subr.bf16.mxu0 0
    %1378 = vmatpush1.bf16.xpose.msra.mxu0 0
    %1379 = vmatprep.subr.bf16.mxu0 0
    %1380 = vmatpush1.bf16.xpose.msra.mxu0 0
    %1381 = vmatprep.subr.bf16.mxu0 0
    %1382 = vmatpush1.bf16.xpose.msra.mxu0 0
    %1383 = vmatprep.subr.bf16.mxu0 0
    %1384 = vmatpush1.bf16.xpose.msra.mxu0 0
    %1385 = vmatprep.subr.bf16.mxu0 0
    %1386 = vmatpush1.bf16.xpose.msra.mxu0 0
    %1387 = vmatprep.subr.bf16.mxu0 0
    %1388 = vmatpush1.bf16.xpose.msra.mxu0 0
    %1389 = vmatprep.subr.bf16.mxu0 0
    %1390 = vmatpush1.bf16.xpose.msra.mxu0 0
    %1391 = vmatprep.subr.bf16.mxu0 0
    %1392 = vmatpush1.bf16.xpose.msra.mxu0 0
    %1393 = vmatprep.subr.bf16.mxu0 0
    %1394 = vmatpush1.bf16.xpose.msra.mxu0 0
    %1395 = vmatprep.mubr.bf16.mxu0 0
    %1396 = vmatmul.mubr.bf16.gmra.mrb[0].mxu0 %v1358
    %v1397 = vpop.f32.mrb[0].mxu0
    %v1398 = vadd.f32 0.0, %v1397
    %v1399 = vpop.f32.mrb[0].mxu0
    %v1400 = vpop.f32.mrb[0].mxu0
    %v1401 = vpop.f32.mrb[0].mxu0
    %1402 = vdwg.mxu0
    %v1404 = vsel %vm1218, %v1190, 0
    %v1407 = vsel %vm1218, %v1214, 0
    %1409 = vmatprep.subr.bf16.mxu0 0
    %1410 = vmatpush1.bf16.xpose.msra.mxu0 %v1407
    %1411 = vmatprep.subr.bf16.mxu0 0
    %1412 = vmatpush1.bf16.xpose.msra.mxu0 0
    %1413 = vmatprep.subr.bf16.mxu0 0
    %1414 = vmatpush1.bf16.xpose.msra.mxu0 0
    %1415 = vmatprep.subr.bf16.mxu0 0
    %1416 = vmatpush1.bf16.xpose.msra.mxu0 0
    %1417 = vmatprep.subr.bf16.mxu0 0
    %1418 = vmatpush1.bf16.xpose.msra.mxu0 0
    %1419 = vmatprep.subr.bf16.mxu0 0
    %1420 = vmatpush1.bf16.xpose.msra.mxu0 0
    %1421 = vmatprep.subr.bf16.mxu0 0
    %1422 = vmatpush1.bf16.xpose.msra.mxu0 0
    %1423 = vmatprep.subr.bf16.mxu0 0
    %1424 = vmatpush1.bf16.xpose.msra.mxu0 0
    %1425 = vmatprep.subr.bf16.mxu0 0
    %1426 = vmatpush1.bf16.xpose.msra.mxu0 0
    %1427 = vmatprep.subr.bf16.mxu0 0
    %1428 = vmatpush1.bf16.xpose.msra.mxu0 0
    %1429 = vmatprep.subr.bf16.mxu0 0
    %1430 = vmatpush1.bf16.xpose.msra.mxu0 0
    %1431 = vmatprep.subr.bf16.mxu0 0
    %1432 = vmatpush1.bf16.xpose.msra.mxu0 0
    %1433 = vmatprep.subr.bf16.mxu0 0
    %1434 = vmatpush1.bf16.xpose.msra.mxu0 0
    %1435 = vmatprep.subr.bf16.mxu0 0
    %1436 = vmatpush1.bf16.xpose.msra.mxu0 0
    %1437 = vmatprep.subr.bf16.mxu0 0
    %1438 = vmatpush1.bf16.xpose.msra.mxu0 0
    %1439 = vmatprep.subr.bf16.mxu0 0
    %1440 = vmatpush1.bf16.xpose.msra.mxu0 0
    %1441 = vmatprep.mubr.bf16.mxu0 0
    %1442 = vmatmul.mubr.bf16.gmra.mrb[0].mxu0 %v1404
    %v1443 = vpop.f32.mrb[0].mxu0
    %v1444 = vadd.f32 0.0, %v1443
    %v1445 = vpop.f32.mrb[0].mxu0
    %v1446 = vpop.f32.mrb[0].mxu0
    %v1447 = vpop.f32.mrb[0].mxu0
    %1448 = vdwg.mxu0
    %v1450 = vsel %vm1218, %v1191, 0
    %v1453 = vsel %vm1218, %v1215, 0
    %1455 = vmatprep.subr.bf16.mxu0 0
    %1456 = vmatpush1.bf16.xpose.msra.mxu0 %v1453
    %1457 = vmatprep.subr.bf16.mxu0 0
    %1458 = vmatpush1.bf16.xpose.msra.mxu0 0
    %1459 = vmatprep.subr.bf16.mxu0 0
    %1460 = vmatpush1.bf16.xpose.msra.mxu0 0
    %1461 = vmatprep.subr.bf16.mxu0 0
    %1462 = vmatpush1.bf16.xpose.msra.mxu0 0
    %1463 = vmatprep.subr.bf16.mxu0 0
    %1464 = vmatpush1.bf16.xpose.msra.mxu0 0
    %1465 = vmatprep.subr.bf16.mxu0 0
    %1466 = vmatpush1.bf16.xpose.msra.mxu0 0
    %1467 = vmatprep.subr.bf16.mxu0 0
    %1468 = vmatpush1.bf16.xpose.msra.mxu0 0
    %1469 = vmatprep.subr.bf16.mxu0 0
    %1470 = vmatpush1.bf16.xpose.msra.mxu0 0
    %1471 = vmatprep.subr.bf16.mxu0 0
    %1472 = vmatpush1.bf16.xpose.msra.mxu0 0
    %1473 = vmatprep.subr.bf16.mxu0 0
    %1474 = vmatpush1.bf16.xpose.msra.mxu0 0
    %1475 = vmatprep.subr.bf16.mxu0 0
    %1476 = vmatpush1.bf16.xpose.msra.mxu0 0
    %1477 = vmatprep.subr.bf16.mxu0 0
    %1478 = vmatpush1.bf16.xpose.msra.mxu0 0
    %1479 = vmatprep.subr.bf16.mxu0 0
    %1480 = vmatpush1.bf16.xpose.msra.mxu0 0
    %1481 = vmatprep.subr.bf16.mxu0 0
    %1482 = vmatpush1.bf16.xpose.msra.mxu0 0
    %1483 = vmatprep.subr.bf16.mxu0 0
    %1484 = vmatpush1.bf16.xpose.msra.mxu0 0
    %1485 = vmatprep.subr.bf16.mxu0 0
    %1486 = vmatpush1.bf16.xpose.msra.mxu0 0
    %1487 = vmatprep.mubr.bf16.mxu0 0
    %1488 = vmatmul.mubr.bf16.gmra.mrb[0].mxu0 %v1450
    %v1489 = vpop.f32.mrb[0].mxu0
    %v1490 = vadd.f32 0.0, %v1489
    %v1491 = vpop.f32.mrb[0].mxu0
    %v1492 = vpop.f32.mrb[0].mxu0
    %v1493 = vpop.f32.mrb[0].mxu0
    %1494 = vdwg.mxu0
    %v1496 = vsel %vm1218, %v1192, 0
    %v1499 = vsel %vm1218, %v1216, 0
    %1501 = vmatprep.subr.bf16.mxu0 0
    %1502 = vmatpush1.bf16.xpose.msra.mxu0 %v1499
    %1503 = vmatprep.subr.bf16.mxu0 0
    %1504 = vmatpush1.bf16.xpose.msra.mxu0 0
    %1505 = vmatprep.subr.bf16.mxu0 0
    %1506 = vmatpush1.bf16.xpose.msra.mxu0 0
    %1507 = vmatprep.subr.bf16.mxu0 0
    %1508 = vmatpush1.bf16.xpose.msra.mxu0 0
    %1509 = vmatprep.subr.bf16.mxu0 0
    %1510 = vmatpush1.bf16.xpose.msra.mxu0 0
    %1511 = vmatprep.subr.bf16.mxu0 0
    %1512 = vmatpush1.bf16.xpose.msra.mxu0 0
    %1513 = vmatprep.subr.bf16.mxu0 0
    %1514 = vmatpush1.bf16.xpose.msra.mxu0 0
    %1515 = vmatprep.subr.bf16.mxu0 0
    %1516 = vmatpush1.bf16.xpose.msra.mxu0 0
    %1517 = vmatprep.subr.bf16.mxu0 0
    %1518 = vmatpush1.bf16.xpose.msra.mxu0 0
    %1519 = vmatprep.subr.bf16.mxu0 0
    %1520 = vmatpush1.bf16.xpose.msra.mxu0 0
    %1521 = vmatprep.subr.bf16.mxu0 0
    %1522 = vmatpush1.bf16.xpose.msra.mxu0 0
    %1523 = vmatprep.subr.bf16.mxu0 0
    %1524 = vmatpush1.bf16.xpose.msra.mxu0 0
    %1525 = vmatprep.subr.bf16.mxu0 0
    %1526 = vmatpush1.bf16.xpose.msra.mxu0 0
    %1527 = vmatprep.subr.bf16.mxu0 0
    %1528 = vmatpush1.bf16.xpose.msra.mxu0 0
    %1529 = vmatprep.subr.bf16.mxu0 0
    %1530 = vmatpush1.bf16.xpose.msra.mxu0 0
    %1531 = vmatprep.subr.bf16.mxu0 0
    %1532 = vmatpush1.bf16.xpose.msra.mxu0 0
    %1533 = vmatprep.mubr.bf16.mxu0 0
    %1534 = vmatmul.mubr.bf16.gmra.mrb[0].mxu0 %v1496
    %v1535 = vpop.f32.mrb[0].mxu0
    %v1536 = vadd.f32 0.0, %v1535
    %v1537 = vpop.f32.mrb[0].mxu0
    %v1538 = vpop.f32.mrb[0].mxu0
    %v1539 = vpop.f32.mrb[0].mxu0
    %1540 = vdwg.mxu0
    %v1542 = vsel %vm1218, %v1193, 0
    %v1545 = vsel %vm1218, %v1217, 0
    %1547 = vmatprep.subr.bf16.mxu0 0
    %1548 = vmatpush1.bf16.xpose.msra.mxu0 %v1545
    %1549 = vmatprep.subr.bf16.mxu0 0
    %1550 = vmatpush1.bf16.xpose.msra.mxu0 0
    %1551 = vmatprep.subr.bf16.mxu0 0
    %1552 = vmatpush1.bf16.xpose.msra.mxu0 0
    %1553 = vmatprep.subr.bf16.mxu0 0
    %1554 = vmatpush1.bf16.xpose.msra.mxu0 0
    %1555 = vmatprep.subr.bf16.mxu0 0
    %1556 = vmatpush1.bf16.xpose.msra.mxu0 0
    %1557 = vmatprep.subr.bf16.mxu0 0
    %1558 = vmatpush1.bf16.xpose.msra.mxu0 0
    %1559 = vmatprep.subr.bf16.mxu0 0
    %1560 = vmatpush1.bf16.xpose.msra.mxu0 0
    %1561 = vmatprep.subr.bf16.mxu0 0
    %1562 = vmatpush1.bf16.xpose.msra.mxu0 0
    %1563 = vmatprep.subr.bf16.mxu0 0
    %1564 = vmatpush1.bf16.xpose.msra.mxu0 0
    %1565 = vmatprep.subr.bf16.mxu0 0
    %1566 = vmatpush1.bf16.xpose.msra.mxu0 0
    %1567 = vmatprep.subr.bf16.mxu0 0
    %1568 = vmatpush1.bf16.xpose.msra.mxu0 0
    %1569 = vmatprep.subr.bf16.mxu0 0
    %1570 = vmatpush1.bf16.xpose.msra.mxu0 0
    %1571 = vmatprep.subr.bf16.mxu0 0
    %1572 = vmatpush1.bf16.xpose.msra.mxu0 0
    %1573 = vmatprep.subr.bf16.mxu0 0
    %1574 = vmatpush1.bf16.xpose.msra.mxu0 0
    %1575 = vmatprep.subr.bf16.mxu0 0
    %1576 = vmatpush1.bf16.xpose.msra.mxu0 0
    %1577 = vmatprep.subr.bf16.mxu0 0
    %1578 = vmatpush1.bf16.xpose.msra.mxu0 0
    %1579 = vmatprep.mubr.bf16.mxu0 0
    %1580 = vmatmul.mubr.bf16.gmra.mrb[0].mxu0 %v1542
    %v1581 = vpop.f32.mrb[0].mxu0
    %v1582 = vadd.f32 0.0, %v1581
    %v1583 = vpop.f32.mrb[0].mxu0
    %v1584 = vpop.f32.mrb[0].mxu0
    %v1585 = vpop.f32.mrb[0].mxu0
    %1586 = vdwg.mxu0
    %1587 = vxpose.xlu0.b32.start [1/16] %v1260, 128
    %1588 = vxpose.xlu0.b32.cont [2/16] 0.0, 128
    %1589 = vxpose.xlu0.b32.cont [3/16] 0.0, 128
    %1590 = vxpose.xlu0.b32.cont [4/16] 0.0, 128
    %1591 = vxpose.xlu0.b32.cont [5/16] 0.0, 128
    %1592 = vxpose.xlu0.b32.cont [6/16] 0.0, 128
    %1593 = vxpose.xlu0.b32.cont [7/16] 0.0, 128
    %1594 = vxpose.xlu0.b32.cont [8/16] 0.0, 128
    %1595 = vxpose.xlu0.b32.cont [9/16] 0.0, 128
    %1596 = vxpose.xlu0.b32.cont [10/16] 0.0, 128
    %1597 = vxpose.xlu0.b32.cont [11/16] 0.0, 128
    %1598 = vxpose.xlu0.b32.cont [12/16] 0.0, 128
    %1599 = vxpose.xlu0.b32.cont [13/16] 0.0, 128
    %1600 = vxpose.xlu0.b32.cont [14/16] 0.0, 128
    %1601 = vxpose.xlu0.b32.cont [15/16] 0.0, 128
    %1602 = vxpose.xlu0.b32.end [16/16] 0.0, 128
    %v1603 = vpop.trf.xlu0
    %v1604 = vpop.trf.xlu0
    %v1605 = vpop.trf.xlu0
    %v1606 = vpop.trf.xlu0
    %v1607 = vpop.trf.xlu0
    %v1608 = vpop.trf.xlu0
    %v1609 = vpop.trf.xlu0
    %v1610 = vpop.trf.xlu0
    %v1611 = vpop.trf.xlu0
    %v1612 = vpop.trf.xlu0
    %v1613 = vpop.trf.xlu0
    %v1614 = vpop.trf.xlu0
    %v1615 = vpop.trf.xlu0
    %v1616 = vpop.trf.xlu0
    %v1617 = vpop.trf.xlu0
    %v1618 = vpop.trf.xlu0
    %1619 = vxpose.xlu0.b32.start [1/16] %v1306, 128
    %1620 = vxpose.xlu0.b32.cont [2/16] 0.0, 128
    %1621 = vxpose.xlu0.b32.cont [3/16] 0.0, 128
    %1622 = vxpose.xlu0.b32.cont [4/16] 0.0, 128
    %1623 = vxpose.xlu0.b32.cont [5/16] 0.0, 128
    %1624 = vxpose.xlu0.b32.cont [6/16] 0.0, 128
    %1625 = vxpose.xlu0.b32.cont [7/16] 0.0, 128
    %1626 = vxpose.xlu0.b32.cont [8/16] 0.0, 128
    %1627 = vxpose.xlu0.b32.cont [9/16] 0.0, 128
    %1628 = vxpose.xlu0.b32.cont [10/16] 0.0, 128
    %1629 = vxpose.xlu0.b32.cont [11/16] 0.0, 128
    %1630 = vxpose.xlu0.b32.cont [12/16] 0.0, 128
    %1631 = vxpose.xlu0.b32.cont [13/16] 0.0, 128
    %1632 = vxpose.xlu0.b32.cont [14/16] 0.0, 128
    %1633 = vxpose.xlu0.b32.cont [15/16] 0.0, 128
    %1634 = vxpose.xlu0.b32.end [16/16] 0.0, 128
    %v1635 = vpop.trf.xlu0
    %v1636 = vpop.trf.xlu0
    %v1637 = vpop.trf.xlu0
    %v1638 = vpop.trf.xlu0
    %v1639 = vpop.trf.xlu0
    %v1640 = vpop.trf.xlu0
    %v1641 = vpop.trf.xlu0
    %v1642 = vpop.trf.xlu0
    %v1643 = vpop.trf.xlu0
    %v1644 = vpop.trf.xlu0
    %v1645 = vpop.trf.xlu0
    %v1646 = vpop.trf.xlu0
    %v1647 = vpop.trf.xlu0
    %v1648 = vpop.trf.xlu0
    %v1649 = vpop.trf.xlu0
    %v1650 = vpop.trf.xlu0
    %1651 = vxpose.xlu0.b32.start [1/16] %v1352, 128
    %1652 = vxpose.xlu0.b32.cont [2/16] 0.0, 128
    %1653 = vxpose.xlu0.b32.cont [3/16] 0.0, 128
    %1654 = vxpose.xlu0.b32.cont [4/16] 0.0, 128
    %1655 = vxpose.xlu0.b32.cont [5/16] 0.0, 128
    %1656 = vxpose.xlu0.b32.cont [6/16] 0.0, 128
    %1657 = vxpose.xlu0.b32.cont [7/16] 0.0, 128
    %1658 = vxpose.xlu0.b32.cont [8/16] 0.0, 128
    %1659 = vxpose.xlu0.b32.cont [9/16] 0.0, 128
    %1660 = vxpose.xlu0.b32.cont [10/16] 0.0, 128
    %1661 = vxpose.xlu0.b32.cont [11/16] 0.0, 128
    %1662 = vxpose.xlu0.b32.cont [12/16] 0.0, 128
    %1663 = vxpose.xlu0.b32.cont [13/16] 0.0, 128
    %1664 = vxpose.xlu0.b32.cont [14/16] 0.0, 128
    %1665 = vxpose.xlu0.b32.cont [15/16] 0.0, 128
    %1666 = vxpose.xlu0.b32.end [16/16] 0.0, 128
    %v1667 = vpop.trf.xlu0
    %v1668 = vpop.trf.xlu0
    %v1669 = vpop.trf.xlu0
    %v1670 = vpop.trf.xlu0
    %v1671 = vpop.trf.xlu0
    %v1672 = vpop.trf.xlu0
    %v1673 = vpop.trf.xlu0
    %v1674 = vpop.trf.xlu0
    %v1675 = vpop.trf.xlu0
    %v1676 = vpop.trf.xlu0
    %v1677 = vpop.trf.xlu0
    %v1678 = vpop.trf.xlu0
    %v1679 = vpop.trf.xlu0
    %v1680 = vpop.trf.xlu0
    %v1681 = vpop.trf.xlu0
    %v1682 = vpop.trf.xlu0
    %1683 = vxpose.xlu0.b32.start [1/16] %v1398, 128
    %1684 = vxpose.xlu0.b32.cont [2/16] 0.0, 128
    %1685 = vxpose.xlu0.b32.cont [3/16] 0.0, 128
    %1686 = vxpose.xlu0.b32.cont [4/16] 0.0, 128
    %1687 = vxpose.xlu0.b32.cont [5/16] 0.0, 128
    %1688 = vxpose.xlu0.b32.cont [6/16] 0.0, 128
    %1689 = vxpose.xlu0.b32.cont [7/16] 0.0, 128
    %1690 = vxpose.xlu0.b32.cont [8/16] 0.0, 128
    %1691 = vxpose.xlu0.b32.cont [9/16] 0.0, 128
    %1692 = vxpose.xlu0.b32.cont [10/16] 0.0, 128
    %1693 = vxpose.xlu0.b32.cont [11/16] 0.0, 128
    %1694 = vxpose.xlu0.b32.cont [12/16] 0.0, 128
    %1695 = vxpose.xlu0.b32.cont [13/16] 0.0, 128
    %1696 = vxpose.xlu0.b32.cont [14/16] 0.0, 128
    %1697 = vxpose.xlu0.b32.cont [15/16] 0.0, 128
    %1698 = vxpose.xlu0.b32.end [16/16] 0.0, 128
    %v1699 = vpop.trf.xlu0
    %v1700 = vpop.trf.xlu0
    %v1701 = vpop.trf.xlu0
    %v1702 = vpop.trf.xlu0
    %v1703 = vpop.trf.xlu0
    %v1704 = vpop.trf.xlu0
    %v1705 = vpop.trf.xlu0
    %v1706 = vpop.trf.xlu0
    %v1707 = vpop.trf.xlu0
    %v1708 = vpop.trf.xlu0
    %v1709 = vpop.trf.xlu0
    %v1710 = vpop.trf.xlu0
    %v1711 = vpop.trf.xlu0
    %v1712 = vpop.trf.xlu0
    %v1713 = vpop.trf.xlu0
    %v1714 = vpop.trf.xlu0
    %1715 = vxpose.xlu0.b32.start [1/16] %v1444, 128
    %1716 = vxpose.xlu0.b32.cont [2/16] 0.0, 128
    %1717 = vxpose.xlu0.b32.cont [3/16] 0.0, 128
    %1718 = vxpose.xlu0.b32.cont [4/16] 0.0, 128
    %1719 = vxpose.xlu0.b32.cont [5/16] 0.0, 128
    %1720 = vxpose.xlu0.b32.cont [6/16] 0.0, 128
    %1721 = vxpose.xlu0.b32.cont [7/16] 0.0, 128
    %1722 = vxpose.xlu0.b32.cont [8/16] 0.0, 128
    %1723 = vxpose.xlu0.b32.cont [9/16] 0.0, 128
    %1724 = vxpose.xlu0.b32.cont [10/16] 0.0, 128
    %1725 = vxpose.xlu0.b32.cont [11/16] 0.0, 128
    %1726 = vxpose.xlu0.b32.cont [12/16] 0.0, 128
    %1727 = vxpose.xlu0.b32.cont [13/16] 0.0, 128
    %1728 = vxpose.xlu0.b32.cont [14/16] 0.0, 128
    %1729 = vxpose.xlu0.b32.cont [15/16] 0.0, 128
    %1730 = vxpose.xlu0.b32.end [16/16] 0.0, 128
    %v1731 = vpop.trf.xlu0
    %v1732 = vpop.trf.xlu0
    %v1733 = vpop.trf.xlu0
    %v1734 = vpop.trf.xlu0
    %v1735 = vpop.trf.xlu0
    %v1736 = vpop.trf.xlu0
    %v1737 = vpop.trf.xlu0
    %v1738 = vpop.trf.xlu0
    %v1739 = vpop.trf.xlu0
    %v1740 = vpop.trf.xlu0
    %v1741 = vpop.trf.xlu0
    %v1742 = vpop.trf.xlu0
    %v1743 = vpop.trf.xlu0
    %v1744 = vpop.trf.xlu0
    %v1745 = vpop.trf.xlu0
    %v1746 = vpop.trf.xlu0
    %1747 = vxpose.xlu0.b32.start [1/16] %v1490, 128
    %1748 = vxpose.xlu0.b32.cont [2/16] 0.0, 128
    %1749 = vxpose.xlu0.b32.cont [3/16] 0.0, 128
    %1750 = vxpose.xlu0.b32.cont [4/16] 0.0, 128
    %1751 = vxpose.xlu0.b32.cont [5/16] 0.0, 128
    %1752 = vxpose.xlu0.b32.cont [6/16] 0.0, 128
    %1753 = vxpose.xlu0.b32.cont [7/16] 0.0, 128
    %1754 = vxpose.xlu0.b32.cont [8/16] 0.0, 128
    %1755 = vxpose.xlu0.b32.cont [9/16] 0.0, 128
    %1756 = vxpose.xlu0.b32.cont [10/16] 0.0, 128
    %1757 = vxpose.xlu0.b32.cont [11/16] 0.0, 128
    %1758 = vxpose.xlu0.b32.cont [12/16] 0.0, 128
    %1759 = vxpose.xlu0.b32.cont [13/16] 0.0, 128
    %1760 = vxpose.xlu0.b32.cont [14/16] 0.0, 128
    %1761 = vxpose.xlu0.b32.cont [15/16] 0.0, 128
    %1762 = vxpose.xlu0.b32.end [16/16] 0.0, 128
    %v1763 = vpop.trf.xlu0
    %v1764 = vpop.trf.xlu0
    %v1765 = vpop.trf.xlu0
    %v1766 = vpop.trf.xlu0
    %v1767 = vpop.trf.xlu0
    %v1768 = vpop.trf.xlu0
    %v1769 = vpop.trf.xlu0
    %v1770 = vpop.trf.xlu0
    %v1771 = vpop.trf.xlu0
    %v1772 = vpop.trf.xlu0
    %v1773 = vpop.trf.xlu0
    %v1774 = vpop.trf.xlu0
    %v1775 = vpop.trf.xlu0
    %v1776 = vpop.trf.xlu0
    %v1777 = vpop.trf.xlu0
    %v1778 = vpop.trf.xlu0
    %1779 = vxpose.xlu0.b32.start [1/16] %v1536, 128
    %1780 = vxpose.xlu0.b32.cont [2/16] 0.0, 128
    %1781 = vxpose.xlu0.b32.cont [3/16] 0.0, 128
    %1782 = vxpose.xlu0.b32.cont [4/16] 0.0, 128
    %1783 = vxpose.xlu0.b32.cont [5/16] 0.0, 128
    %1784 = vxpose.xlu0.b32.cont [6/16] 0.0, 128
    %1785 = vxpose.xlu0.b32.cont [7/16] 0.0, 128
    %1786 = vxpose.xlu0.b32.cont [8/16] 0.0, 128
    %1787 = vxpose.xlu0.b32.cont [9/16] 0.0, 128
    %1788 = vxpose.xlu0.b32.cont [10/16] 0.0, 128
    %1789 = vxpose.xlu0.b32.cont [11/16] 0.0, 128
    %1790 = vxpose.xlu0.b32.cont [12/16] 0.0, 128
    %1791 = vxpose.xlu0.b32.cont [13/16] 0.0, 128
    %1792 = vxpose.xlu0.b32.cont [14/16] 0.0, 128
    %1793 = vxpose.xlu0.b32.cont [15/16] 0.0, 128
    %1794 = vxpose.xlu0.b32.end [16/16] 0.0, 128
    %v1795 = vpop.trf.xlu0
    %v1796 = vpop.trf.xlu0
    %v1797 = vpop.trf.xlu0
    %v1798 = vpop.trf.xlu0
    %v1799 = vpop.trf.xlu0
    %v1800 = vpop.trf.xlu0
    %v1801 = vpop.trf.xlu0
    %v1802 = vpop.trf.xlu0
    %v1803 = vpop.trf.xlu0
    %v1804 = vpop.trf.xlu0
    %v1805 = vpop.trf.xlu0
    %v1806 = vpop.trf.xlu0
    %v1807 = vpop.trf.xlu0
    %v1808 = vpop.trf.xlu0
    %v1809 = vpop.trf.xlu0
    %v1810 = vpop.trf.xlu0
    %1811 = vxpose.xlu0.b32.start [1/16] %v1582, 128
    %1812 = vxpose.xlu0.b32.cont [2/16] 0.0, 128
    %1813 = vxpose.xlu0.b32.cont [3/16] 0.0, 128
    %1814 = vxpose.xlu0.b32.cont [4/16] 0.0, 128
    %1815 = vxpose.xlu0.b32.cont [5/16] 0.0, 128
    %1816 = vxpose.xlu0.b32.cont [6/16] 0.0, 128
    %1817 = vxpose.xlu0.b32.cont [7/16] 0.0, 128
    %1818 = vxpose.xlu0.b32.cont [8/16] 0.0, 128
    %1819 = vxpose.xlu0.b32.cont [9/16] 0.0, 128
    %1820 = vxpose.xlu0.b32.cont [10/16] 0.0, 128
    %1821 = vxpose.xlu0.b32.cont [11/16] 0.0, 128
    %1822 = vxpose.xlu0.b32.cont [12/16] 0.0, 128
    %1823 = vxpose.xlu0.b32.cont [13/16] 0.0, 128
    %1824 = vxpose.xlu0.b32.cont [14/16] 0.0, 128
    %1825 = vxpose.xlu0.b32.cont [15/16] 0.0, 128
    %1826 = vxpose.xlu0.b32.end [16/16] 0.0, 128
    %v1827 = vpop.trf.xlu0
    %v1828 = vpop.trf.xlu0
    %v1829 = vpop.trf.xlu0
    %v1830 = vpop.trf.xlu0
    %v1831 = vpop.trf.xlu0
    %v1832 = vpop.trf.xlu0
    %v1833 = vpop.trf.xlu0
    %v1834 = vpop.trf.xlu0
    %v1835 = vpop.trf.xlu0
    %v1836 = vpop.trf.xlu0
    %v1837 = vpop.trf.xlu0
    %v1838 = vpop.trf.xlu0
    %v1839 = vpop.trf.xlu0
    %v1840 = vpop.trf.xlu0
    %v1841 = vpop.trf.xlu0
    %v1842 = vpop.trf.xlu0
    %v1843 = vcombine.low %v1603, %v1667
    %v1844 = vcombine.high %v1603, %v1667
    %v1846 = vunpack.c.l.s4 1983009808
    %v1847 = vunpack.c.0.s8 %v1846
    %v1848 = vlaneseq
    %v1849 = vshrl.u32 %v1848, 7
    %v1850 = vsub.s32 %v1847, %v1849
    %v1851 = vrot.slane %v1843, %v1850
    %v1853 = vunpack.c.l.s4 1983009808
    %v1854 = vunpack.c.0.s8 %v1853
    %v1855 = vlaneseq
    %v1856 = vshrl.u32 %v1855, 7
    %v1857 = vsub.s32 %v1854, %v1856
    %v1858 = vrot.slane %v1844, %v1857
    %v1859 = vcombine.low %v1635, %v1699
    %v1860 = vcombine.high %v1635, %v1699
    %v1862 = vunpack.c.l.s4 1983009808
    %v1863 = vunpack.c.0.s8 %v1862
    %v1864 = vlaneseq
    %v1865 = vshrl.u32 %v1864, 7
    %v1866 = vsub.s32 %v1863, %v1865
    %v1867 = vrot.slane %v1859, %v1866
    %v1869 = vunpack.c.l.s4 1983009808
    %v1870 = vunpack.c.0.s8 %v1869
    %v1871 = vlaneseq
    %v1872 = vshrl.u32 %v1871, 7
    %v1873 = vsub.s32 %v1870, %v1872
    %v1874 = vrot.slane %v1860, %v1873
    %v1875 = vcombine.low %v1731, %v1795
    %v1876 = vcombine.high %v1731, %v1795
    %v1878 = vunpack.c.l.s4 1983009808
    %v1879 = vunpack.c.0.s8 %v1878
    %v1880 = vlaneseq
    %v1881 = vshrl.u32 %v1880, 7
    %v1882 = vsub.s32 %v1879, %v1881
    %v1883 = vrot.slane %v1875, %v1882
    %v1885 = vunpack.c.l.s4 1983009808
    %v1886 = vunpack.c.0.s8 %v1885
    %v1887 = vlaneseq
    %v1888 = vshrl.u32 %v1887, 7
    %v1889 = vsub.s32 %v1886, %v1888
    %v1890 = vrot.slane %v1876, %v1889
    %v1891 = vcombine.low %v1763, %v1827
    %v1892 = vcombine.high %v1763, %v1827
    %v1894 = vunpack.c.l.s4 1983009808
    %v1895 = vunpack.c.0.s8 %v1894
    %v1896 = vlaneseq
    %v1897 = vshrl.u32 %v1896, 7
    %v1898 = vsub.s32 %v1895, %v1897
    %v1899 = vrot.slane %v1891, %v1898
    %v1901 = vunpack.c.l.s4 1983009808
    %v1902 = vunpack.c.0.s8 %v1901
    %v1903 = vlaneseq
    %v1904 = vshrl.u32 %v1903, 7
    %v1905 = vsub.s32 %v1902, %v1904
    %v1906 = vrot.slane %v1892, %v1905
    %v1907 = vcombine.low %v1851, %v1867
    %v1908 = vcombine.high %v1851, %v1867
    %v1910 = vunpack.c.l.s4 1934713408
    %v1911 = vunpack.c.0.s8 %v1910
    %v1912 = vlaneseq
    %v1913 = vshrl.u32 %v1912, 7
    %v1914 = vsub.s32 %v1911, %v1913
    %v1915 = vrot.slane %v1907, %v1914
    %v1917 = vunpack.c.l.s4 1934713408
    %v1918 = vunpack.c.0.s8 %v1917
    %v1919 = vlaneseq
    %v1920 = vshrl.u32 %v1919, 7
    %v1921 = vsub.s32 %v1918, %v1920
    %v1922 = vrot.slane %v1908, %v1921
    %v1923 = vcombine.low %v1858, %v1874
    %v1924 = vcombine.high %v1858, %v1874
    %v1926 = vunpack.c.l.s4 1934713408
    %v1927 = vunpack.c.0.s8 %v1926
    %v1928 = vlaneseq
    %v1929 = vshrl.u32 %v1928, 7
    %v1930 = vsub.s32 %v1927, %v1929
    %v1931 = vrot.slane %v1923, %v1930
    %v1933 = vunpack.c.l.s4 1934713408
    %v1934 = vunpack.c.0.s8 %v1933
    %v1935 = vlaneseq
    %v1936 = vshrl.u32 %v1935, 7
    %v1937 = vsub.s32 %v1934, %v1936
    %v1938 = vrot.slane %v1924, %v1937
    %v1939 = vcombine.low %v1883, %v1899
    %v1940 = vcombine.high %v1883, %v1899
    %v1942 = vunpack.c.l.s4 1934713408
    %v1943 = vunpack.c.0.s8 %v1942
    %v1944 = vlaneseq
    %v1945 = vshrl.u32 %v1944, 7
    %v1946 = vsub.s32 %v1943, %v1945
    %v1947 = vrot.slane %v1939, %v1946
    %v1949 = vunpack.c.l.s4 1934713408
    %v1950 = vunpack.c.0.s8 %v1949
    %v1951 = vlaneseq
    %v1952 = vshrl.u32 %v1951, 7
    %v1953 = vsub.s32 %v1950, %v1952
    %v1954 = vrot.slane %v1940, %v1953
    %v1955 = vcombine.low %v1890, %v1906
    %v1956 = vcombine.high %v1890, %v1906
    %v1958 = vunpack.c.l.s4 1934713408
    %v1959 = vunpack.c.0.s8 %v1958
    %v1960 = vlaneseq
    %v1961 = vshrl.u32 %v1960, 7
    %v1962 = vsub.s32 %v1959, %v1961
    %v1963 = vrot.slane %v1955, %v1962
    %v1965 = vunpack.c.l.s4 1934713408
    %v1966 = vunpack.c.0.s8 %v1965
    %v1967 = vlaneseq
    %v1968 = vshrl.u32 %v1967, 7
    %v1969 = vsub.s32 %v1966, %v1968
    %v1970 = vrot.slane %v1956, %v1969
    %v1971 = vcombine.low %v1915, %v1947
    %v1972 = vcombine.high %v1915, %v1947
    %v1973 = vcombine.low %v1922, %v1954
    %v1974 = vcombine.high %v1922, %v1954
    %v1975 = vcombine.low %v1931, %v1963
    %v1976 = vcombine.high %v1931, %v1963
    %v1977 = vcombine.low %v1938, %v1970
    %v1978 = vcombine.high %v1938, %v1970
    %v1980 = vsel %vm1218, %v1194, 0
    %v1983 = vsel %vm1218, %v1202, 0
    %1985 = vmatprep.subr.bf16.mxu0 0
    %1986 = vmatpush1.bf16.xpose.msra.mxu0 %v1983
    %1987 = vmatprep.subr.bf16.mxu0 0
    %1988 = vmatpush1.bf16.xpose.msra.mxu0 0
    %1989 = vmatprep.subr.bf16.mxu0 0
    %1990 = vmatpush1.bf16.xpose.msra.mxu0 0
    %1991 = vmatprep.subr.bf16.mxu0 0
    %1992 = vmatpush1.bf16.xpose.msra.mxu0 0
    %1993 = vmatprep.subr.bf16.mxu0 0
    %1994 = vmatpush1.bf16.xpose.msra.mxu0 0
    %1995 = vmatprep.subr.bf16.mxu0 0
    %1996 = vmatpush1.bf16.xpose.msra.mxu0 0
    %1997 = vmatprep.subr.bf16.mxu0 0
    %1998 = vmatpush1.bf16.xpose.msra.mxu0 0
    %1999 = vmatprep.subr.bf16.mxu0 0
    %2000 = vmatpush1.bf16.xpose.msra.mxu0 0
    %2001 = vmatprep.subr.bf16.mxu0 0
    %2002 = vmatpush1.bf16.xpose.msra.mxu0 0
    %2003 = vmatprep.subr.bf16.mxu0 0
    %2004 = vmatpush1.bf16.xpose.msra.mxu0 0
    %2005 = vmatprep.subr.bf16.mxu0 0
    %2006 = vmatpush1.bf16.xpose.msra.mxu0 0
    %2007 = vmatprep.subr.bf16.mxu0 0
    %2008 = vmatpush1.bf16.xpose.msra.mxu0 0
    %2009 = vmatprep.subr.bf16.mxu0 0
    %2010 = vmatpush1.bf16.xpose.msra.mxu0 0
    %2011 = vmatprep.subr.bf16.mxu0 0
    %2012 = vmatpush1.bf16.xpose.msra.mxu0 0
    %2013 = vmatprep.subr.bf16.mxu0 0
    %2014 = vmatpush1.bf16.xpose.msra.mxu0 0
    %2015 = vmatprep.subr.bf16.mxu0 0
    %2016 = vmatpush1.bf16.xpose.msra.mxu0 0
    %2017 = vmatprep.mubr.bf16.mxu0 0
    %2018 = vmatmul.mubr.bf16.gmra.mrb[0].mxu0 %v1980
    %v2019 = vpop.f32.mrb[0].mxu0
    %v2020 = vadd.f32 %v1971, %v2019
    %v2021 = vpop.f32.mrb[0].mxu0
    %v2022 = vpop.f32.mrb[0].mxu0
    %v2023 = vpop.f32.mrb[0].mxu0
    %2024 = vdwg.mxu0
    %v2026 = vsel %vm1218, %v1195, 0
    %v2029 = vsel %vm1218, %v1203, 0
    %2031 = vmatprep.subr.bf16.mxu0 0
    %2032 = vmatpush1.bf16.xpose.msra.mxu0 %v2029
    %2033 = vmatprep.subr.bf16.mxu0 0
    %2034 = vmatpush1.bf16.xpose.msra.mxu0 0
    %2035 = vmatprep.subr.bf16.mxu0 0
    %2036 = vmatpush1.bf16.xpose.msra.mxu0 0
    %2037 = vmatprep.subr.bf16.mxu0 0
    %2038 = vmatpush1.bf16.xpose.msra.mxu0 0
    %2039 = vmatprep.subr.bf16.mxu0 0
    %2040 = vmatpush1.bf16.xpose.msra.mxu0 0
    %2041 = vmatprep.subr.bf16.mxu0 0
    %2042 = vmatpush1.bf16.xpose.msra.mxu0 0
    %2043 = vmatprep.subr.bf16.mxu0 0
    %2044 = vmatpush1.bf16.xpose.msra.mxu0 0
    %2045 = vmatprep.subr.bf16.mxu0 0
    %2046 = vmatpush1.bf16.xpose.msra.mxu0 0
    %2047 = vmatprep.subr.bf16.mxu0 0
    %2048 = vmatpush1.bf16.xpose.msra.mxu0 0
    %2049 = vmatprep.subr.bf16.mxu0 0
    %2050 = vmatpush1.bf16.xpose.msra.mxu0 0
    %2051 = vmatprep.subr.bf16.mxu0 0
    %2052 = vmatpush1.bf16.xpose.msra.mxu0 0
    %2053 = vmatprep.subr.bf16.mxu0 0
    %2054 = vmatpush1.bf16.xpose.msra.mxu0 0
    %2055 = vmatprep.subr.bf16.mxu0 0
    %2056 = vmatpush1.bf16.xpose.msra.mxu0 0
    %2057 = vmatprep.subr.bf16.mxu0 0
    %2058 = vmatpush1.bf16.xpose.msra.mxu0 0
    %2059 = vmatprep.subr.bf16.mxu0 0
    %2060 = vmatpush1.bf16.xpose.msra.mxu0 0
    %2061 = vmatprep.subr.bf16.mxu0 0
    %2062 = vmatpush1.bf16.xpose.msra.mxu0 0
    %2063 = vmatprep.mubr.bf16.mxu0 0
    %2064 = vmatmul.mubr.bf16.gmra.mrb[0].mxu0 %v2026
    %v2065 = vpop.f32.mrb[0].mxu0
    %v2066 = vadd.f32 %v1972, %v2065
    %v2067 = vpop.f32.mrb[0].mxu0
    %v2068 = vpop.f32.mrb[0].mxu0
    %v2069 = vpop.f32.mrb[0].mxu0
    %2070 = vdwg.mxu0
    %v2072 = vsel %vm1218, %v1196, 0
    %v2075 = vsel %vm1218, %v1204, 0
    %2077 = vmatprep.subr.bf16.mxu0 0
    %2078 = vmatpush1.bf16.xpose.msra.mxu0 %v2075
    %2079 = vmatprep.subr.bf16.mxu0 0
    %2080 = vmatpush1.bf16.xpose.msra.mxu0 0
    %2081 = vmatprep.subr.bf16.mxu0 0
    %2082 = vmatpush1.bf16.xpose.msra.mxu0 0
    %2083 = vmatprep.subr.bf16.mxu0 0
    %2084 = vmatpush1.bf16.xpose.msra.mxu0 0
    %2085 = vmatprep.subr.bf16.mxu0 0
    %2086 = vmatpush1.bf16.xpose.msra.mxu0 0
    %2087 = vmatprep.subr.bf16.mxu0 0
    %2088 = vmatpush1.bf16.xpose.msra.mxu0 0
    %2089 = vmatprep.subr.bf16.mxu0 0
    %2090 = vmatpush1.bf16.xpose.msra.mxu0 0
    %2091 = vmatprep.subr.bf16.mxu0 0
    %2092 = vmatpush1.bf16.xpose.msra.mxu0 0
    %2093 = vmatprep.subr.bf16.mxu0 0
    %2094 = vmatpush1.bf16.xpose.msra.mxu0 0
    %2095 = vmatprep.subr.bf16.mxu0 0
    %2096 = vmatpush1.bf16.xpose.msra.mxu0 0
    %2097 = vmatprep.subr.bf16.mxu0 0
    %2098 = vmatpush1.bf16.xpose.msra.mxu0 0
    %2099 = vmatprep.subr.bf16.mxu0 0
    %2100 = vmatpush1.bf16.xpose.msra.mxu0 0
    %2101 = vmatprep.subr.bf16.mxu0 0
    %2102 = vmatpush1.bf16.xpose.msra.mxu0 0
    %2103 = vmatprep.subr.bf16.mxu0 0
    %2104 = vmatpush1.bf16.xpose.msra.mxu0 0
    %2105 = vmatprep.subr.bf16.mxu0 0
    %2106 = vmatpush1.bf16.xpose.msra.mxu0 0
    %2107 = vmatprep.subr.bf16.mxu0 0
    %2108 = vmatpush1.bf16.xpose.msra.mxu0 0
    %2109 = vmatprep.mubr.bf16.mxu0 0
    %2110 = vmatmul.mubr.bf16.gmra.mrb[0].mxu0 %v2072
    %v2111 = vpop.f32.mrb[0].mxu0
    %v2112 = vadd.f32 %v1973, %v2111
    %v2113 = vpop.f32.mrb[0].mxu0
    %v2114 = vpop.f32.mrb[0].mxu0
    %v2115 = vpop.f32.mrb[0].mxu0
    %2116 = vdwg.mxu0
    %v2118 = vsel %vm1218, %v1197, 0
    %v2121 = vsel %vm1218, %v1205, 0
    %2123 = vmatprep.subr.bf16.mxu0 0
    %2124 = vmatpush1.bf16.xpose.msra.mxu0 %v2121
    %2125 = vmatprep.subr.bf16.mxu0 0
    %2126 = vmatpush1.bf16.xpose.msra.mxu0 0
    %2127 = vmatprep.subr.bf16.mxu0 0
    %2128 = vmatpush1.bf16.xpose.msra.mxu0 0
    %2129 = vmatprep.subr.bf16.mxu0 0
    %2130 = vmatpush1.bf16.xpose.msra.mxu0 0
    %2131 = vmatprep.subr.bf16.mxu0 0
    %2132 = vmatpush1.bf16.xpose.msra.mxu0 0
    %2133 = vmatprep.subr.bf16.mxu0 0
    %2134 = vmatpush1.bf16.xpose.msra.mxu0 0
    %2135 = vmatprep.subr.bf16.mxu0 0
    %2136 = vmatpush1.bf16.xpose.msra.mxu0 0
    %2137 = vmatprep.subr.bf16.mxu0 0
    %2138 = vmatpush1.bf16.xpose.msra.mxu0 0
    %2139 = vmatprep.subr.bf16.mxu0 0
    %2140 = vmatpush1.bf16.xpose.msra.mxu0 0
    %2141 = vmatprep.subr.bf16.mxu0 0
    %2142 = vmatpush1.bf16.xpose.msra.mxu0 0
    %2143 = vmatprep.subr.bf16.mxu0 0
    %2144 = vmatpush1.bf16.xpose.msra.mxu0 0
    %2145 = vmatprep.subr.bf16.mxu0 0
    %2146 = vmatpush1.bf16.xpose.msra.mxu0 0
    %2147 = vmatprep.subr.bf16.mxu0 0
    %2148 = vmatpush1.bf16.xpose.msra.mxu0 0
    %2149 = vmatprep.subr.bf16.mxu0 0
    %2150 = vmatpush1.bf16.xpose.msra.mxu0 0
    %2151 = vmatprep.subr.bf16.mxu0 0
    %2152 = vmatpush1.bf16.xpose.msra.mxu0 0
    %2153 = vmatprep.subr.bf16.mxu0 0
    %2154 = vmatpush1.bf16.xpose.msra.mxu0 0
    %2155 = vmatprep.mubr.bf16.mxu0 0
    %2156 = vmatmul.mubr.bf16.gmra.mrb[0].mxu0 %v2118
    %v2157 = vpop.f32.mrb[0].mxu0
    %v2158 = vadd.f32 %v1974, %v2157
    %v2159 = vpop.f32.mrb[0].mxu0
    %v2160 = vpop.f32.mrb[0].mxu0
    %v2161 = vpop.f32.mrb[0].mxu0
    %2162 = vdwg.mxu0
    %v2164 = vsel %vm1218, %v1198, 0
    %v2167 = vsel %vm1218, %v1206, 0
    %2169 = vmatprep.subr.bf16.mxu0 0
    %2170 = vmatpush1.bf16.xpose.msra.mxu0 %v2167
    %2171 = vmatprep.subr.bf16.mxu0 0
    %2172 = vmatpush1.bf16.xpose.msra.mxu0 0
    %2173 = vmatprep.subr.bf16.mxu0 0
    %2174 = vmatpush1.bf16.xpose.msra.mxu0 0
    %2175 = vmatprep.subr.bf16.mxu0 0
    %2176 = vmatpush1.bf16.xpose.msra.mxu0 0
    %2177 = vmatprep.subr.bf16.mxu0 0
    %2178 = vmatpush1.bf16.xpose.msra.mxu0 0
    %2179 = vmatprep.subr.bf16.mxu0 0
    %2180 = vmatpush1.bf16.xpose.msra.mxu0 0
    %2181 = vmatprep.subr.bf16.mxu0 0
    %2182 = vmatpush1.bf16.xpose.msra.mxu0 0
    %2183 = vmatprep.subr.bf16.mxu0 0
    %2184 = vmatpush1.bf16.xpose.msra.mxu0 0
    %2185 = vmatprep.subr.bf16.mxu0 0
    %2186 = vmatpush1.bf16.xpose.msra.mxu0 0
    %2187 = vmatprep.subr.bf16.mxu0 0
    %2188 = vmatpush1.bf16.xpose.msra.mxu0 0
    %2189 = vmatprep.subr.bf16.mxu0 0
    %2190 = vmatpush1.bf16.xpose.msra.mxu0 0
    %2191 = vmatprep.subr.bf16.mxu0 0
    %2192 = vmatpush1.bf16.xpose.msra.mxu0 0
    %2193 = vmatprep.subr.bf16.mxu0 0
    %2194 = vmatpush1.bf16.xpose.msra.mxu0 0
    %2195 = vmatprep.subr.bf16.mxu0 0
    %2196 = vmatpush1.bf16.xpose.msra.mxu0 0
    %2197 = vmatprep.subr.bf16.mxu0 0
    %2198 = vmatpush1.bf16.xpose.msra.mxu0 0
    %2199 = vmatprep.subr.bf16.mxu0 0
    %2200 = vmatpush1.bf16.xpose.msra.mxu0 0
    %2201 = vmatprep.mubr.bf16.mxu0 0
    %2202 = vmatmul.mubr.bf16.gmra.mrb[0].mxu0 %v2164
    %v2203 = vpop.f32.mrb[0].mxu0
    %v2204 = vadd.f32 %v1975, %v2203
    %v2205 = vpop.f32.mrb[0].mxu0
    %v2206 = vpop.f32.mrb[0].mxu0
    %v2207 = vpop.f32.mrb[0].mxu0
    %2208 = vdwg.mxu0
    %v2210 = vsel %vm1218, %v1199, 0
    %v2213 = vsel %vm1218, %v1207, 0
    %2215 = vmatprep.subr.bf16.mxu0 0
    %2216 = vmatpush1.bf16.xpose.msra.mxu0 %v2213
    %2217 = vmatprep.subr.bf16.mxu0 0
    %2218 = vmatpush1.bf16.xpose.msra.mxu0 0
    %2219 = vmatprep.subr.bf16.mxu0 0
    %2220 = vmatpush1.bf16.xpose.msra.mxu0 0
    %2221 = vmatprep.subr.bf16.mxu0 0
    %2222 = vmatpush1.bf16.xpose.msra.mxu0 0
    %2223 = vmatprep.subr.bf16.mxu0 0
    %2224 = vmatpush1.bf16.xpose.msra.mxu0 0
    %2225 = vmatprep.subr.bf16.mxu0 0
    %2226 = vmatpush1.bf16.xpose.msra.mxu0 0
    %2227 = vmatprep.subr.bf16.mxu0 0
    %2228 = vmatpush1.bf16.xpose.msra.mxu0 0
    %2229 = vmatprep.subr.bf16.mxu0 0
    %2230 = vmatpush1.bf16.xpose.msra.mxu0 0
    %2231 = vmatprep.subr.bf16.mxu0 0
    %2232 = vmatpush1.bf16.xpose.msra.mxu0 0
    %2233 = vmatprep.subr.bf16.mxu0 0
    %2234 = vmatpush1.bf16.xpose.msra.mxu0 0
    %2235 = vmatprep.subr.bf16.mxu0 0
    %2236 = vmatpush1.bf16.xpose.msra.mxu0 0
    %2237 = vmatprep.subr.bf16.mxu0 0
    %2238 = vmatpush1.bf16.xpose.msra.mxu0 0
    %2239 = vmatprep.subr.bf16.mxu0 0
    %2240 = vmatpush1.bf16.xpose.msra.mxu0 0
    %2241 = vmatprep.subr.bf16.mxu0 0
    %2242 = vmatpush1.bf16.xpose.msra.mxu0 0
    %2243 = vmatprep.subr.bf16.mxu0 0
    %2244 = vmatpush1.bf16.xpose.msra.mxu0 0
    %2245 = vmatprep.subr.bf16.mxu0 0
    %2246 = vmatpush1.bf16.xpose.msra.mxu0 0
    %2247 = vmatprep.mubr.bf16.mxu0 0
    %2248 = vmatmul.mubr.bf16.gmra.mrb[0].mxu0 %v2210
    %v2249 = vpop.f32.mrb[0].mxu0
    %v2250 = vadd.f32 %v1976, %v2249
    %v2251 = vpop.f32.mrb[0].mxu0
    %v2252 = vpop.f32.mrb[0].mxu0
    %v2253 = vpop.f32.mrb[0].mxu0
    %2254 = vdwg.mxu0
    %v2256 = vsel %vm1218, %v1200, 0
    %v2259 = vsel %vm1218, %v1208, 0
    %2261 = vmatprep.subr.bf16.mxu0 0
    %2262 = vmatpush1.bf16.xpose.msra.mxu0 %v2259
    %2263 = vmatprep.subr.bf16.mxu0 0
    %2264 = vmatpush1.bf16.xpose.msra.mxu0 0
    %2265 = vmatprep.subr.bf16.mxu0 0
    %2266 = vmatpush1.bf16.xpose.msra.mxu0 0
    %2267 = vmatprep.subr.bf16.mxu0 0
    %2268 = vmatpush1.bf16.xpose.msra.mxu0 0
    %2269 = vmatprep.subr.bf16.mxu0 0
    %2270 = vmatpush1.bf16.xpose.msra.mxu0 0
    %2271 = vmatprep.subr.bf16.mxu0 0
    %2272 = vmatpush1.bf16.xpose.msra.mxu0 0
    %2273 = vmatprep.subr.bf16.mxu0 0
    %2274 = vmatpush1.bf16.xpose.msra.mxu0 0
    %2275 = vmatprep.subr.bf16.mxu0 0
    %2276 = vmatpush1.bf16.xpose.msra.mxu0 0
    %2277 = vmatprep.subr.bf16.mxu0 0
    %2278 = vmatpush1.bf16.xpose.msra.mxu0 0
    %2279 = vmatprep.subr.bf16.mxu0 0
    %2280 = vmatpush1.bf16.xpose.msra.mxu0 0
    %2281 = vmatprep.subr.bf16.mxu0 0
    %2282 = vmatpush1.bf16.xpose.msra.mxu0 0
    %2283 = vmatprep.subr.bf16.mxu0 0
    %2284 = vmatpush1.bf16.xpose.msra.mxu0 0
    %2285 = vmatprep.subr.bf16.mxu0 0
    %2286 = vmatpush1.bf16.xpose.msra.mxu0 0
    %2287 = vmatprep.subr.bf16.mxu0 0
    %2288 = vmatpush1.bf16.xpose.msra.mxu0 0
    %2289 = vmatprep.subr.bf16.mxu0 0
    %2290 = vmatpush1.bf16.xpose.msra.mxu0 0
    %2291 = vmatprep.subr.bf16.mxu0 0
    %2292 = vmatpush1.bf16.xpose.msra.mxu0 0
    %2293 = vmatprep.mubr.bf16.mxu0 0
    %2294 = vmatmul.mubr.bf16.gmra.mrb[0].mxu0 %v2256
    %v2295 = vpop.f32.mrb[0].mxu0
    %v2296 = vadd.f32 %v1977, %v2295
    %v2297 = vpop.f32.mrb[0].mxu0
    %v2298 = vpop.f32.mrb[0].mxu0
    %v2299 = vpop.f32.mrb[0].mxu0
    %2300 = vdwg.mxu0
    %v2302 = vsel %vm1218, %v1201, 0
    %v2305 = vsel %vm1218, %v1209, 0
    %2307 = vmatprep.subr.bf16.mxu0 0
    %2308 = vmatpush1.bf16.xpose.msra.mxu0 %v2305
    %2309 = vmatprep.subr.bf16.mxu0 0
    %2310 = vmatpush1.bf16.xpose.msra.mxu0 0
    %2311 = vmatprep.subr.bf16.mxu0 0
    %2312 = vmatpush1.bf16.xpose.msra.mxu0 0
    %2313 = vmatprep.subr.bf16.mxu0 0
    %2314 = vmatpush1.bf16.xpose.msra.mxu0 0
    %2315 = vmatprep.subr.bf16.mxu0 0
    %2316 = vmatpush1.bf16.xpose.msra.mxu0 0
    %2317 = vmatprep.subr.bf16.mxu0 0
    %2318 = vmatpush1.bf16.xpose.msra.mxu0 0
    %2319 = vmatprep.subr.bf16.mxu0 0
    %2320 = vmatpush1.bf16.xpose.msra.mxu0 0
    %2321 = vmatprep.subr.bf16.mxu0 0
    %2322 = vmatpush1.bf16.xpose.msra.mxu0 0
    %2323 = vmatprep.subr.bf16.mxu0 0
    %2324 = vmatpush1.bf16.xpose.msra.mxu0 0
    %2325 = vmatprep.subr.bf16.mxu0 0
    %2326 = vmatpush1.bf16.xpose.msra.mxu0 0
    %2327 = vmatprep.subr.bf16.mxu0 0
    %2328 = vmatpush1.bf16.xpose.msra.mxu0 0
    %2329 = vmatprep.subr.bf16.mxu0 0
    %2330 = vmatpush1.bf16.xpose.msra.mxu0 0
    %2331 = vmatprep.subr.bf16.mxu0 0
    %2332 = vmatpush1.bf16.xpose.msra.mxu0 0
    %2333 = vmatprep.subr.bf16.mxu0 0
    %2334 = vmatpush1.bf16.xpose.msra.mxu0 0
    %2335 = vmatprep.subr.bf16.mxu0 0
    %2336 = vmatpush1.bf16.xpose.msra.mxu0 0
    %2337 = vmatprep.subr.bf16.mxu0 0
    %2338 = vmatpush1.bf16.xpose.msra.mxu0 0
    %2339 = vmatprep.mubr.bf16.mxu0 0
    %2340 = vmatmul.mubr.bf16.gmra.mrb[0].mxu0 %v2302
    %v2341 = vpop.f32.mrb[0].mxu0
    %v2342 = vadd.f32 %v1978, %v2341
    %v2343 = vpop.f32.mrb[0].mxu0
    %v2344 = vpop.f32.mrb[0].mxu0
    %v2345 = vpop.f32.mrb[0].mxu0
    %2346 = vdwg.mxu0
    %v2349 = vunpack.c.l.s4 1966171168
    %v2350 = vunpack.c.0.s8 %v2349
    %v2351 = vlaneseq
    %v2352 = vshrl.u32 %v2351, 7
    %v2353 = vsub.s32 %v2350, %v2352
    %v2354 = vrot.slane %v95, %v2353
    %v2355 = vcombine.high %v2354, %v2354
    %v2357 = vunpack.c.l.s4 1966171168
    %v2358 = vunpack.c.0.s8 %v2357
    %v2359 = vlaneseq
    %v2360 = vshrl.u32 %v2359, 7
    %v2361 = vsub.s32 %v2358, %v2360
    %v2362 = vrot.slane %v2354, %v2361
    %v2364 = vunpack.c.l.s4 1966171168
    %v2365 = vunpack.c.0.s8 %v2364
    %v2366 = vlaneseq
    %v2367 = vshrl.u32 %v2366, 7
    %v2368 = vsub.s32 %v2365, %v2367
    %v2369 = vrot.slane %v2355, %v2368
    %v2370 = vlaneseq
    %v2371 = vshrl.u32 %v2370, 7
    %v2372 = vsub.s32 0, %v2371
    %v2373 = vrot.slane %v2362, %v2372
    %v2374 = vlaneseq
    %v2375 = vshrl.u32 %v2374, 7
    %v2376 = vsub.s32 0, %v2375
    %v2377 = vrot.slane %v2369, %v2376
    %v2380 = vadd.f32 %v2020, %v2373
    %v2381 = vadd.f32 %v2066, %v2377
    %v2382 = vadd.f32 %v2112, %v2373
    %v2383 = vadd.f32 %v2158, %v2377
    %v2384 = vadd.f32 %v2204, %v2373
    %v2385 = vadd.f32 %v2250, %v2377
    %v2386 = vadd.f32 %v2296, %v2373
    %v2387 = vadd.f32 %v2342, %v2377
    %2388 = vst.msk [vmem:[#allocation11] sm:$0xff] %vm1218, %v2380
    %2389 = vst.msk [vmem:[#allocation11 + $0x8] sm:$0xff] %vm1218, %v2381
    %2390 = vst.msk [vmem:[#allocation11 + $0x10] sm:$0xff] %vm1218, %v2382
    %2391 = vst.msk [vmem:[#allocation11 + $0x18] sm:$0xff] %vm1218, %v2383
    %2392 = vst.msk [vmem:[#allocation11 + $0x20] sm:$0xff] %vm1218, %v2384
    %2393 = vst.msk [vmem:[#allocation11 + $0x28] sm:$0xff] %vm1218, %v2385
    %2394 = vst.msk [vmem:[#allocation11 + $0x30] sm:$0xff] %vm1218, %v2386
    %2395 = vst.msk [vmem:[#allocation11 + $0x38] sm:$0xff] %vm1218, %v2387
    %v2396 = vsel %vm1218, %v2380, -inf
    %2397 = vmax.xlane.f32.xlu0 %v2396
    %v2398 = vpop.xlane.xlu0 %2397
    %v2399 = vsel %vm1218, %v2381, -inf
    %2400 = vmax.xlane.f32.xlu0 %v2399
    %v2401 = vpop.xlane.xlu0 %2400
    %v2402 = vsel %vm1218, %v2382, -inf
    %2403 = vmax.xlane.f32.xlu0 %v2402
    %v2404 = vpop.xlane.xlu0 %2403
    %v2405 = vsel %vm1218, %v2383, -inf
    %2406 = vmax.xlane.f32.xlu0 %v2405
    %v2407 = vpop.xlane.xlu0 %2406
    %v2408 = vsel %vm1218, %v2384, -inf
    %2409 = vmax.xlane.f32.xlu0 %v2408
    %v2410 = vpop.xlane.xlu0 %2409
    %v2411 = vsel %vm1218, %v2385, -inf
    %2412 = vmax.xlane.f32.xlu0 %v2411
    %v2413 = vpop.xlane.xlu0 %2412
    %v2414 = vsel %vm1218, %v2386, -inf
    %2415 = vmax.xlane.f32.xlu0 %v2414
    %v2416 = vpop.xlane.xlu0 %2415
    %v2417 = vsel %vm1218, %v2387, -inf
    %2418 = vmax.xlane.f32.xlu0 %v2417
    %v2419 = vpop.xlane.xlu0 %2418
    %v2420 = vsub.f32 %v2380, %v2398
    %v2421 = vsub.f32 %v2381, %v2401
    %v2422 = vsub.f32 %v2382, %v2404
    %v2423 = vsub.f32 %v2383, %v2407
    %v2424 = vsub.f32 %v2384, %v2410
    %v2425 = vsub.f32 %v2385, %v2413
    %v2426 = vsub.f32 %v2386, %v2416
    %v2427 = vsub.f32 %v2387, %v2419
    %v2428 = vmul.f32 %v2420, 1.442695
    %v2429 = vpow.pop %v2428
    %v2430 = vmul.f32 %v2421, 1.442695
    %v2431 = vpow.pop %v2430
    %v2432 = vmul.f32 %v2422, 1.442695
    %v2433 = vpow.pop %v2432
    %v2434 = vmul.f32 %v2423, 1.442695
    %v2435 = vpow.pop %v2434
    %v2436 = vmul.f32 %v2424, 1.442695
    %v2437 = vpow.pop %v2436
    %v2438 = vmul.f32 %v2425, 1.442695
    %v2439 = vpow.pop %v2438
    %v2440 = vmul.f32 %v2426, 1.442695
    %v2441 = vpow.pop %v2440
    %v2442 = vmul.f32 %v2427, 1.442695
    %v2443 = vpow.pop %v2442
    %v2444 = vsel %vm1218, %v2429, 0.0
    %2445 = vadd.xlane.f32.xlu0 %v2444
    %v2446 = vpop.xlane.xlu0 %2445
    %v2447 = vsel %vm1218, %v2431, 0.0
    %2448 = vadd.xlane.f32.xlu0 %v2447
    %v2449 = vpop.xlane.xlu0 %2448
    %v2450 = vsel %vm1218, %v2433, 0.0
    %2451 = vadd.xlane.f32.xlu0 %v2450
    %v2452 = vpop.xlane.xlu0 %2451
    %v2453 = vsel %vm1218, %v2435, 0.0
    %2454 = vadd.xlane.f32.xlu0 %v2453
    %v2455 = vpop.xlane.xlu0 %2454
    %v2456 = vsel %vm1218, %v2437, 0.0
    %2457 = vadd.xlane.f32.xlu0 %v2456
    %v2458 = vpop.xlane.xlu0 %2457
    %v2459 = vsel %vm1218, %v2439, 0.0
    %2460 = vadd.xlane.f32.xlu0 %v2459
    %v2461 = vpop.xlane.xlu0 %2460
    %v2462 = vsel %vm1218, %v2441, 0.0
    %2463 = vadd.xlane.f32.xlu0 %v2462
    %v2464 = vpop.xlane.xlu0 %2463
    %v2465 = vsel %vm1218, %v2443, 0.0
    %2466 = vadd.xlane.f32.xlu0 %v2465
    %v2467 = vpop.xlane.xlu0 %2466
    %v2468 = vrcp.pop %v2446
    %v2469 = vrcp.pop %v2449
    %v2470 = vrcp.pop %v2452
    %v2471 = vrcp.pop %v2455
    %v2472 = vrcp.pop %v2458
    %v2473 = vrcp.pop %v2461
    %v2474 = vrcp.pop %v2464
    %v2475 = vrcp.pop %v2467
    %v2476 = vmul.f32 %v2429, %v2468
    %v2477 = vmul.f32 %v2431, %v2469
    %v2478 = vmul.f32 %v2433, %v2470
    %v2479 = vmul.f32 %v2435, %v2471
    %v2480 = vmul.f32 %v2437, %v2472
    %v2481 = vmul.f32 %v2439, %v2473
    %v2482 = vmul.f32 %v2441, %v2474
    %v2483 = vmul.f32 %v2443, %v2475
    %v2484 = vpack.c.bf16 %v2476, %v2476
    %v2485 = vpack.c.bf16 %v2477, %v2477
    %v2486 = vpack.c.bf16 %v2478, %v2478
    %v2487 = vpack.c.bf16 %v2479, %v2479
    %v2488 = vpack.c.bf16 %v2480, %v2480
    %v2489 = vpack.c.bf16 %v2481, %v2481
    %v2490 = vpack.c.bf16 %v2482, %v2482
    %v2491 = vpack.c.bf16 %v2483, %v2483
    %v2492 = vpack.c.bf16 %v978, %v978
    %v2493 = vpack.c.bf16 %v1046, %v1046
    %v2494 = vpack.c.bf16 %v979, %v979
    %v2495 = vpack.c.bf16 %v1047, %v1047
    %v2496 = vpack.c.bf16 %v980, %v980
    %v2497 = vpack.c.bf16 %v1048, %v1048
    %v2498 = vpack.c.bf16 %v981, %v981
    %v2499 = vpack.c.bf16 %v1049, %v1049
    %v2500 = vcombine.low %v2476, %v2478
    %v2501 = vcombine.high %v2476, %v2478
    %v2503 = vunpack.c.l.s4 1983009808
    %v2504 = vunpack.c.0.s8 %v2503
    %v2505 = vlaneseq
    %v2506 = vshrl.u32 %v2505, 7
    %v2507 = vsub.s32 %v2504, %v2506
    %v2508 = vrot.slane %v2500, %v2507
    %v2510 = vunpack.c.l.s4 1983009808
    %v2511 = vunpack.c.0.s8 %v2510
    %v2512 = vlaneseq
    %v2513 = vshrl.u32 %v2512, 7
    %v2514 = vsub.s32 %v2511, %v2513
    %v2515 = vrot.slane %v2501, %v2514
    %v2516 = vcombine.low %v2477, %v2479
    %v2517 = vcombine.high %v2477, %v2479
    %v2519 = vunpack.c.l.s4 1983009808
    %v2520 = vunpack.c.0.s8 %v2519
    %v2521 = vlaneseq
    %v2522 = vshrl.u32 %v2521, 7
    %v2523 = vsub.s32 %v2520, %v2522
    %v2524 = vrot.slane %v2516, %v2523
    %v2526 = vunpack.c.l.s4 1983009808
    %v2527 = vunpack.c.0.s8 %v2526
    %v2528 = vlaneseq
    %v2529 = vshrl.u32 %v2528, 7
    %v2530 = vsub.s32 %v2527, %v2529
    %v2531 = vrot.slane %v2517, %v2530
    %v2532 = vcombine.low %v2480, %v2482
    %v2533 = vcombine.high %v2480, %v2482
    %v2535 = vunpack.c.l.s4 1983009808
    %v2536 = vunpack.c.0.s8 %v2535
    %v2537 = vlaneseq
    %v2538 = vshrl.u32 %v2537, 7
    %v2539 = vsub.s32 %v2536, %v2538
    %v2540 = vrot.slane %v2532, %v2539
    %v2542 = vunpack.c.l.s4 1983009808
    %v2543 = vunpack.c.0.s8 %v2542
    %v2544 = vlaneseq
    %v2545 = vshrl.u32 %v2544, 7
    %v2546 = vsub.s32 %v2543, %v2545
    %v2547 = vrot.slane %v2533, %v2546
    %v2548 = vcombine.low %v2481, %v2483
    %v2549 = vcombine.high %v2481, %v2483
    %v2551 = vunpack.c.l.s4 1983009808
    %v2552 = vunpack.c.0.s8 %v2551
    %v2553 = vlaneseq
    %v2554 = vshrl.u32 %v2553, 7
    %v2555 = vsub.s32 %v2552, %v2554
    %v2556 = vrot.slane %v2548, %v2555
    %v2558 = vunpack.c.l.s4 1983009808
    %v2559 = vunpack.c.0.s8 %v2558
    %v2560 = vlaneseq
    %v2561 = vshrl.u32 %v2560, 7
    %v2562 = vsub.s32 %v2559, %v2561
    %v2563 = vrot.slane %v2549, %v2562
    %v2564 = vcombine.low %v2508, %v2524
    %v2565 = vcombine.high %v2508, %v2524
    %v2567 = vunpack.c.l.s4 1934713408
    %v2568 = vunpack.c.0.s8 %v2567
    %v2569 = vlaneseq
    %v2570 = vshrl.u32 %v2569, 7
    %v2571 = vsub.s32 %v2568, %v2570
    %v2572 = vrot.slane %v2564, %v2571
    %v2574 = vunpack.c.l.s4 1934713408
    %v2575 = vunpack.c.0.s8 %v2574
    %v2576 = vlaneseq
    %v2577 = vshrl.u32 %v2576, 7
    %v2578 = vsub.s32 %v2575, %v2577
    %v2579 = vrot.slane %v2565, %v2578
    %v2580 = vcombine.low %v2515, %v2531
    %v2581 = vcombine.high %v2515, %v2531
    %v2583 = vunpack.c.l.s4 1934713408
    %v2584 = vunpack.c.0.s8 %v2583
    %v2585 = vlaneseq
    %v2586 = vshrl.u32 %v2585, 7
    %v2587 = vsub.s32 %v2584, %v2586
    %v2588 = vrot.slane %v2580, %v2587
    %v2590 = vunpack.c.l.s4 1934713408
    %v2591 = vunpack.c.0.s8 %v2590
    %v2592 = vlaneseq
    %v2593 = vshrl.u32 %v2592, 7
    %v2594 = vsub.s32 %v2591, %v2593
    %v2595 = vrot.slane %v2581, %v2594
    %v2596 = vcombine.low %v2540, %v2556
    %v2597 = vcombine.high %v2540, %v2556
    %v2599 = vunpack.c.l.s4 1934713408
    %v2600 = vunpack.c.0.s8 %v2599
    %v2601 = vlaneseq
    %v2602 = vshrl.u32 %v2601, 7
    %v2603 = vsub.s32 %v2600, %v2602
    %v2604 = vrot.slane %v2596, %v2603
    %v2606 = vunpack.c.l.s4 1934713408
    %v2607 = vunpack.c.0.s8 %v2606
    %v2608 = vlaneseq
    %v2609 = vshrl.u32 %v2608, 7
    %v2610 = vsub.s32 %v2607, %v2609
    %v2611 = vrot.slane %v2597, %v2610
    %v2612 = vcombine.low %v2547, %v2563
    %v2613 = vcombine.high %v2547, %v2563
    %v2615 = vunpack.c.l.s4 1934713408
    %v2616 = vunpack.c.0.s8 %v2615
    %v2617 = vlaneseq
    %v2618 = vshrl.u32 %v2617, 7
    %v2619 = vsub.s32 %v2616, %v2618
    %v2620 = vrot.slane %v2612, %v2619
    %v2622 = vunpack.c.l.s4 1934713408
    %v2623 = vunpack.c.0.s8 %v2622
    %v2624 = vlaneseq
    %v2625 = vshrl.u32 %v2624, 7
    %v2626 = vsub.s32 %v2623, %v2625
    %v2627 = vrot.slane %v2613, %v2626
    %v2628 = vcombine.low %v2572, %v2604
    %v2629 = vcombine.high %v2572, %v2604
    %v2630 = vcombine.low %v2579, %v2611
    %v2631 = vcombine.high %v2579, %v2611
    %v2632 = vcombine.low %v2588, %v2620
    %v2633 = vcombine.high %v2588, %v2620
    %v2634 = vcombine.low %v2595, %v2627
    %v2635 = vcombine.high %v2595, %v2627
    %v2636 = vpack.c.bf16 %v2628, %v2628
    %v2637 = vpack.c.bf16 %v2629, %v2629
    %v2638 = vpack.c.bf16 %v2630, %v2630
    %v2639 = vpack.c.bf16 %v2631, %v2631
    %v2640 = vpack.c.bf16 %v2632, %v2632
    %v2641 = vpack.c.bf16 %v2633, %v2633
    %v2642 = vpack.c.bf16 %v2634, %v2634
    %v2643 = vpack.c.bf16 %v2635, %v2635
    %v2645 = vsel %vm1218, %v2636, 0
    %vm2647 = vcmask 1043456
    %v2648 = vsel %vm2647, %v1186, 0
    %2650 = vmatprep.subr.bf16.mxu0 0
    %2651 = vmatpush1.bf16.msra.mxu0 %v2648
    %2652 = vmatprep.subr.bf16.mxu0 0
    %2653 = vmatpush1.bf16.msra.mxu0 0
    %2654 = vmatprep.subr.bf16.mxu0 0
    %2655 = vmatpush1.bf16.msra.mxu0 0
    %2656 = vmatprep.subr.bf16.mxu0 0
    %2657 = vmatpush1.bf16.msra.mxu0 0
    %2658 = vmatprep.subr.bf16.mxu0 0
    %2659 = vmatpush1.bf16.msra.mxu0 0
    %2660 = vmatprep.subr.bf16.mxu0 0
    %2661 = vmatpush1.bf16.msra.mxu0 0
    %2662 = vmatprep.subr.bf16.mxu0 0
    %2663 = vmatpush1.bf16.msra.mxu0 0
    %2664 = vmatprep.subr.bf16.mxu0 0
    %2665 = vmatpush1.bf16.msra.mxu0 0
    %2666 = vmatprep.subr.bf16.mxu0 0
    %2667 = vmatpush1.bf16.msra.mxu0 0
    %2668 = vmatprep.subr.bf16.mxu0 0
    %2669 = vmatpush1.bf16.msra.mxu0 0
    %2670 = vmatprep.subr.bf16.mxu0 0
    %2671 = vmatpush1.bf16.msra.mxu0 0
    %2672 = vmatprep.subr.bf16.mxu0 0
    %2673 = vmatpush1.bf16.msra.mxu0 0
    %2674 = vmatprep.subr.bf16.mxu0 0
    %2675 = vmatpush1.bf16.msra.mxu0 0
    %2676 = vmatprep.subr.bf16.mxu0 0
    %2677 = vmatpush1.bf16.msra.mxu0 0
    %2678 = vmatprep.subr.bf16.mxu0 0
    %2679 = vmatpush1.bf16.msra.mxu0 0
    %2680 = vmatprep.subr.bf16.mxu0 0
    %2681 = vmatpush1.bf16.msra.mxu0 0
    %2682 = vmatprep.mubr.bf16.mxu0 0
    %2683 = vmatmul.mubr.bf16.gmra.mrb[0].mxu0 %v2645
    %v2684 = vpop.f32.mrb[0].mxu0
    %v2685 = vadd.f32 0.0, %v2684
    %v2686 = vpop.f32.mrb[0].mxu0
    %v2687 = vpop.f32.mrb[0].mxu0
    %v2688 = vpop.f32.mrb[0].mxu0
    %2689 = vdwg.mxu0
    %v2691 = vsel %vm1218, %v2637, 0
    %v2693 = vsel %vm2647, %v1187, 0
    %2695 = vmatprep.subr.bf16.mxu0 0
    %2696 = vmatpush1.bf16.msra.mxu0 %v2693
    %2697 = vmatprep.subr.bf16.mxu0 0
    %2698 = vmatpush1.bf16.msra.mxu0 0
    %2699 = vmatprep.subr.bf16.mxu0 0
    %2700 = vmatpush1.bf16.msra.mxu0 0
    %2701 = vmatprep.subr.bf16.mxu0 0
    %2702 = vmatpush1.bf16.msra.mxu0 0
    %2703 = vmatprep.subr.bf16.mxu0 0
    %2704 = vmatpush1.bf16.msra.mxu0 0
    %2705 = vmatprep.subr.bf16.mxu0 0
    %2706 = vmatpush1.bf16.msra.mxu0 0
    %2707 = vmatprep.subr.bf16.mxu0 0
    %2708 = vmatpush1.bf16.msra.mxu0 0
    %2709 = vmatprep.subr.bf16.mxu0 0
    %2710 = vmatpush1.bf16.msra.mxu0 0
    %2711 = vmatprep.subr.bf16.mxu0 0
    %2712 = vmatpush1.bf16.msra.mxu0 0
    %2713 = vmatprep.subr.bf16.mxu0 0
    %2714 = vmatpush1.bf16.msra.mxu0 0
    %2715 = vmatprep.subr.bf16.mxu0 0
    %2716 = vmatpush1.bf16.msra.mxu0 0
    %2717 = vmatprep.subr.bf16.mxu0 0
    %2718 = vmatpush1.bf16.msra.mxu0 0
    %2719 = vmatprep.subr.bf16.mxu0 0
    %2720 = vmatpush1.bf16.msra.mxu0 0
    %2721 = vmatprep.subr.bf16.mxu0 0
    %2722 = vmatpush1.bf16.msra.mxu0 0
    %2723 = vmatprep.subr.bf16.mxu0 0
    %2724 = vmatpush1.bf16.msra.mxu0 0
    %2725 = vmatprep.subr.bf16.mxu0 0
    %2726 = vmatpush1.bf16.msra.mxu0 0
    %2727 = vmatprep.mubr.bf16.mxu0 0
    %2728 = vmatmul.mubr.bf16.gmra.mrb[0].mxu0 %v2691
    %v2729 = vpop.f32.mrb[0].mxu0
    %v2730 = vadd.f32 0.0, %v2729
    %v2731 = vpop.f32.mrb[0].mxu0
    %v2732 = vpop.f32.mrb[0].mxu0
    %v2733 = vpop.f32.mrb[0].mxu0
    %2734 = vdwg.mxu0
    %v2736 = vsel %vm1218, %v2638, 0
    %v2738 = vsel %vm2647, %v1188, 0
    %2740 = vmatprep.subr.bf16.mxu0 0
    %2741 = vmatpush1.bf16.msra.mxu0 %v2738
    %2742 = vmatprep.subr.bf16.mxu0 0
    %2743 = vmatpush1.bf16.msra.mxu0 0
    %2744 = vmatprep.subr.bf16.mxu0 0
    %2745 = vmatpush1.bf16.msra.mxu0 0
    %2746 = vmatprep.subr.bf16.mxu0 0
    %2747 = vmatpush1.bf16.msra.mxu0 0
    %2748 = vmatprep.subr.bf16.mxu0 0
    %2749 = vmatpush1.bf16.msra.mxu0 0
    %2750 = vmatprep.subr.bf16.mxu0 0
    %2751 = vmatpush1.bf16.msra.mxu0 0
    %2752 = vmatprep.subr.bf16.mxu0 0
    %2753 = vmatpush1.bf16.msra.mxu0 0
    %2754 = vmatprep.subr.bf16.mxu0 0
    %2755 = vmatpush1.bf16.msra.mxu0 0
    %2756 = vmatprep.subr.bf16.mxu0 0
    %2757 = vmatpush1.bf16.msra.mxu0 0
    %2758 = vmatprep.subr.bf16.mxu0 0
    %2759 = vmatpush1.bf16.msra.mxu0 0
    %2760 = vmatprep.subr.bf16.mxu0 0
    %2761 = vmatpush1.bf16.msra.mxu0 0
    %2762 = vmatprep.subr.bf16.mxu0 0
    %2763 = vmatpush1.bf16.msra.mxu0 0
    %2764 = vmatprep.subr.bf16.mxu0 0
    %2765 = vmatpush1.bf16.msra.mxu0 0
    %2766 = vmatprep.subr.bf16.mxu0 0
    %2767 = vmatpush1.bf16.msra.mxu0 0
    %2768 = vmatprep.subr.bf16.mxu0 0
    %2769 = vmatpush1.bf16.msra.mxu0 0
    %2770 = vmatprep.subr.bf16.mxu0 0
    %2771 = vmatpush1.bf16.msra.mxu0 0
    %2772 = vmatprep.mubr.bf16.mxu0 0
    %2773 = vmatmul.mubr.bf16.gmra.mrb[0].mxu0 %v2736
    %v2774 = vpop.f32.mrb[0].mxu0
    %v2775 = vadd.f32 0.0, %v2774
    %v2776 = vpop.f32.mrb[0].mxu0
    %v2777 = vpop.f32.mrb[0].mxu0
    %v2778 = vpop.f32.mrb[0].mxu0
    %2779 = vdwg.mxu0
    %v2781 = vsel %vm1218, %v2639, 0
    %v2783 = vsel %vm2647, %v1189, 0
    %2785 = vmatprep.subr.bf16.mxu0 0
    %2786 = vmatpush1.bf16.msra.mxu0 %v2783
    %2787 = vmatprep.subr.bf16.mxu0 0
    %2788 = vmatpush1.bf16.msra.mxu0 0
    %2789 = vmatprep.subr.bf16.mxu0 0
    %2790 = vmatpush1.bf16.msra.mxu0 0
    %2791 = vmatprep.subr.bf16.mxu0 0
    %2792 = vmatpush1.bf16.msra.mxu0 0
    %2793 = vmatprep.subr.bf16.mxu0 0
    %2794 = vmatpush1.bf16.msra.mxu0 0
    %2795 = vmatprep.subr.bf16.mxu0 0
    %2796 = vmatpush1.bf16.msra.mxu0 0
    %2797 = vmatprep.subr.bf16.mxu0 0
    %2798 = vmatpush1.bf16.msra.mxu0 0
    %2799 = vmatprep.subr.bf16.mxu0 0
    %2800 = vmatpush1.bf16.msra.mxu0 0
    %2801 = vmatprep.subr.bf16.mxu0 0
    %2802 = vmatpush1.bf16.msra.mxu0 0
    %2803 = vmatprep.subr.bf16.mxu0 0
    %2804 = vmatpush1.bf16.msra.mxu0 0
    %2805 = vmatprep.subr.bf16.mxu0 0
    %2806 = vmatpush1.bf16.msra.mxu0 0
    %2807 = vmatprep.subr.bf16.mxu0 0
    %2808 = vmatpush1.bf16.msra.mxu0 0
    %2809 = vmatprep.subr.bf16.mxu0 0
    %2810 = vmatpush1.bf16.msra.mxu0 0
    %2811 = vmatprep.subr.bf16.mxu0 0
    %2812 = vmatpush1.bf16.msra.mxu0 0
    %2813 = vmatprep.subr.bf16.mxu0 0
    %2814 = vmatpush1.bf16.msra.mxu0 0
    %2815 = vmatprep.subr.bf16.mxu0 0
    %2816 = vmatpush1.bf16.msra.mxu0 0
    %2817 = vmatprep.mubr.bf16.mxu0 0
    %2818 = vmatmul.mubr.bf16.gmra.mrb[0].mxu0 %v2781
    %v2819 = vpop.f32.mrb[0].mxu0
    %v2820 = vadd.f32 0.0, %v2819
    %v2821 = vpop.f32.mrb[0].mxu0
    %v2822 = vpop.f32.mrb[0].mxu0
    %v2823 = vpop.f32.mrb[0].mxu0
    %2824 = vdwg.mxu0
    %v2826 = vsel %vm1218, %v2640, 0
    %v2828 = vsel %vm2647, %v1190, 0
    %2830 = vmatprep.subr.bf16.mxu0 0
    %2831 = vmatpush1.bf16.msra.mxu0 %v2828
    %2832 = vmatprep.subr.bf16.mxu0 0
    %2833 = vmatpush1.bf16.msra.mxu0 0
    %2834 = vmatprep.subr.bf16.mxu0 0
    %2835 = vmatpush1.bf16.msra.mxu0 0
    %2836 = vmatprep.subr.bf16.mxu0 0
    %2837 = vmatpush1.bf16.msra.mxu0 0
    %2838 = vmatprep.subr.bf16.mxu0 0
    %2839 = vmatpush1.bf16.msra.mxu0 0
    %2840 = vmatprep.subr.bf16.mxu0 0
    %2841 = vmatpush1.bf16.msra.mxu0 0
    %2842 = vmatprep.subr.bf16.mxu0 0
    %2843 = vmatpush1.bf16.msra.mxu0 0
    %2844 = vmatprep.subr.bf16.mxu0 0
    %2845 = vmatpush1.bf16.msra.mxu0 0
    %2846 = vmatprep.subr.bf16.mxu0 0
    %2847 = vmatpush1.bf16.msra.mxu0 0
    %2848 = vmatprep.subr.bf16.mxu0 0
    %2849 = vmatpush1.bf16.msra.mxu0 0
    %2850 = vmatprep.subr.bf16.mxu0 0
    %2851 = vmatpush1.bf16.msra.mxu0 0
    %2852 = vmatprep.subr.bf16.mxu0 0
    %2853 = vmatpush1.bf16.msra.mxu0 0
    %2854 = vmatprep.subr.bf16.mxu0 0
    %2855 = vmatpush1.bf16.msra.mxu0 0
    %2856 = vmatprep.subr.bf16.mxu0 0
    %2857 = vmatpush1.bf16.msra.mxu0 0
    %2858 = vmatprep.subr.bf16.mxu0 0
    %2859 = vmatpush1.bf16.msra.mxu0 0
    %2860 = vmatprep.subr.bf16.mxu0 0
    %2861 = vmatpush1.bf16.msra.mxu0 0
    %2862 = vmatprep.mubr.bf16.mxu0 0
    %2863 = vmatmul.mubr.bf16.gmra.mrb[0].mxu0 %v2826
    %v2864 = vpop.f32.mrb[0].mxu0
    %v2865 = vadd.f32 0.0, %v2864
    %v2866 = vpop.f32.mrb[0].mxu0
    %v2867 = vpop.f32.mrb[0].mxu0
    %v2868 = vpop.f32.mrb[0].mxu0
    %2869 = vdwg.mxu0
    %v2871 = vsel %vm1218, %v2641, 0
    %v2873 = vsel %vm2647, %v1191, 0
    %2875 = vmatprep.subr.bf16.mxu0 0
    %2876 = vmatpush1.bf16.msra.mxu0 %v2873
    %2877 = vmatprep.subr.bf16.mxu0 0
    %2878 = vmatpush1.bf16.msra.mxu0 0
    %2879 = vmatprep.subr.bf16.mxu0 0
    %2880 = vmatpush1.bf16.msra.mxu0 0
    %2881 = vmatprep.subr.bf16.mxu0 0
    %2882 = vmatpush1.bf16.msra.mxu0 0
    %2883 = vmatprep.subr.bf16.mxu0 0
    %2884 = vmatpush1.bf16.msra.mxu0 0
    %2885 = vmatprep.subr.bf16.mxu0 0
    %2886 = vmatpush1.bf16.msra.mxu0 0
    %2887 = vmatprep.subr.bf16.mxu0 0
    %2888 = vmatpush1.bf16.msra.mxu0 0
    %2889 = vmatprep.subr.bf16.mxu0 0
    %2890 = vmatpush1.bf16.msra.mxu0 0
    %2891 = vmatprep.subr.bf16.mxu0 0
    %2892 = vmatpush1.bf16.msra.mxu0 0
    %2893 = vmatprep.subr.bf16.mxu0 0
    %2894 = vmatpush1.bf16.msra.mxu0 0
    %2895 = vmatprep.subr.bf16.mxu0 0
    %2896 = vmatpush1.bf16.msra.mxu0 0
    %2897 = vmatprep.subr.bf16.mxu0 0
    %2898 = vmatpush1.bf16.msra.mxu0 0
    %2899 = vmatprep.subr.bf16.mxu0 0
    %2900 = vmatpush1.bf16.msra.mxu0 0
    %2901 = vmatprep.subr.bf16.mxu0 0
    %2902 = vmatpush1.bf16.msra.mxu0 0
    %2903 = vmatprep.subr.bf16.mxu0 0
    %2904 = vmatpush1.bf16.msra.mxu0 0
    %2905 = vmatprep.subr.bf16.mxu0 0
    %2906 = vmatpush1.bf16.msra.mxu0 0
    %2907 = vmatprep.mubr.bf16.mxu0 0
    %2908 = vmatmul.mubr.bf16.gmra.mrb[0].mxu0 %v2871
    %v2909 = vpop.f32.mrb[0].mxu0
    %v2910 = vadd.f32 0.0, %v2909
    %v2911 = vpop.f32.mrb[0].mxu0
    %v2912 = vpop.f32.mrb[0].mxu0
    %v2913 = vpop.f32.mrb[0].mxu0
    %2914 = vdwg.mxu0
    %v2916 = vsel %vm1218, %v2642, 0
    %v2918 = vsel %vm2647, %v1192, 0
    %2920 = vmatprep.subr.bf16.mxu0 0
    %2921 = vmatpush1.bf16.msra.mxu0 %v2918
    %2922 = vmatprep.subr.bf16.mxu0 0
    %2923 = vmatpush1.bf16.msra.mxu0 0
    %2924 = vmatprep.subr.bf16.mxu0 0
    %2925 = vmatpush1.bf16.msra.mxu0 0
    %2926 = vmatprep.subr.bf16.mxu0 0
    %2927 = vmatpush1.bf16.msra.mxu0 0
    %2928 = vmatprep.subr.bf16.mxu0 0
    %2929 = vmatpush1.bf16.msra.mxu0 0
    %2930 = vmatprep.subr.bf16.mxu0 0
    %2931 = vmatpush1.bf16.msra.mxu0 0
    %2932 = vmatprep.subr.bf16.mxu0 0
    %2933 = vmatpush1.bf16.msra.mxu0 0
    %2934 = vmatprep.subr.bf16.mxu0 0
    %2935 = vmatpush1.bf16.msra.mxu0 0
    %2936 = vmatprep.subr.bf16.mxu0 0
    %2937 = vmatpush1.bf16.msra.mxu0 0
    %2938 = vmatprep.subr.bf16.mxu0 0
    %2939 = vmatpush1.bf16.msra.mxu0 0
    %2940 = vmatprep.subr.bf16.mxu0 0
    %2941 = vmatpush1.bf16.msra.mxu0 0
    %2942 = vmatprep.subr.bf16.mxu0 0
    %2943 = vmatpush1.bf16.msra.mxu0 0
    %2944 = vmatprep.subr.bf16.mxu0 0
    %2945 = vmatpush1.bf16.msra.mxu0 0
    %2946 = vmatprep.subr.bf16.mxu0 0
    %2947 = vmatpush1.bf16.msra.mxu0 0
    %2948 = vmatprep.subr.bf16.mxu0 0
    %2949 = vmatpush1.bf16.msra.mxu0 0
    %2950 = vmatprep.subr.bf16.mxu0 0
    %2951 = vmatpush1.bf16.msra.mxu0 0
    %2952 = vmatprep.mubr.bf16.mxu0 0
    %2953 = vmatmul.mubr.bf16.gmra.mrb[0].mxu0 %v2916
    %v2954 = vpop.f32.mrb[0].mxu0
    %v2955 = vadd.f32 0.0, %v2954
    %v2956 = vpop.f32.mrb[0].mxu0
    %v2957 = vpop.f32.mrb[0].mxu0
    %v2958 = vpop.f32.mrb[0].mxu0
    %2959 = vdwg.mxu0
    %v2961 = vsel %vm1218, %v2643, 0
    %v2963 = vsel %vm2647, %v1193, 0
    %2965 = vmatprep.subr.bf16.mxu0 0
    %2966 = vmatpush1.bf16.msra.mxu0 %v2963
    %2967 = vmatprep.subr.bf16.mxu0 0
    %2968 = vmatpush1.bf16.msra.mxu0 0
    %2969 = vmatprep.subr.bf16.mxu0 0
    %2970 = vmatpush1.bf16.msra.mxu0 0
    %2971 = vmatprep.subr.bf16.mxu0 0
    %2972 = vmatpush1.bf16.msra.mxu0 0
    %2973 = vmatprep.subr.bf16.mxu0 0
    %2974 = vmatpush1.bf16.msra.mxu0 0
    %2975 = vmatprep.subr.bf16.mxu0 0
    %2976 = vmatpush1.bf16.msra.mxu0 0
    %2977 = vmatprep.subr.bf16.mxu0 0
    %2978 = vmatpush1.bf16.msra.mxu0 0
    %2979 = vmatprep.subr.bf16.mxu0 0
    %2980 = vmatpush1.bf16.msra.mxu0 0
    %2981 = vmatprep.subr.bf16.mxu0 0
    %2982 = vmatpush1.bf16.msra.mxu0 0
    %2983 = vmatprep.subr.bf16.mxu0 0
    %2984 = vmatpush1.bf16.msra.mxu0 0
    %2985 = vmatprep.subr.bf16.mxu0 0
    %2986 = vmatpush1.bf16.msra.mxu0 0
    %2987 = vmatprep.subr.bf16.mxu0 0
    %2988 = vmatpush1.bf16.msra.mxu0 0
    %2989 = vmatprep.subr.bf16.mxu0 0
    %2990 = vmatpush1.bf16.msra.mxu0 0
    %2991 = vmatprep.subr.bf16.mxu0 0
    %2992 = vmatpush1.bf16.msra.mxu0 0
    %2993 = vmatprep.subr.bf16.mxu0 0
    %2994 = vmatpush1.bf16.msra.mxu0 0
    %2995 = vmatprep.subr.bf16.mxu0 0
    %2996 = vmatpush1.bf16.msra.mxu0 0
    %2997 = vmatprep.mubr.bf16.mxu0 0
    %2998 = vmatmul.mubr.bf16.gmra.mrb[0].mxu0 %v2961
    %v2999 = vpop.f32.mrb[0].mxu0
    %v3000 = vadd.f32 0.0, %v2999
    %v3001 = vpop.f32.mrb[0].mxu0
    %v3002 = vpop.f32.mrb[0].mxu0
    %v3003 = vpop.f32.mrb[0].mxu0
    %3004 = vdwg.mxu0
    %v3005 = vcombine.low %v2685, %v2775
    %v3006 = vcombine.high %v2685, %v2775
    %v3008 = vunpack.c.l.s4 1983009808
    %v3009 = vunpack.c.0.s8 %v3008
    %v3010 = vlaneseq
    %v3011 = vshrl.u32 %v3010, 7
    %v3012 = vsub.s32 %v3009, %v3011
    %v3013 = vrot.slane %v3005, %v3012
    %v3015 = vunpack.c.l.s4 1983009808
    %v3016 = vunpack.c.0.s8 %v3015
    %v3017 = vlaneseq
    %v3018 = vshrl.u32 %v3017, 7
    %v3019 = vsub.s32 %v3016, %v3018
    %v3020 = vrot.slane %v3006, %v3019
    %v3021 = vcombine.low %v2730, %v2820
    %v3022 = vcombine.high %v2730, %v2820
    %v3024 = vunpack.c.l.s4 1983009808
    %v3025 = vunpack.c.0.s8 %v3024
    %v3026 = vlaneseq
    %v3027 = vshrl.u32 %v3026, 7
    %v3028 = vsub.s32 %v3025, %v3027
    %v3029 = vrot.slane %v3021, %v3028
    %v3031 = vunpack.c.l.s4 1983009808
    %v3032 = vunpack.c.0.s8 %v3031
    %v3033 = vlaneseq
    %v3034 = vshrl.u32 %v3033, 7
    %v3035 = vsub.s32 %v3032, %v3034
    %v3036 = vrot.slane %v3022, %v3035
    %v3037 = vcombine.low %v2865, %v2955
    %v3038 = vcombine.high %v2865, %v2955
    %v3040 = vunpack.c.l.s4 1983009808
    %v3041 = vunpack.c.0.s8 %v3040
    %v3042 = vlaneseq
    %v3043 = vshrl.u32 %v3042, 7
    %v3044 = vsub.s32 %v3041, %v3043
    %v3045 = vrot.slane %v3037, %v3044
    %v3047 = vunpack.c.l.s4 1983009808
    %v3048 = vunpack.c.0.s8 %v3047
    %v3049 = vlaneseq
    %v3050 = vshrl.u32 %v3049, 7
    %v3051 = vsub.s32 %v3048, %v3050
    %v3052 = vrot.slane %v3038, %v3051
    %v3053 = vcombine.low %v2910, %v3000
    %v3054 = vcombine.high %v2910, %v3000
    %v3056 = vunpack.c.l.s4 1983009808
    %v3057 = vunpack.c.0.s8 %v3056
    %v3058 = vlaneseq
    %v3059 = vshrl.u32 %v3058, 7
    %v3060 = vsub.s32 %v3057, %v3059
    %v3061 = vrot.slane %v3053, %v3060
    %v3063 = vunpack.c.l.s4 1983009808
    %v3064 = vunpack.c.0.s8 %v3063
    %v3065 = vlaneseq
    %v3066 = vshrl.u32 %v3065, 7
    %v3067 = vsub.s32 %v3064, %v3066
    %v3068 = vrot.slane %v3054, %v3067
    %v3069 = vcombine.low %v3013, %v3029
    %v3070 = vcombine.high %v3013, %v3029
    %v3072 = vunpack.c.l.s4 1934713408
    %v3073 = vunpack.c.0.s8 %v3072
    %v3074 = vlaneseq
    %v3075 = vshrl.u32 %v3074, 7
    %v3076 = vsub.s32 %v3073, %v3075
    %v3077 = vrot.slane %v3069, %v3076
    %v3079 = vunpack.c.l.s4 1934713408
    %v3080 = vunpack.c.0.s8 %v3079
    %v3081 = vlaneseq
    %v3082 = vshrl.u32 %v3081, 7
    %v3083 = vsub.s32 %v3080, %v3082
    %v3084 = vrot.slane %v3070, %v3083
    %v3085 = vcombine.low %v3020, %v3036
    %v3086 = vcombine.high %v3020, %v3036
    %v3088 = vunpack.c.l.s4 1934713408
    %v3089 = vunpack.c.0.s8 %v3088
    %v3090 = vlaneseq
    %v3091 = vshrl.u32 %v3090, 7
    %v3092 = vsub.s32 %v3089, %v3091
    %v3093 = vrot.slane %v3085, %v3092
    %v3095 = vunpack.c.l.s4 1934713408
    %v3096 = vunpack.c.0.s8 %v3095
    %v3097 = vlaneseq
    %v3098 = vshrl.u32 %v3097, 7
    %v3099 = vsub.s32 %v3096, %v3098
    %v3100 = vrot.slane %v3086, %v3099
    %v3101 = vcombine.low %v3045, %v3061
    %v3102 = vcombine.high %v3045, %v3061
    %v3104 = vunpack.c.l.s4 1934713408
    %v3105 = vunpack.c.0.s8 %v3104
    %v3106 = vlaneseq
    %v3107 = vshrl.u32 %v3106, 7
    %v3108 = vsub.s32 %v3105, %v3107
    %v3109 = vrot.slane %v3101, %v3108
    %v3111 = vunpack.c.l.s4 1934713408
    %v3112 = vunpack.c.0.s8 %v3111
    %v3113 = vlaneseq
    %v3114 = vshrl.u32 %v3113, 7
    %v3115 = vsub.s32 %v3112, %v3114
    %v3116 = vrot.slane %v3102, %v3115
    %v3117 = vcombine.low %v3052, %v3068
    %v3118 = vcombine.high %v3052, %v3068
    %v3120 = vunpack.c.l.s4 1934713408
    %v3121 = vunpack.c.0.s8 %v3120
    %v3122 = vlaneseq
    %v3123 = vshrl.u32 %v3122, 7
    %v3124 = vsub.s32 %v3121, %v3123
    %v3125 = vrot.slane %v3117, %v3124
    %v3127 = vunpack.c.l.s4 1934713408
    %v3128 = vunpack.c.0.s8 %v3127
    %v3129 = vlaneseq
    %v3130 = vshrl.u32 %v3129, 7
    %v3131 = vsub.s32 %v3128, %v3130
    %v3132 = vrot.slane %v3118, %v3131
    %v3133 = vcombine.low %v3077, %v3109
    %v3134 = vcombine.high %v3077, %v3109
    %v3135 = vcombine.low %v3084, %v3116
    %v3136 = vcombine.high %v3084, %v3116
    %v3137 = vcombine.low %v3093, %v3125
    %v3138 = vcombine.high %v3093, %v3125
    %v3139 = vcombine.low %v3100, %v3132
    %v3140 = vcombine.high %v3100, %v3132
    %v3142 = vsel %vm1218, %v2484, 0
    %v3145 = vsel %vm2647, %v2492, 0
    %3147 = vmatprep.subr.bf16.mxu0 0
    %3148 = vmatpush1.bf16.msra.mxu0 %v3145
    %3149 = vmatprep.subr.bf16.mxu0 0
    %3150 = vmatpush1.bf16.msra.mxu0 0
    %3151 = vmatprep.subr.bf16.mxu0 0
    %3152 = vmatpush1.bf16.msra.mxu0 0
    %3153 = vmatprep.subr.bf16.mxu0 0
    %3154 = vmatpush1.bf16.msra.mxu0 0
    %3155 = vmatprep.subr.bf16.mxu0 0
    %3156 = vmatpush1.bf16.msra.mxu0 0
    %3157 = vmatprep.subr.bf16.mxu0 0
    %3158 = vmatpush1.bf16.msra.mxu0 0
    %3159 = vmatprep.subr.bf16.mxu0 0
    %3160 = vmatpush1.bf16.msra.mxu0 0
    %3161 = vmatprep.subr.bf16.mxu0 0
    %3162 = vmatpush1.bf16.msra.mxu0 0
    %3163 = vmatprep.subr.bf16.mxu0 0
    %3164 = vmatpush1.bf16.msra.mxu0 0
    %3165 = vmatprep.subr.bf16.mxu0 0
    %3166 = vmatpush1.bf16.msra.mxu0 0
    %3167 = vmatprep.subr.bf16.mxu0 0
    %3168 = vmatpush1.bf16.msra.mxu0 0
    %3169 = vmatprep.subr.bf16.mxu0 0
    %3170 = vmatpush1.bf16.msra.mxu0 0
    %3171 = vmatprep.subr.bf16.mxu0 0
    %3172 = vmatpush1.bf16.msra.mxu0 0
    %3173 = vmatprep.subr.bf16.mxu0 0
    %3174 = vmatpush1.bf16.msra.mxu0 0
    %3175 = vmatprep.subr.bf16.mxu0 0
    %3176 = vmatpush1.bf16.msra.mxu0 0
    %3177 = vmatprep.subr.bf16.mxu0 0
    %3178 = vmatpush1.bf16.msra.mxu0 0
    %3179 = vmatprep.mubr.bf16.mxu0 0
    %3180 = vmatmul.mubr.bf16.gmra.mrb[0].mxu0 %v3142
    %v3181 = vpop.f32.mrb[0].mxu0
    %v3182 = vadd.f32 %v3133, %v3181
    %v3183 = vpop.f32.mrb[0].mxu0
    %v3184 = vpop.f32.mrb[0].mxu0
    %v3185 = vpop.f32.mrb[0].mxu0
    %3186 = vdwg.mxu0
    %v3188 = vsel %vm1218, %v2485, 0
    %v3191 = vsel %vm2647, %v2493, 0
    %3193 = vmatprep.subr.bf16.mxu0 0
    %3194 = vmatpush1.bf16.msra.mxu0 %v3191
    %3195 = vmatprep.subr.bf16.mxu0 0
    %3196 = vmatpush1.bf16.msra.mxu0 0
    %3197 = vmatprep.subr.bf16.mxu0 0
    %3198 = vmatpush1.bf16.msra.mxu0 0
    %3199 = vmatprep.subr.bf16.mxu0 0
    %3200 = vmatpush1.bf16.msra.mxu0 0
    %3201 = vmatprep.subr.bf16.mxu0 0
    %3202 = vmatpush1.bf16.msra.mxu0 0
    %3203 = vmatprep.subr.bf16.mxu0 0
    %3204 = vmatpush1.bf16.msra.mxu0 0
    %3205 = vmatprep.subr.bf16.mxu0 0
    %3206 = vmatpush1.bf16.msra.mxu0 0
    %3207 = vmatprep.subr.bf16.mxu0 0
    %3208 = vmatpush1.bf16.msra.mxu0 0
    %3209 = vmatprep.subr.bf16.mxu0 0
    %3210 = vmatpush1.bf16.msra.mxu0 0
    %3211 = vmatprep.subr.bf16.mxu0 0
    %3212 = vmatpush1.bf16.msra.mxu0 0
    %3213 = vmatprep.subr.bf16.mxu0 0
    %3214 = vmatpush1.bf16.msra.mxu0 0
    %3215 = vmatprep.subr.bf16.mxu0 0
    %3216 = vmatpush1.bf16.msra.mxu0 0
    %3217 = vmatprep.subr.bf16.mxu0 0
    %3218 = vmatpush1.bf16.msra.mxu0 0
    %3219 = vmatprep.subr.bf16.mxu0 0
    %3220 = vmatpush1.bf16.msra.mxu0 0
    %3221 = vmatprep.subr.bf16.mxu0 0
    %3222 = vmatpush1.bf16.msra.mxu0 0
    %3223 = vmatprep.subr.bf16.mxu0 0
    %3224 = vmatpush1.bf16.msra.mxu0 0
    %3225 = vmatprep.mubr.bf16.mxu0 0
    %3226 = vmatmul.mubr.bf16.gmra.mrb[0].mxu0 %v3188
    %v3227 = vpop.f32.mrb[0].mxu0
    %v3228 = vadd.f32 %v3134, %v3227
    %v3229 = vpop.f32.mrb[0].mxu0
    %v3230 = vpop.f32.mrb[0].mxu0
    %v3231 = vpop.f32.mrb[0].mxu0
    %3232 = vdwg.mxu0
    %v3234 = vsel %vm1218, %v2486, 0
    %v3237 = vsel %vm2647, %v2494, 0
    %3239 = vmatprep.subr.bf16.mxu0 0
    %3240 = vmatpush1.bf16.msra.mxu0 %v3237
    %3241 = vmatprep.subr.bf16.mxu0 0
    %3242 = vmatpush1.bf16.msra.mxu0 0
    %3243 = vmatprep.subr.bf16.mxu0 0
    %3244 = vmatpush1.bf16.msra.mxu0 0
    %3245 = vmatprep.subr.bf16.mxu0 0
    %3246 = vmatpush1.bf16.msra.mxu0 0
    %3247 = vmatprep.subr.bf16.mxu0 0
    %3248 = vmatpush1.bf16.msra.mxu0 0
    %3249 = vmatprep.subr.bf16.mxu0 0
    %3250 = vmatpush1.bf16.msra.mxu0 0
    %3251 = vmatprep.subr.bf16.mxu0 0
    %3252 = vmatpush1.bf16.msra.mxu0 0
    %3253 = vmatprep.subr.bf16.mxu0 0
    %3254 = vmatpush1.bf16.msra.mxu0 0
    %3255 = vmatprep.subr.bf16.mxu0 0
    %3256 = vmatpush1.bf16.msra.mxu0 0
    %3257 = vmatprep.subr.bf16.mxu0 0
    %3258 = vmatpush1.bf16.msra.mxu0 0
    %3259 = vmatprep.subr.bf16.mxu0 0
    %3260 = vmatpush1.bf16.msra.mxu0 0
    %3261 = vmatprep.subr.bf16.mxu0 0
    %3262 = vmatpush1.bf16.msra.mxu0 0
    %3263 = vmatprep.subr.bf16.mxu0 0
    %3264 = vmatpush1.bf16.msra.mxu0 0
    %3265 = vmatprep.subr.bf16.mxu0 0
    %3266 = vmatpush1.bf16.msra.mxu0 0
    %3267 = vmatprep.subr.bf16.mxu0 0
    %3268 = vmatpush1.bf16.msra.mxu0 0
    %3269 = vmatprep.subr.bf16.mxu0 0
    %3270 = vmatpush1.bf16.msra.mxu0 0
    %3271 = vmatprep.mubr.bf16.mxu0 0
    %3272 = vmatmul.mubr.bf16.gmra.mrb[0].mxu0 %v3234
    %v3273 = vpop.f32.mrb[0].mxu0
    %v3274 = vadd.f32 %v3135, %v3273
    %v3275 = vpop.f32.mrb[0].mxu0
    %v3276 = vpop.f32.mrb[0].mxu0
    %v3277 = vpop.f32.mrb[0].mxu0
    %3278 = vdwg.mxu0
    %v3280 = vsel %vm1218, %v2487, 0
    %v3283 = vsel %vm2647, %v2495, 0
    %3285 = vmatprep.subr.bf16.mxu0 0
    %3286 = vmatpush1.bf16.msra.mxu0 %v3283
    %3287 = vmatprep.subr.bf16.mxu0 0
    %3288 = vmatpush1.bf16.msra.mxu0 0
    %3289 = vmatprep.subr.bf16.mxu0 0
    %3290 = vmatpush1.bf16.msra.mxu0 0
    %3291 = vmatprep.subr.bf16.mxu0 0
    %3292 = vmatpush1.bf16.msra.mxu0 0
    %3293 = vmatprep.subr.bf16.mxu0 0
    %3294 = vmatpush1.bf16.msra.mxu0 0
    %3295 = vmatprep.subr.bf16.mxu0 0
    %3296 = vmatpush1.bf16.msra.mxu0 0
    %3297 = vmatprep.subr.bf16.mxu0 0
    %3298 = vmatpush1.bf16.msra.mxu0 0
    %3299 = vmatprep.subr.bf16.mxu0 0
    %3300 = vmatpush1.bf16.msra.mxu0 0
    %3301 = vmatprep.subr.bf16.mxu0 0
    %3302 = vmatpush1.bf16.msra.mxu0 0
    %3303 = vmatprep.subr.bf16.mxu0 0
    %3304 = vmatpush1.bf16.msra.mxu0 0
    %3305 = vmatprep.subr.bf16.mxu0 0
    %3306 = vmatpush1.bf16.msra.mxu0 0
    %3307 = vmatprep.subr.bf16.mxu0 0
    %3308 = vmatpush1.bf16.msra.mxu0 0
    %3309 = vmatprep.subr.bf16.mxu0 0
    %3310 = vmatpush1.bf16.msra.mxu0 0
    %3311 = vmatprep.subr.bf16.mxu0 0
    %3312 = vmatpush1.bf16.msra.mxu0 0
    %3313 = vmatprep.subr.bf16.mxu0 0
    %3314 = vmatpush1.bf16.msra.mxu0 0
    %3315 = vmatprep.subr.bf16.mxu0 0
    %3316 = vmatpush1.bf16.msra.mxu0 0
    %3317 = vmatprep.mubr.bf16.mxu0 0
    %3318 = vmatmul.mubr.bf16.gmra.mrb[0].mxu0 %v3280
    %v3319 = vpop.f32.mrb[0].mxu0
    %v3320 = vadd.f32 %v3136, %v3319
    %v3321 = vpop.f32.mrb[0].mxu0
    %v3322 = vpop.f32.mrb[0].mxu0
    %v3323 = vpop.f32.mrb[0].mxu0
    %3324 = vdwg.mxu0
    %v3326 = vsel %vm1218, %v2488, 0
    %v3329 = vsel %vm2647, %v2496, 0
    %3331 = vmatprep.subr.bf16.mxu0 0
    %3332 = vmatpush1.bf16.msra.mxu0 %v3329
    %3333 = vmatprep.subr.bf16.mxu0 0
    %3334 = vmatpush1.bf16.msra.mxu0 0
    %3335 = vmatprep.subr.bf16.mxu0 0
    %3336 = vmatpush1.bf16.msra.mxu0 0
    %3337 = vmatprep.subr.bf16.mxu0 0
    %3338 = vmatpush1.bf16.msra.mxu0 0
    %3339 = vmatprep.subr.bf16.mxu0 0
    %3340 = vmatpush1.bf16.msra.mxu0 0
    %3341 = vmatprep.subr.bf16.mxu0 0
    %3342 = vmatpush1.bf16.msra.mxu0 0
    %3343 = vmatprep.subr.bf16.mxu0 0
    %3344 = vmatpush1.bf16.msra.mxu0 0
    %3345 = vmatprep.subr.bf16.mxu0 0
    %3346 = vmatpush1.bf16.msra.mxu0 0
    %3347 = vmatprep.subr.bf16.mxu0 0
    %3348 = vmatpush1.bf16.msra.mxu0 0
    %3349 = vmatprep.subr.bf16.mxu0 0
    %3350 = vmatpush1.bf16.msra.mxu0 0
    %3351 = vmatprep.subr.bf16.mxu0 0
    %3352 = vmatpush1.bf16.msra.mxu0 0
    %3353 = vmatprep.subr.bf16.mxu0 0
    %3354 = vmatpush1.bf16.msra.mxu0 0
    %3355 = vmatprep.subr.bf16.mxu0 0
    %3356 = vmatpush1.bf16.msra.mxu0 0
    %3357 = vmatprep.subr.bf16.mxu0 0
    %3358 = vmatpush1.bf16.msra.mxu0 0
    %3359 = vmatprep.subr.bf16.mxu0 0
    %3360 = vmatpush1.bf16.msra.mxu0 0
    %3361 = vmatprep.subr.bf16.mxu0 0
    %3362 = vmatpush1.bf16.msra.mxu0 0
    %3363 = vmatprep.mubr.bf16.mxu0 0
    %3364 = vmatmul.mubr.bf16.gmra.mrb[0].mxu0 %v3326
    %v3365 = vpop.f32.mrb[0].mxu0
    %v3366 = vadd.f32 %v3137, %v3365
    %v3367 = vpop.f32.mrb[0].mxu0
    %v3368 = vpop.f32.mrb[0].mxu0
    %v3369 = vpop.f32.mrb[0].mxu0
    %3370 = vdwg.mxu0
    %v3372 = vsel %vm1218, %v2489, 0
    %v3375 = vsel %vm2647, %v2497, 0
    %3377 = vmatprep.subr.bf16.mxu0 0
    %3378 = vmatpush1.bf16.msra.mxu0 %v3375
    %3379 = vmatprep.subr.bf16.mxu0 0
    %3380 = vmatpush1.bf16.msra.mxu0 0
    %3381 = vmatprep.subr.bf16.mxu0 0
    %3382 = vmatpush1.bf16.msra.mxu0 0
    %3383 = vmatprep.subr.bf16.mxu0 0
    %3384 = vmatpush1.bf16.msra.mxu0 0
    %3385 = vmatprep.subr.bf16.mxu0 0
    %3386 = vmatpush1.bf16.msra.mxu0 0
    %3387 = vmatprep.subr.bf16.mxu0 0
    %3388 = vmatpush1.bf16.msra.mxu0 0
    %3389 = vmatprep.subr.bf16.mxu0 0
    %3390 = vmatpush1.bf16.msra.mxu0 0
    %3391 = vmatprep.subr.bf16.mxu0 0
    %3392 = vmatpush1.bf16.msra.mxu0 0
    %3393 = vmatprep.subr.bf16.mxu0 0
    %3394 = vmatpush1.bf16.msra.mxu0 0
    %3395 = vmatprep.subr.bf16.mxu0 0
    %3396 = vmatpush1.bf16.msra.mxu0 0
    %3397 = vmatprep.subr.bf16.mxu0 0
    %3398 = vmatpush1.bf16.msra.mxu0 0
    %3399 = vmatprep.subr.bf16.mxu0 0
    %3400 = vmatpush1.bf16.msra.mxu0 0
    %3401 = vmatprep.subr.bf16.mxu0 0
    %3402 = vmatpush1.bf16.msra.mxu0 0
    %3403 = vmatprep.subr.bf16.mxu0 0
    %3404 = vmatpush1.bf16.msra.mxu0 0
    %3405 = vmatprep.subr.bf16.mxu0 0
    %3406 = vmatpush1.bf16.msra.mxu0 0
    %3407 = vmatprep.subr.bf16.mxu0 0
    %3408 = vmatpush1.bf16.msra.mxu0 0
    %3409 = vmatprep.mubr.bf16.mxu0 0
    %3410 = vmatmul.mubr.bf16.gmra.mrb[0].mxu0 %v3372
    %v3411 = vpop.f32.mrb[0].mxu0
    %v3412 = vadd.f32 %v3138, %v3411
    %v3413 = vpop.f32.mrb[0].mxu0
    %v3414 = vpop.f32.mrb[0].mxu0
    %v3415 = vpop.f32.mrb[0].mxu0
    %3416 = vdwg.mxu0
    %v3418 = vsel %vm1218, %v2490, 0
    %v3421 = vsel %vm2647, %v2498, 0
    %3423 = vmatprep.subr.bf16.mxu0 0
    %3424 = vmatpush1.bf16.msra.mxu0 %v3421
    %3425 = vmatprep.subr.bf16.mxu0 0
    %3426 = vmatpush1.bf16.msra.mxu0 0
    %3427 = vmatprep.subr.bf16.mxu0 0
    %3428 = vmatpush1.bf16.msra.mxu0 0
    %3429 = vmatprep.subr.bf16.mxu0 0
    %3430 = vmatpush1.bf16.msra.mxu0 0
    %3431 = vmatprep.subr.bf16.mxu0 0
    %3432 = vmatpush1.bf16.msra.mxu0 0
    %3433 = vmatprep.subr.bf16.mxu0 0
    %3434 = vmatpush1.bf16.msra.mxu0 0
    %3435 = vmatprep.subr.bf16.mxu0 0
    %3436 = vmatpush1.bf16.msra.mxu0 0
    %3437 = vmatprep.subr.bf16.mxu0 0
    %3438 = vmatpush1.bf16.msra.mxu0 0
    %3439 = vmatprep.subr.bf16.mxu0 0
    %3440 = vmatpush1.bf16.msra.mxu0 0
    %3441 = vmatprep.subr.bf16.mxu0 0
    %3442 = vmatpush1.bf16.msra.mxu0 0
    %3443 = vmatprep.subr.bf16.mxu0 0
    %3444 = vmatpush1.bf16.msra.mxu0 0
    %3445 = vmatprep.subr.bf16.mxu0 0
    %3446 = vmatpush1.bf16.msra.mxu0 0
    %3447 = vmatprep.subr.bf16.mxu0 0
    %3448 = vmatpush1.bf16.msra.mxu0 0
    %3449 = vmatprep.subr.bf16.mxu0 0
    %3450 = vmatpush1.bf16.msra.mxu0 0
    %3451 = vmatprep.subr.bf16.mxu0 0
    %3452 = vmatpush1.bf16.msra.mxu0 0
    %3453 = vmatprep.subr.bf16.mxu0 0
    %3454 = vmatpush1.bf16.msra.mxu0 0
    %3455 = vmatprep.mubr.bf16.mxu0 0
    %3456 = vmatmul.mubr.bf16.gmra.mrb[0].mxu0 %v3418
    %v3457 = vpop.f32.mrb[0].mxu0
    %v3458 = vadd.f32 %v3139, %v3457
    %v3459 = vpop.f32.mrb[0].mxu0
    %v3460 = vpop.f32.mrb[0].mxu0
    %v3461 = vpop.f32.mrb[0].mxu0
    %3462 = vdwg.mxu0
    %v3464 = vsel %vm1218, %v2491, 0
    %v3467 = vsel %vm2647, %v2499, 0
    %3469 = vmatprep.subr.bf16.mxu0 0
    %3470 = vmatpush1.bf16.msra.mxu0 %v3467
    %3471 = vmatprep.subr.bf16.mxu0 0
    %3472 = vmatpush1.bf16.msra.mxu0 0
    %3473 = vmatprep.subr.bf16.mxu0 0
    %3474 = vmatpush1.bf16.msra.mxu0 0
    %3475 = vmatprep.subr.bf16.mxu0 0
    %3476 = vmatpush1.bf16.msra.mxu0 0
    %3477 = vmatprep.subr.bf16.mxu0 0
    %3478 = vmatpush1.bf16.msra.mxu0 0
    %3479 = vmatprep.subr.bf16.mxu0 0
    %3480 = vmatpush1.bf16.msra.mxu0 0
    %3481 = vmatprep.subr.bf16.mxu0 0
    %3482 = vmatpush1.bf16.msra.mxu0 0
    %3483 = vmatprep.subr.bf16.mxu0 0
    %3484 = vmatpush1.bf16.msra.mxu0 0
    %3485 = vmatprep.subr.bf16.mxu0 0
    %3486 = vmatpush1.bf16.msra.mxu0 0
    %3487 = vmatprep.subr.bf16.mxu0 0
    %3488 = vmatpush1.bf16.msra.mxu0 0
    %3489 = vmatprep.subr.bf16.mxu0 0
    %3490 = vmatpush1.bf16.msra.mxu0 0
    %3491 = vmatprep.subr.bf16.mxu0 0
    %3492 = vmatpush1.bf16.msra.mxu0 0
    %3493 = vmatprep.subr.bf16.mxu0 0
    %3494 = vmatpush1.bf16.msra.mxu0 0
    %3495 = vmatprep.subr.bf16.mxu0 0
    %3496 = vmatpush1.bf16.msra.mxu0 0
    %3497 = vmatprep.subr.bf16.mxu0 0
    %3498 = vmatpush1.bf16.msra.mxu0 0
    %3499 = vmatprep.subr.bf16.mxu0 0
    %3500 = vmatpush1.bf16.msra.mxu0 0
    %3501 = vmatprep.mubr.bf16.mxu0 0
    %3502 = vmatmul.mubr.bf16.gmra.mrb[0].mxu0 %v3464
    %v3503 = vpop.f32.mrb[0].mxu0
    %v3504 = vadd.f32 %v3140, %v3503
    %v3505 = vpop.f32.mrb[0].mxu0
    %v3506 = vpop.f32.mrb[0].mxu0
    %v3507 = vpop.f32.mrb[0].mxu0
    %3508 = vdwg.mxu0
    %v3509 = vcombine.low %v3182, %v3366
    %v3510 = vcombine.high %v3182, %v3366
    %v3512 = vunpack.c.l.s4 1983009808
    %v3513 = vunpack.c.0.s8 %v3512
    %v3514 = vlaneseq
    %v3515 = vshrl.u32 %v3514, 7
    %v3516 = vsub.s32 %v3513, %v3515
    %v3517 = vrot.slane %v3509, %v3516
    %v3519 = vunpack.c.l.s4 1983009808
    %v3520 = vunpack.c.0.s8 %v3519
    %v3521 = vlaneseq
    %v3522 = vshrl.u32 %v3521, 7
    %v3523 = vsub.s32 %v3520, %v3522
    %v3524 = vrot.slane %v3510, %v3523
    %v3525 = vcombine.low %v3274, %v3458
    %v3526 = vcombine.high %v3274, %v3458
    %v3528 = vunpack.c.l.s4 1983009808
    %v3529 = vunpack.c.0.s8 %v3528
    %v3530 = vlaneseq
    %v3531 = vshrl.u32 %v3530, 7
    %v3532 = vsub.s32 %v3529, %v3531
    %v3533 = vrot.slane %v3525, %v3532
    %v3535 = vunpack.c.l.s4 1983009808
    %v3536 = vunpack.c.0.s8 %v3535
    %v3537 = vlaneseq
    %v3538 = vshrl.u32 %v3537, 7
    %v3539 = vsub.s32 %v3536, %v3538
    %v3540 = vrot.slane %v3526, %v3539
    %v3541 = vcombine.low %v3517, %v3533
    %v3542 = vcombine.high %v3517, %v3533
    %v3544 = vunpack.c.l.s4 1934713408
    %v3545 = vunpack.c.0.s8 %v3544
    %v3546 = vlaneseq
    %v3547 = vshrl.u32 %v3546, 7
    %v3548 = vsub.s32 %v3545, %v3547
    %v3549 = vrot.slane %v3541, %v3548
    %v3551 = vunpack.c.l.s4 1934713408
    %v3552 = vunpack.c.0.s8 %v3551
    %v3553 = vlaneseq
    %v3554 = vshrl.u32 %v3553, 7
    %v3555 = vsub.s32 %v3552, %v3554
    %v3556 = vrot.slane %v3542, %v3555
    %v3557 = vcombine.low %v3524, %v3540
    %v3558 = vcombine.high %v3524, %v3540
    %v3560 = vunpack.c.l.s4 1934713408
    %v3561 = vunpack.c.0.s8 %v3560
    %v3562 = vlaneseq
    %v3563 = vshrl.u32 %v3562, 7
    %v3564 = vsub.s32 %v3561, %v3563
    %v3565 = vrot.slane %v3557, %v3564
    %v3567 = vunpack.c.l.s4 1934713408
    %v3568 = vunpack.c.0.s8 %v3567
    %v3569 = vlaneseq
    %v3570 = vshrl.u32 %v3569, 7
    %v3571 = vsub.s32 %v3568, %v3570
    %v3572 = vrot.slane %v3558, %v3571
    %v3573 = vcombine.high %v3549, 0.0
    %v3574 = vcombine.high %v3556, 0.0
    %v3575 = vcombine.high %v3565, 0.0
    %v3576 = vcombine.high %v3572, 0.0
    %v3577 = vcombine.low %v3228, %v3412
    %v3578 = vcombine.high %v3228, %v3412
    %v3580 = vunpack.c.l.s4 1983009808
    %v3581 = vunpack.c.0.s8 %v3580
    %v3582 = vlaneseq
    %v3583 = vshrl.u32 %v3582, 7
    %v3584 = vsub.s32 %v3581, %v3583
    %v3585 = vrot.slane %v3577, %v3584
    %v3587 = vunpack.c.l.s4 1983009808
    %v3588 = vunpack.c.0.s8 %v3587
    %v3589 = vlaneseq
    %v3590 = vshrl.u32 %v3589, 7
    %v3591 = vsub.s32 %v3588, %v3590
    %v3592 = vrot.slane %v3578, %v3591
    %v3593 = vcombine.low %v3320, %v3504
    %v3594 = vcombine.high %v3320, %v3504
    %v3596 = vunpack.c.l.s4 1983009808
    %v3597 = vunpack.c.0.s8 %v3596
    %v3598 = vlaneseq
    %v3599 = vshrl.u32 %v3598, 7
    %v3600 = vsub.s32 %v3597, %v3599
    %v3601 = vrot.slane %v3593, %v3600
    %v3603 = vunpack.c.l.s4 1983009808
    %v3604 = vunpack.c.0.s8 %v3603
    %v3605 = vlaneseq
    %v3606 = vshrl.u32 %v3605, 7
    %v3607 = vsub.s32 %v3604, %v3606
    %v3608 = vrot.slane %v3594, %v3607
    %v3609 = vcombine.low %v3585, %v3601
    %v3610 = vcombine.high %v3585, %v3601
    %v3612 = vunpack.c.l.s4 1934713408
    %v3613 = vunpack.c.0.s8 %v3612
    %v3614 = vlaneseq
    %v3615 = vshrl.u32 %v3614, 7
    %v3616 = vsub.s32 %v3613, %v3615
    %v3617 = vrot.slane %v3609, %v3616
    %v3619 = vunpack.c.l.s4 1934713408
    %v3620 = vunpack.c.0.s8 %v3619
    %v3621 = vlaneseq
    %v3622 = vshrl.u32 %v3621, 7
    %v3623 = vsub.s32 %v3620, %v3622
    %v3624 = vrot.slane %v3610, %v3623
    %v3625 = vcombine.low %v3592, %v3608
    %v3626 = vcombine.high %v3592, %v3608
    %v3628 = vunpack.c.l.s4 1934713408
    %v3629 = vunpack.c.0.s8 %v3628
    %v3630 = vlaneseq
    %v3631 = vshrl.u32 %v3630, 7
    %v3632 = vsub.s32 %v3629, %v3631
    %v3633 = vrot.slane %v3625, %v3632
    %v3635 = vunpack.c.l.s4 1934713408
    %v3636 = vunpack.c.0.s8 %v3635
    %v3637 = vlaneseq
    %v3638 = vshrl.u32 %v3637, 7
    %v3639 = vsub.s32 %v3636, %v3638
    %v3640 = vrot.slane %v3626, %v3639
    %v3641 = vcombine.high %v3617, 0.0
    %v3642 = vcombine.high %v3624, 0.0
    %v3643 = vcombine.high %v3633, 0.0
    %v3644 = vcombine.high %v3640, 0.0
    %v3645 = vcombine.low %v3549, %v3556
    %v3647 = vunpack.c.l.s4 1983009808
    %v3648 = vunpack.c.0.s8 %v3647
    %v3649 = vlaneseq
    %v3650 = vshrl.u32 %v3649, 7
    %v3651 = vsub.s32 %v3648, %v3650
    %v3652 = vrot.slane %v3645, %v3651
    %v3653 = vcombine.low %v3573, %v3574
    %v3655 = vunpack.c.l.s4 1983009808
    %v3656 = vunpack.c.0.s8 %v3655
    %v3657 = vlaneseq
    %v3658 = vshrl.u32 %v3657, 7
    %v3659 = vsub.s32 %v3656, %v3658
    %v3660 = vrot.slane %v3653, %v3659
    %v3661 = vcombine.low %v3565, %v3572
    %v3663 = vunpack.c.l.s4 1983009808
    %v3664 = vunpack.c.0.s8 %v3663
    %v3665 = vlaneseq
    %v3666 = vshrl.u32 %v3665, 7
    %v3667 = vsub.s32 %v3664, %v3666
    %v3668 = vrot.slane %v3661, %v3667
    %v3669 = vcombine.low %v3575, %v3576
    %v3671 = vunpack.c.l.s4 1983009808
    %v3672 = vunpack.c.0.s8 %v3671
    %v3673 = vlaneseq
    %v3674 = vshrl.u32 %v3673, 7
    %v3675 = vsub.s32 %v3672, %v3674
    %v3676 = vrot.slane %v3669, %v3675
    %v3677 = vcombine.low %v3652, %v3660
    %v3678 = vcombine.high %v3652, %v3660
    %v3680 = vunpack.c.l.s4 1934713408
    %v3681 = vunpack.c.0.s8 %v3680
    %v3682 = vlaneseq
    %v3683 = vshrl.u32 %v3682, 7
    %v3684 = vsub.s32 %v3681, %v3683
    %v3685 = vrot.slane %v3677, %v3684
    %v3687 = vunpack.c.l.s4 1934713408
    %v3688 = vunpack.c.0.s8 %v3687
    %v3689 = vlaneseq
    %v3690 = vshrl.u32 %v3689, 7
    %v3691 = vsub.s32 %v3688, %v3690
    %v3692 = vrot.slane %v3678, %v3691
    %v3693 = vcombine.low %v3668, %v3676
    %v3694 = vcombine.high %v3668, %v3676
    %v3696 = vunpack.c.l.s4 1934713408
    %v3697 = vunpack.c.0.s8 %v3696
    %v3698 = vlaneseq
    %v3699 = vshrl.u32 %v3698, 7
    %v3700 = vsub.s32 %v3697, %v3699
    %v3701 = vrot.slane %v3693, %v3700
    %v3703 = vunpack.c.l.s4 1934713408
    %v3704 = vunpack.c.0.s8 %v3703
    %v3705 = vlaneseq
    %v3706 = vshrl.u32 %v3705, 7
    %v3707 = vsub.s32 %v3704, %v3706
    %v3708 = vrot.slane %v3694, %v3707
    %v3709 = vcombine.low %v3685, %v3701
    %v3710 = vcombine.high %v3685, %v3701
    %v3711 = vcombine.low %v3692, %v3708
    %v3712 = vcombine.high %v3692, %v3708
    %v3713 = vcombine.low %v3617, %v3624
    %v3715 = vunpack.c.l.s4 1983009808
    %v3716 = vunpack.c.0.s8 %v3715
    %v3717 = vlaneseq
    %v3718 = vshrl.u32 %v3717, 7
    %v3719 = vsub.s32 %v3716, %v3718
    %v3720 = vrot.slane %v3713, %v3719
    %v3721 = vcombine.low %v3641, %v3642
    %v3723 = vunpack.c.l.s4 1983009808
    %v3724 = vunpack.c.0.s8 %v3723
    %v3725 = vlaneseq
    %v3726 = vshrl.u32 %v3725, 7
    %v3727 = vsub.s32 %v3724, %v3726
    %v3728 = vrot.slane %v3721, %v3727
    %v3729 = vcombine.low %v3633, %v3640
    %v3731 = vunpack.c.l.s4 1983009808
    %v3732 = vunpack.c.0.s8 %v3731
    %v3733 = vlaneseq
    %v3734 = vshrl.u32 %v3733, 7
    %v3735 = vsub.s32 %v3732, %v3734
    %v3736 = vrot.slane %v3729, %v3735
    %v3737 = vcombine.low %v3643, %v3644
    %v3739 = vunpack.c.l.s4 1983009808
    %v3740 = vunpack.c.0.s8 %v3739
    %v3741 = vlaneseq
    %v3742 = vshrl.u32 %v3741, 7
    %v3743 = vsub.s32 %v3740, %v3742
    %v3744 = vrot.slane %v3737, %v3743
    %v3745 = vcombine.low %v3720, %v3728
    %v3746 = vcombine.high %v3720, %v3728
    %v3748 = vunpack.c.l.s4 1934713408
    %v3749 = vunpack.c.0.s8 %v3748
    %v3750 = vlaneseq
    %v3751 = vshrl.u32 %v3750, 7
    %v3752 = vsub.s32 %v3749, %v3751
    %v3753 = vrot.slane %v3745, %v3752
    %v3755 = vunpack.c.l.s4 1934713408
    %v3756 = vunpack.c.0.s8 %v3755
    %v3757 = vlaneseq
    %v3758 = vshrl.u32 %v3757, 7
    %v3759 = vsub.s32 %v3756, %v3758
    %v3760 = vrot.slane %v3746, %v3759
    %v3761 = vcombine.low %v3736, %v3744
    %v3762 = vcombine.high %v3736, %v3744
    %v3764 = vunpack.c.l.s4 1934713408
    %v3765 = vunpack.c.0.s8 %v3764
    %v3766 = vlaneseq
    %v3767 = vshrl.u32 %v3766, 7
    %v3768 = vsub.s32 %v3765, %v3767
    %v3769 = vrot.slane %v3761, %v3768
    %v3771 = vunpack.c.l.s4 1934713408
    %v3772 = vunpack.c.0.s8 %v3771
    %v3773 = vlaneseq
    %v3774 = vshrl.u32 %v3773, 7
    %v3775 = vsub.s32 %v3772, %v3774
    %v3776 = vrot.slane %v3762, %v3775
    %v3777 = vcombine.low %v3753, %v3769
    %v3778 = vcombine.high %v3753, %v3769
    %v3779 = vcombine.low %v3760, %v3776
    %v3780 = vcombine.high %v3760, %v3776
    %3783 = vrot.lane.b32.xlu0 %v3710, 8
    %v3784 = vpop.permute.xlu0 %3783
    %3785 = vrot.lane.b32.xlu0 %v3778, 8
    %v3786 = vpop.permute.xlu0 %3785
    %3791 = vrot.lane.b32.xlu0 %v3711, 16
    %v3792 = vpop.permute.xlu0 %3791
    %3793 = vrot.lane.b32.xlu0 %v3779, 16
    %v3794 = vpop.permute.xlu0 %3793
    %3799 = vrot.lane.b32.xlu0 %v3712, 24
    %v3800 = vpop.permute.xlu0 %3799
    %3801 = vrot.lane.b32.xlu0 %v3780, 24
    %v3802 = vpop.permute.xlu0 %3801
    %v3805 = vsel %vm1218, %v3709, %v3784
    %v3806 = vsel %vm1218, %v3777, %v3786
    %vm3807 = vcmask 130048
    %v3808 = vsel %vm3807, %v3805, %v3792
    %v3809 = vsel %vm3807, %v3806, %v3794
    %vm3810 = vcmask 195584
    %v3811 = vsel %vm3810, %v3808, %v3800
    %v3812 = vsel %vm3810, %v3809, %v3802
    %v3813 = vpack.c.bf16 %v3812, %v3811
    %v3814 = vld [vmem:[#allocation7] sm:$0xf]
    %v3815 = vld [vmem:[#allocation7 + $0x4] sm:$0xf]
    %v3816 = vld [vmem:[#allocation7 + $0x8] sm:$0xf]
    %v3817 = vld [vmem:[#allocation7 + $0xc] sm:$0xf]
    %v3818 = vlaneseq
    %v3819 = vshrl.u32 %v3818, 7
    %v3820 = vsub.s32 0, %v3819
    %v3821 = vrot.slane %v96, %v3820
    %v3826 = vunpack.c.l.b16 %v3814
    %v3827 = vunpack.c.l.b16 %v3815
    %v3828 = vunpack.c.l.b16 %v3816
    %v3829 = vunpack.c.l.b16 %v3817
    %v3830 = vpack.c.b16 %v3827, %v3826
    %v3831 = vpack.c.b16 %v3829, %v3828
    %v3835 = vsel %vm121, %v3813, 0
    %3837 = vmatprep.subr.bf16.mxu0 0
    %3838 = vmatpush1.bf16.msra.mxu0 %v3830
    %3839 = vmatprep.subr.bf16.mxu0 0
    %3840 = vmatpush1.bf16.msra.mxu0 %v3831
    %3841 = vmatprep.subr.bf16.mxu0 0
    %3842 = vmatpush1.bf16.msra.mxu0 0
    %3843 = vmatprep.subr.bf16.mxu0 0
    %3844 = vmatpush1.bf16.msra.mxu0 0
    %3845 = vmatprep.subr.bf16.mxu0 0
    %3846 = vmatpush1.bf16.msra.mxu0 0
    %3847 = vmatprep.subr.bf16.mxu0 0
    %3848 = vmatpush1.bf16.msra.mxu0 0
    %3849 = vmatprep.subr.bf16.mxu0 0
    %3850 = vmatpush1.bf16.msra.mxu0 0
    %3851 = vmatprep.subr.bf16.mxu0 0
    %3852 = vmatpush1.bf16.msra.mxu0 0
    %3853 = vmatprep.subr.bf16.mxu0 0
    %3854 = vmatpush1.bf16.msra.mxu0 0
    %3855 = vmatprep.subr.bf16.mxu0 0
    %3856 = vmatpush1.bf16.msra.mxu0 0
    %3857 = vmatprep.subr.bf16.mxu0 0
    %3858 = vmatpush1.bf16.msra.mxu0 0
    %3859 = vmatprep.subr.bf16.mxu0 0
    %3860 = vmatpush1.bf16.msra.mxu0 0
    %3861 = vmatprep.subr.bf16.mxu0 0
    %3862 = vmatpush1.bf16.msra.mxu0 0
    %3863 = vmatprep.subr.bf16.mxu0 0
    %3864 = vmatpush1.bf16.msra.mxu0 0
    %3865 = vmatprep.subr.bf16.mxu0 0
    %3866 = vmatpush1.bf16.msra.mxu0 0
    %3867 = vmatprep.subr.bf16.mxu0 0
    %3868 = vmatpush1.bf16.msra.mxu0 0
    %3869 = vmatprep.mubr.bf16.mxu0 0
    %3870 = vmatmul.mubr.bf16.gmra.mrb[0].mxu0 %v3835
    %v3871 = vpop.f32.mrb[0].mxu0
    %v3872 = vadd.f32 %v3821, %v3871
    %v3873 = vpop.f32.mrb[0].mxu0
    %v3874 = vpop.f32.mrb[0].mxu0
    %v3875 = vadd.f32 %v3821, %v3874
    %v3876 = vpop.f32.mrb[0].mxu0
    %3877 = vdwg.mxu0
    %v3878 = vadd.f32 %v3872, %v93
    %v3879 = vadd.f32 %v3875, %v94
    %v3880 = vsel %vm121, %v3878, 0.0
    %3881 = vadd.xlane.f32.xlu0 %v3880
    %v3882 = vpop.xlane.xlu0 %3881
    %v3883 = vsel %vm121, %v3879, 0.0
    %3884 = vadd.xlane.f32.xlu0 %v3883
    %v3885 = vpop.xlane.xlu0 %3884
    %v3886 = vrcp.pop 32.0
    %v3887 = vmul.f32 %v3882, %v3886
    %v3888 = vmul.f32 %v3885, %v3886
    %v3889 = vsub.f32 %v3878, %v3887
    %v3890 = vsub.f32 %v3879, %v3888
    %v3891 = vmul.f32 %v3889, %v3889
    %v3892 = vmul.f32 %v3890, %v3890
    %v3893 = vsel %vm121, %v3891, 0.0
    %3894 = vadd.xlane.f32.xlu0 %v3893
    %v3895 = vpop.xlane.xlu0 %3894
    %v3896 = vsel %vm121, %v3892, 0.0
    %3897 = vadd.xlane.f32.xlu0 %v3896
    %v3898 = vpop.xlane.xlu0 %3897
    %v3899 = vmul.f32 %v3895, %v3886
    %v3900 = vmul.f32 %v3898, %v3886
    %v3901 = vadd.f32 %v3899, 1e-12
    %v3902 = vadd.f32 %v3900, 1e-12
    %v3903 = vrsqrt.pop %v3901
    %v3904 = vrsqrt.pop %v3902
    %v3905 = vmul.f32 %v3889, %v3903
    %v3906 = vmul.f32 %v3890, %v3904
    %v3907 = vlaneseq
    %v3908 = vshrl.u32 %v3907, 7
    %v3909 = vsub.s32 1, %v3908
    %v3910 = vrot.slane %v96, %v3909
    %v3911 = vmul.f32 %v3905, %v3910
    %v3912 = vmul.f32 %v3906, %v3910
    %v3913 = vlaneseq
    %v3914 = vshrl.u32 %v3913, 7
    %v3915 = vsub.s32 2, %v3914
    %v3916 = vrot.slane %v96, %v3915
    %v3917 = vadd.f32 %v3911, %v3916
    %v3918 = vadd.f32 %v3912, %v3916
    %v3919 = vpack.c.bf16 %v3918, %v3917
    %v3920 = vld [vmem:[#allocation8] sm:$0xf]
    %v3921 = vld [vmem:[#allocation8 + $0x4] sm:$0xf]
    %v3922 = vld [vmem:[#allocation8 + $0x8] sm:$0xf]
    %v3923 = vld [vmem:[#allocation8 + $0xc] sm:$0xf]
    %v3924 = vld [vmem:[%s9] sm:$0x1]
    %v3926 = vlaneseq
    %v3927 = vshrl.u32 %v3926, 7
    %v3928 = vsub.s32 0, %v3927
    %v3929 = vrot.slane %v3924, %v3928
    %v3935 = vunpack.c.l.b16 %v3920
    %v3936 = vunpack.c.l.b16 %v3921
    %v3937 = vunpack.c.l.b16 %v3922
    %v3938 = vunpack.c.l.b16 %v3923
    %v3939 = vpack.c.b16 %v3936, %v3935
    %v3940 = vpack.c.b16 %v3938, %v3937
    %v3944 = vsel %vm121, %v3919, 0
    %3946 = vmatprep.subr.bf16.mxu0 0
    %3947 = vmatpush1.bf16.msra.mxu0 %v3939
    %3948 = vmatprep.subr.bf16.mxu0 0
    %3949 = vmatpush1.bf16.msra.mxu0 %v3940
    %3950 = vmatprep.subr.bf16.mxu0 0
    %3951 = vmatpush1.bf16.msra.mxu0 0
    %3952 = vmatprep.subr.bf16.mxu0 0
    %3953 = vmatpush1.bf16.msra.mxu0 0
    %3954 = vmatprep.subr.bf16.mxu0 0
    %3955 = vmatpush1.bf16.msra.mxu0 0
    %3956 = vmatprep.subr.bf16.mxu0 0
    %3957 = vmatpush1.bf16.msra.mxu0 0
    %3958 = vmatprep.subr.bf16.mxu0 0
    %3959 = vmatpush1.bf16.msra.mxu0 0
    %3960 = vmatprep.subr.bf16.mxu0 0
    %3961 = vmatpush1.bf16.msra.mxu0 0
    %3962 = vmatprep.subr.bf16.mxu0 0
    %3963 = vmatpush1.bf16.msra.mxu0 0
    %3964 = vmatprep.subr.bf16.mxu0 0
    %3965 = vmatpush1.bf16.msra.mxu0 0
    %3966 = vmatprep.subr.bf16.mxu0 0
    %3967 = vmatpush1.bf16.msra.mxu0 0
    %3968 = vmatprep.subr.bf16.mxu0 0
    %3969 = vmatpush1.bf16.msra.mxu0 0
    %3970 = vmatprep.subr.bf16.mxu0 0
    %3971 = vmatpush1.bf16.msra.mxu0 0
    %3972 = vmatprep.subr.bf16.mxu0 0
    %3973 = vmatpush1.bf16.msra.mxu0 0
    %3974 = vmatprep.subr.bf16.mxu0 0
    %3975 = vmatpush1.bf16.msra.mxu0 0
    %3976 = vmatprep.subr.bf16.mxu0 0
    %3977 = vmatpush1.bf16.msra.mxu0 0
    %3978 = vmatprep.mubr.bf16.mxu0 0
    %3979 = vmatmul.mubr.bf16.gmra.mrb[0].mxu0 %v3944
    %v3980 = vpop.f32.mrb[0].mxu0
    %v3981 = vadd.f32 %v3929, %v3980
    %v3982 = vpop.f32.mrb[0].mxu0
    %v3983 = vpop.f32.mrb[0].mxu0
    %v3984 = vadd.f32 %v3929, %v3983
    %v3985 = vpop.f32.mrb[0].mxu0
    %3986 = vdwg.mxu0
    %v3987 = vmul.f32 %v3981, 0.5
    %v3988 = vmul.f32 %v3984, 0.5
    %v3989 = vmul.f32 %v3981, 0.70710677
    %v3990 = vmul.f32 %v3984, 0.70710677
    %v3991 = verf.f32.pop %v3989
    %v3992 = verf.f32.pop %v3990
    %v3993 = vadd.f32 %v3991, 1.0
    %v3994 = vadd.f32 %v3992, 1.0
    %v3995 = vmul.f32 %v3987, %v3993
    %v3996 = vmul.f32 %v3988, %v3994
    %v3997 = vpack.c.bf16 %v3996, %v3995
    %v3998 = vld [vmem:[%s7] sm:$0xf]
    %v3999 = vld [vmem:[%s7 + $0x4] sm:$0xf]
    %v4000 = vld [vmem:[%s7 + $0x8] sm:$0xf]
    %v4001 = vld [vmem:[%s7 + $0xc] sm:$0xf]
    %v4002 = vld [vmem:[%s7 + $0x10] sm:$0xf]
    %v4003 = vld [vmem:[%s7 + $0x14] sm:$0xf]
    %v4004 = vld [vmem:[%s7 + $0x18] sm:$0xf]
    %v4005 = vld [vmem:[%s7 + $0x1c] sm:$0xf]
    %v4006 = vlaneseq
    %v4007 = vshrl.u32 %v4006, 7
    %v4008 = vsub.s32 3, %v4007
    %v4009 = vrot.slane %v96, %v4008
    %v4018 = vunpack.c.l.b16 %v3998
    %v4019 = vunpack.c.l.b16 %v3999
    %v4020 = vunpack.c.l.b16 %v4000
    %v4021 = vunpack.c.l.b16 %v4001
    %v4022 = vunpack.c.l.b16 %v4002
    %v4023 = vunpack.c.l.b16 %v4003
    %v4024 = vunpack.c.l.b16 %v4004
    %v4025 = vunpack.c.l.b16 %v4005
    %v4026 = vpack.c.b16 %v4019, %v4018
    %v4027 = vpack.c.b16 %v4021, %v4020
    %v4028 = vpack.c.b16 %v4023, %v4022
    %v4029 = vpack.c.b16 %v4025, %v4024
    %vm4034 = vcmask 523264
    %v4036 = vsel %vm4034, %v3997, 0
    %4038 = vmatprep.subr.bf16.mxu0 0
    %4039 = vmatpush1.bf16.msra.mxu0 %v4026
    %4040 = vmatprep.subr.bf16.mxu0 0
    %4041 = vmatpush1.bf16.msra.mxu0 %v4027
    %4042 = vmatprep.subr.bf16.mxu0 0
    %4043 = vmatpush1.bf16.msra.mxu0 %v4028
    %4044 = vmatprep.subr.bf16.mxu0 0
    %4045 = vmatpush1.bf16.msra.mxu0 %v4029
    %4046 = vmatprep.subr.bf16.mxu0 0
    %4047 = vmatpush1.bf16.msra.mxu0 0
    %4048 = vmatprep.subr.bf16.mxu0 0
    %4049 = vmatpush1.bf16.msra.mxu0 0
    %4050 = vmatprep.subr.bf16.mxu0 0
    %4051 = vmatpush1.bf16.msra.mxu0 0
    %4052 = vmatprep.subr.bf16.mxu0 0
    %4053 = vmatpush1.bf16.msra.mxu0 0
    %4054 = vmatprep.subr.bf16.mxu0 0
    %4055 = vmatpush1.bf16.msra.mxu0 0
    %4056 = vmatprep.subr.bf16.mxu0 0
    %4057 = vmatpush1.bf16.msra.mxu0 0
    %4058 = vmatprep.subr.bf16.mxu0 0
    %4059 = vmatpush1.bf16.msra.mxu0 0
    %4060 = vmatprep.subr.bf16.mxu0 0
    %4061 = vmatpush1.bf16.msra.mxu0 0
    %4062 = vmatprep.subr.bf16.mxu0 0
    %4063 = vmatpush1.bf16.msra.mxu0 0
    %4064 = vmatprep.subr.bf16.mxu0 0
    %4065 = vmatpush1.bf16.msra.mxu0 0
    %4066 = vmatprep.subr.bf16.mxu0 0
    %4067 = vmatpush1.bf16.msra.mxu0 0
    %4068 = vmatprep.subr.bf16.mxu0 0
    %4069 = vmatpush1.bf16.msra.mxu0 0
    %4070 = vmatprep.mubr.bf16.mxu0 0
    %4071 = vmatmul.mubr.bf16.gmra.mrb[0].mxu0 %v4036
    %v4072 = vpop.f32.mrb[0].mxu0
    %v4073 = vadd.f32 %v4009, %v4072
    %v4074 = vpop.f32.mrb[0].mxu0
    %v4075 = vpop.f32.mrb[0].mxu0
    %v4076 = vadd.f32 %v4009, %v4075
    %v4077 = vpop.f32.mrb[0].mxu0
    %4078 = vdwg.mxu0
    %v4079 = vadd.f32 %v4073, %v3917
    %v4080 = vadd.f32 %v4076, %v3918
    %v4081 = vsel %vm121, %v4079, 0.0
    %4082 = vadd.xlane.f32.xlu0 %v4081
    %v4083 = vpop.xlane.xlu0 %4082
    %v4084 = vsel %vm121, %v4080, 0.0
    %4085 = vadd.xlane.f32.xlu0 %v4084
    %v4086 = vpop.xlane.xlu0 %4085
    %v4087 = vmul.f32 %v4083, %v3886
    %v4088 = vmul.f32 %v4086, %v3886
    %v4089 = vsub.f32 %v4079, %v4087
    %v4090 = vsub.f32 %v4080, %v4088
    %v4091 = vmul.f32 %v4089, %v4089
    %v4092 = vmul.f32 %v4090, %v4090
    %v4093 = vsel %vm121, %v4091, 0.0
    %4094 = vadd.xlane.f32.xlu0 %v4093
    %v4095 = vpop.xlane.xlu0 %4094
    %v4096 = vsel %vm121, %v4092, 0.0
    %4097 = vadd.xlane.f32.xlu0 %v4096
    %v4098 = vpop.xlane.xlu0 %4097
    %v4099 = vmul.f32 %v4095, %v3886
    %v4100 = vmul.f32 %v4098, %v3886
    %v4101 = vadd.f32 %v4099, 1e-12
    %v4102 = vadd.f32 %v4100, 1e-12
    %v4103 = vrsqrt.pop %v4101
    %v4104 = vrsqrt.pop %v4102
    %v4105 = vmul.f32 %v4089, %v4103
    %v4106 = vmul.f32 %v4090, %v4104
    %v4107 = vlaneseq
    %v4108 = vshrl.u32 %v4107, 7
    %v4109 = vsub.s32 4, %v4108
    %v4110 = vrot.slane %v96, %v4109
    %v4111 = vmul.f32 %v4105, %v4110
    %v4112 = vmul.f32 %v4106, %v4110
    %v4113 = vlaneseq
    %v4114 = vshrl.u32 %v4113, 7
    %v4115 = vsub.s32 5, %v4114
    %v4116 = vrot.slane %v96, %v4115
    %v4117 = vadd.f32 %v4111, %v4116
    %v4118 = vadd.f32 %v4112, %v4116
    %4119 = vst.msk [vmem:[#allocation10] sm:$0xff] %vm121, %v4117
    %4120 = vst.msk [vmem:[#allocation10 + $0x8] sm:$0xff] %vm121, %v4118
    // Predicated region
    $region58: #{tpu_custom_call.1} parent=1 // pred_check
      _
    $region59: #{tpu_custom_call.1} parent=1 // pred_check_branch
      %4122 = sbr.rel (0) target = $region61
    $region60: #{tpu_custom_call.1} parent=1 // pred_region
      %s4124 = ssub.s32 256, 256
      %4125 = vsyncadd [#allocation4], %s4124
      %s4126 = sshll.u32 [#allocation10], 4
      %s4127 = int_to_ptr.vmem [resolvable:$true] %s4126
      %4132 = dma.vmem_to_hbm [thread:$0]  %s4127, 256, %s10, [#allocation4], 128, 128, 8
    $region61: #{tpu_custom_call.1} parent=1 // pred_fallthru
      _
    // Predicated region
    $region62: #{tpu_custom_call.1} parent=1 // pred_check
      _
    $region63: #{tpu_custom_call.1} parent=1 // pred_check_branch
      %4134 = sbr.rel (0) target = $region65
    $region64: #{tpu_custom_call.1} parent=1 // pred_region
      %s4136 = ssub.s32 1024, 1024
      %4137 = vsyncadd [#allocation12], %s4136
      %s4138 = sshll.u32 [#allocation11], 4
      %s4139 = int_to_ptr.vmem [resolvable:$true] %s4138
      %4144 = dma.vmem_to_hbm [thread:$0]  %s4139, 1024, %s11, [#allocation12], 128, 128, 8
    $region65: #{tpu_custom_call.1} parent=1 // pred_fallthru
      _
    // Predicated region
    $region66: #{tpu_custom_call.1} parent=1 // pred_check
      _
    $region67: #{tpu_custom_call.1} parent=1 // pred_check_branch
      %4146 = sbr.rel (0) target = $region69
    $region68: #{tpu_custom_call.1} parent=1 // pred_region
      %4147 = dma.done [#allocation4], 256
    $region69: #{tpu_custom_call.1} parent=1 // pred_fallthru
      _
    // Predicated region
    $region70: #{tpu_custom_call.1} parent=1 // pred_check
      _
    $region71: #{tpu_custom_call.1} parent=1 // pred_check_branch
      %4149 = sbr.rel (0) target = $region73
    $region72: #{tpu_custom_call.1} parent=1 // pred_region
      %4150 = dma.done [#allocation12], 1024
    $region73: #{tpu_custom_call.1} parent=1 // pred_fallthru
      _
    %4151 = vsyncpa [#allocation3], 1
    %4152 = vsyncpa [#allocation6], 1
    %4153 = vsyncpa [#allocation9], 1
    %4154 = vsyncpa [#allocation4], 1
    %4155 = vsyncpa [#allocation12], 1

</llo_original>
